<compile_context>
chip_gen: v7x
topology: tpu7x:2x2x1
jax: 0.10.0
libtpu: 0.0.40
codegen_flags: <defaults>
</compile_context>

<pallas_src>
import functools

import jax
import jax.numpy as jnp
from jax.experimental import pallas as pl
from jax.experimental.pallas import tpu as pltpu


_COMPILER_PARAMS = pltpu.CompilerParams(
    dimension_semantics=("parallel",),
    vmem_limit_bytes=32 * 1024 * 1024,   # safe on v7x (64 MiB physical) as well
)

# tap order k = (dy+1)*3 + (dx+1) — matches nn.Conv2d cross-correlation order.
_TAPS = tuple((dy, dx) for dy in (-1, 0, 1) for dx in (-1, 0, 1))


# ----------------------------------------------------------------------------
# In-kernel helpers.  All activations are (C, L) f32 with L = Bb*H*W flattened
# spatial positions (batch-block stacked contiguously) on the lane axis.
# ----------------------------------------------------------------------------
def _shift_lanes(x, s):
    """out[:, i] = x[:, (i + s) mod L]  (pure lane rotation, no masking)."""
    L = x.shape[-1]
    k = (-s) % L
    if k == 0:
        return x
    return pltpu.roll(x, shift=k, axis=1)


def _tap_masks(L, H, W):
    """(1, L) f32 validity mask per 3x3 tap, built once per resolution.

    Lane layout: images stacked contiguously, pos-in-image = lane mod (H*W).
    The masks also zero taps that would leak across image boundaries when the
    batch is stacked on lanes.  Requires power-of-two H, W.
    """
    HW = H * W
    lane = jax.lax.broadcasted_iota(jnp.int32, (1, L), 1)
    pos = lane & (HW - 1)
    wi = pos & (W - 1)
    hi = pos >> (W.bit_length() - 1)
    okx = {-1: wi >= 1, 0: None, 1: wi <= W - 2}
    oky = {-1: hi >= 1, 0: None, 1: hi <= H - 2}
    masks = {}
    for dy, dx in _TAPS:
        m = None
        if oky[dy] is not None:
            m = oky[dy]
        if okx[dx] is not None:
            m = okx[dx] if m is None else (m & okx[dx])
        masks[(dy, dx)] = None if m is None else m.astype(jnp.float32)
    return masks


def _conv3x3(x, w9, b, masks, W, relu=True):
    """3x3 same-conv (stride 1, zero pad 1) as ONE bf16 MXU matmul.

    The 9 tap-shifted copies of x are stacked along the contraction axis:
        (Cout, 9*Cin) @ (9*Cin, L)   with f32 accumulation.
    x: (Cin, L) f32   w9: (Cout, 9*Cin) bf16   b: (Cout, 1) f32
    w9 column layout: k*Cin + c  with  k = (dy+1)*3 + (dx+1).
    """
    taps = []
    for dy, dx in _TAPS:
        xt = _shift_lanes(x, dy * W + dx)
        m = masks[(dy, dx)]
        if m is not None:
            xt = xt * m                       # (1, L) mask broadcast over rows
        taps.append(xt)
    x9 = jnp.concatenate(taps, axis=0).astype(jnp.bfloat16)      # (9*Cin, L)
    acc = jnp.dot(w9, x9, preferred_element_type=jnp.float32) + b
    return jnp.maximum(acc, 0.0) if relu else acc


# ----------------------------------------------------------------------------
# The fused kernel: one (block of) batch element(s) per grid step.
# ----------------------------------------------------------------------------
def _detector_kernel(x_ref, sd_ref, uu_ref, mmean_ref, mbcast_ref,
                     w1a_ref, b1a_ref, w1b_ref, b1b_ref,
                     w2a_ref, b2a_ref, w2b_ref, b2b_ref,
                     wd1_ref, bd1_ref, wd2_ref, bd2_ref,
                     sew1_ref, seb1_ref, sew2_ref, seb2_ref,
                     sews_ref, sebs_ref, wf_ref, bf_ref,
                     o_ref, *, H, W):
    L = x_ref.shape[-1]
    H2, W2 = H // 2, W // 2
    L4 = L // 4

    masks_f = _tap_masks(L, H, W)        # full resolution (built once)
    masks_h = _tap_masks(L4, H2, W2)     # half resolution (built once)

    # ---- encoder level 1 (full resolution) --------------------------------
    x = x_ref[...].astype(jnp.float32)                                # (8, L)
    h = _conv3x3(x, w1a_ref[...], b1a_ref[...], masks_f, W)           # (C, L)
    e1 = _conv3x3(h, w1b_ref[...], b1b_ref[...], masks_f, W)          # (C, L)

    # 2x2 max-pool: window max via three lane shifts, then pick the top-left
    # of every even (h, w) window with a one-hot select matmul (idle MXU).
    # Wrapped shift values only land on odd positions, which are never selected.
    m = jnp.maximum(jnp.maximum(e1, _shift_lanes(e1, 1)),
                    jnp.maximum(_shift_lanes(e1, W), _shift_lanes(e1, W + 1)))
    p1 = jnp.dot(m.astype(jnp.bfloat16), sd_ref[...],
                 preferred_element_type=jnp.float32)                  # (C, L/4)

    # ---- encoder level 2 (half resolution) ---------------------------------
    h2 = _conv3x3(p1, w2a_ref[...], b2a_ref[...], masks_h, W2)        # (2C, L/4)
    e2 = _conv3x3(h2, w2b_ref[...], b2b_ref[...], masks_h, W2)        # (2C, L/4)

    # ---- decoder: nearest 2x upsample + skip-concat conv pair --------------
    up = jnp.dot(e2.astype(jnp.bfloat16), uu_ref[...],
                 preferred_element_type=jnp.float32)                  # (2C, L)
    xcat = jnp.concatenate([up, e1], axis=0)                          # (3C, L)
    d = _conv3x3(xcat, wd1_ref[...], bd1_ref[...], masks_f, W)        # (C, L)
    d = _conv3x3(d, wd2_ref[...], bd2_ref[...], masks_f, W)           # (C, L)

    # ---- SCSE attention (per-image channel SE + spatial SE) ----------------
    # per-image spatial mean via a tiny (L, Bb) matmul (correct with the batch
    # stacked on lanes), then the usual squeeze-excite MLP.
    mean_c = jnp.dot(d, mmean_ref[...],
                     preferred_element_type=jnp.float32)              # (C, Bb)
    z = jnp.maximum(
        jnp.dot(sew1_ref[...], mean_c, preferred_element_type=jnp.float32)
        + seb1_ref[...], 0.0)                                         # (r, Bb)
    cse = jax.nn.sigmoid(
        jnp.dot(sew2_ref[...], z, preferred_element_type=jnp.float32)
        + seb2_ref[...])                                              # (C, Bb)
    cse_full = jnp.dot(cse, mbcast_ref[...],
                       preferred_element_type=jnp.float32)            # (C, L)
    sse = jax.nn.sigmoid(
        jnp.dot(sews_ref[...], d, preferred_element_type=jnp.float32)
        + sebs_ref[...])                                              # (1, L)
    att = d * (cse_full + sse)                                        # (C, L)

    # ---- final 1x1 conv (C -> 1) + sigmoid, lane-dense (1, L) output -------
    logit = jnp.dot(wf_ref[...], att,
                    preferred_element_type=jnp.float32) + bf_ref[...]
    o_ref[...] = jax.nn.sigmoid(logit)


# ----------------------------------------------------------------------------
# Constant matrices (built in the wrapper; tiny at these shapes)
# ----------------------------------------------------------------------------
def _pool_select_matrix(H, W, Bb):
    """(L, L/4) bf16 one-hot: (C,L)@SD picks the top-left of every 2x2 window."""
    HW, W2, HW4 = H * W, W // 2, (H * W) // 4
    j = jnp.arange(Bb * HW4)
    bb, jj = j // HW4, j % HW4
    src = bb * HW + 2 * (jj // W2) * W + 2 * (jj % W2)
    return (jnp.arange(Bb * HW)[:, None] == src[None, :]).astype(jnp.bfloat16)


def _upsample_matrix(H, W, Bb):
    """(L/4, L) bf16 one-hot: (C,L/4)@UU is 2x nearest-neighbour upsample."""
    HW, W2, HW4 = H * W, W // 2, (H * W) // 4
    i = jnp.arange(Bb * HW)
    bb, ii = i // HW, i % HW
    src = bb * HW4 + (ii // W // 2) * W2 + (ii % W) // 2
    return (jnp.arange(Bb * HW4)[:, None] == src[None, :]).astype(jnp.bfloat16)


def _mean_matrix(HW, Bb):
    """(L, Bb) f32: per-image spatial mean as a matmul."""
    l = jnp.arange(Bb * HW)
    return ((l[:, None] // HW) == jnp.arange(Bb)[None, :]).astype(jnp.float32) / HW


def _bcast_matrix(HW, Bb):
    """(Bb, L) f32: broadcast per-image scalars back over their lanes."""
    l = jnp.arange(Bb * HW)
    return (jnp.arange(Bb)[:, None] == (l[None, :] // HW)).astype(jnp.float32)


def _pick_batch_block(B, HW):
    """Generation-aware batch handling.

    v5e/v6e have a single TensorCore: stack the whole batch on the lane axis
    (one grid step, larger N per matmul, no per-step overhead).  v7x has two
    TensorCores: split the batch across grid=(B,)+"parallel" -- but only when
    the half-resolution lane extent still fills a full 128-lane vreg.
    """
    try:
        kind = jax.devices()[0].device_kind.lower()
    except Exception:
        kind = ""
    if ("v7" in kind or "7x" in kind) and B > 1 and (HW // 4) >= 128:
        return 1
    return B


def _const_spec(a):
    nd = a.ndim
    return pl.BlockSpec(a.shape, lambda g, _nd=nd: (0,) * _nd)


# ----------------------------------------------------------------------------
# Deterministic synthetic parameters (Kaiming-style scale)
# ----------------------------------------------------------------------------
def init_detector_params(key, cin=3, base=16, se_reduce=4, cin_pad=8):
    C = base
    r = max(C // se_reduce, 1)
    ks = jax.random.split(key, 10)

    def conv_w(k, cout, cin_, cin_pad_=None):
        cp = cin_ if cin_pad_ is None else cin_pad_
        w = (jax.random.normal(k, (9, cout, cin_), jnp.float32)
             * jnp.sqrt(2.0 / (9 * cin_)))
        if cp != cin_:
            w = jnp.pad(w, ((0, 0), (0, 0), (0, cp - cin_)))
        # (9, Cout, Cin) -> (Cout, 9*Cin); column k*Cin + c maps to torch
        # weight[co, c, ky, kx] with k = ky*3 + kx (cross-correlation order).
        return jnp.transpose(w, (1, 0, 2)).reshape(cout, 9 * cp).astype(jnp.bfloat16)

    def lin_w(k, cout, cin_):
        return (jax.random.normal(k, (cout, cin_), jnp.float32)
                * jnp.sqrt(2.0 / cin_))

    zb = lambda c: jnp.zeros((c, 1), jnp.float32)

    p = {}
    # encoder level 1: cin(padded) -> C -> C
    p["e1a_w"] = conv_w(ks[0], C, cin, cin_pad);  p["e1a_b"] = zb(C)
    p["e1b_w"] = conv_w(ks[1], C, C);             p["e1b_b"] = zb(C)
    # encoder level 2: C -> 2C -> 2C
    p["e2a_w"] = conv_w(ks[2], 2 * C, C);         p["e2a_b"] = zb(2 * C)
    p["e2b_w"] = conv_w(ks[3], 2 * C, 2 * C);     p["e2b_b"] = zb(2 * C)
    # decoder conv1 over concat([up(2C), skip(C)]) -> C, then C -> C
    p["d1_w"] = conv_w(ks[4], C, 3 * C);          p["d1_b"] = zb(C)
    p["d2_w"] = conv_w(ks[5], C, C);              p["d2_b"] = zb(C)
    # SCSE attention (f32: tiny matmuls)
    p["se_w1"] = lin_w(ks[6], r, C);              p["se_b1"] = jnp.zeros((r, 1), jnp.float32)
    p["se_w2"] = lin_w(ks[7], C, r);              p["se_b2"] = zb(C)
    p["se_ws"] = jax.random.normal(ks[8], (1, C), jnp.float32) * jnp.sqrt(1.0 / C)
    p["se_bs"] = jnp.zeros((1, 1), jnp.float32)
    # final 1x1 conv -> 1 channel + sigmoid
    p["fin_w"] = jax.random.normal(ks[9], (1, C), jnp.float32) * jnp.sqrt(1.0 / C)
    p["fin_b"] = jnp.zeros((1, 1), jnp.float32)
    return p


# ----------------------------------------------------------------------------
# Detector.forward:  Ii (NCHW [B,3,H,W]) -> Mo (NCHW [B,1,H,W])
# ----------------------------------------------------------------------------
def detector_forward(params, Ii, batch_block=None):
    B, cin, H, W = Ii.shape
    assert (H & (H - 1)) == 0 and (W & (W - 1)) == 0 and H >= 4 and W >= 4, \
        "power-of-two H, W expected"
    HW = H * W
    Bb = batch_block if batch_block is not None else _pick_batch_block(B, HW)
    assert B % Bb == 0
    L = Bb * HW

    # NCHW -> channels-major with the batch stacked on the lane axis:
    # (Cin_pad, B*HW).  Channel padding to 8 keeps every tap stack tile-aligned.
    cin_pad = params["e1a_w"].shape[1] // 9
    x = jnp.transpose(Ii.reshape(B, cin, HW).astype(jnp.float32), (1, 0, 2))
    x = x.reshape(cin, B * HW)
    if cin_pad != cin:
        x = jnp.pad(x, ((0, cin_pad - cin), (0, 0)))

    consts = (
        _pool_select_matrix(H, W, Bb), _upsample_matrix(H, W, Bb),
        _mean_matrix(HW, Bb), _bcast_matrix(HW, Bb),
        params["e1a_w"], params["e1a_b"], params["e1b_w"], params["e1b_b"],
        params["e2a_w"], params["e2a_b"], params["e2b_w"], params["e2b_b"],
        params["d1_w"], params["d1_b"], params["d2_w"], params["d2_b"],
        params["se_w1"], params["se_b1"], params["se_w2"], params["se_b2"],
        params["se_ws"], params["se_bs"], params["fin_w"], params["fin_b"],
    )

    kern = functools.partial(_detector_kernel, H=H, W=W)
    out = pl.pallas_call(
        kern,
        out_shape=jax.ShapeDtypeStruct((1, B * HW), jnp.float32),
        grid=(B // Bb,),
        in_specs=[pl.BlockSpec((cin_pad, L), lambda g: (0, g))]
                 + [_const_spec(a) for a in consts],
        out_specs=pl.BlockSpec((1, L), lambda g: (0, g)),
        compiler_params=_COMPILER_PARAMS,
    )(x, *consts)
    return out.reshape(B, 1, H, W)


if __name__ == "__main__":
    key = jax.random.PRNGKey(0)
    k_param, k_input = jax.random.split(key)

    B, Cin, H, W = 2, 3, 16, 16
    params = init_detector_params(k_param, cin=Cin, base=16)
    Ii = jax.random.normal(k_input, (B, Cin, H, W), jnp.float32)

    fwd = jax.jit(functools.partial(detector_forward, params))
    Mo = jax.block_until_ready(fwd(Ii))

    assert Mo.shape == (B, 1, H, W), Mo.shape
    assert Mo.dtype == jnp.float32
    assert bool(jnp.all(jnp.isfinite(Mo)))
    assert bool(jnp.all((Mo >= 0.0) & (Mo <= 1.0)))  # sigmoid output range
    print("KERNEL_OK")
</pallas_src>

<mosaic_0001>
module attributes {stable_mosaic.version = 11 : i64} {
  func.func @_detector_kernel(%arg0: i32, %arg1: memref<8x512xf32, #tpu.memory_space<vmem>>, %arg2: memref<512x128xbf16, #tpu.memory_space<vmem>>, %arg3: memref<128x512xbf16, #tpu.memory_space<vmem>>, %arg4: memref<512x2xf32, #tpu.memory_space<vmem>>, %arg5: memref<2x512xf32, #tpu.memory_space<vmem>>, %arg6: memref<16x72xbf16, #tpu.memory_space<vmem>>, %arg7: memref<16x1xf32, #tpu.memory_space<vmem>>, %arg8: memref<16x144xbf16, #tpu.memory_space<vmem>>, %arg9: memref<16x1xf32, #tpu.memory_space<vmem>>, %arg10: memref<32x144xbf16, #tpu.memory_space<vmem>>, %arg11: memref<32x1xf32, #tpu.memory_space<vmem>>, %arg12: memref<32x288xbf16, #tpu.memory_space<vmem>>, %arg13: memref<32x1xf32, #tpu.memory_space<vmem>>, %arg14: memref<16x432xbf16, #tpu.memory_space<vmem>>, %arg15: memref<16x1xf32, #tpu.memory_space<vmem>>, %arg16: memref<16x144xbf16, #tpu.memory_space<vmem>>, %arg17: memref<16x1xf32, #tpu.memory_space<vmem>>, %arg18: memref<4x16xf32, #tpu.memory_space<vmem>>, %arg19: memref<4x1xf32, #tpu.memory_space<vmem>>, %arg20: memref<16x4xf32, #tpu.memory_space<vmem>>, %arg21: memref<16x1xf32, #tpu.memory_space<vmem>>, %arg22: memref<1x16xf32, #tpu.memory_space<vmem>>, %arg23: memref<1x1xf32, #tpu.memory_space<vmem>>, %arg24: memref<1x16xf32, #tpu.memory_space<vmem>>, %arg25: memref<1x1xf32, #tpu.memory_space<vmem>>, %arg26: memref<1x512xf32, #tpu.memory_space<vmem>>) attributes {dimension_semantics = [#tpu.dimension_semantics<parallel>], iteration_bounds = array<i64: 1>, scalar_prefetch = 0 : i64, scratch_operands = 0 : i64, tpu.core_type = #tpu.core_type<tc>, window_params = [{transform_indices = @transform_0, window_bounds = array<i64: 8, 512>}, {pipeline_mode = #tpu.pipeline_mode<synchronous>, transform_indices = @transform_1, window_bounds = array<i64: 512, 128>}, {pipeline_mode = #tpu.pipeline_mode<synchronous>, transform_indices = @transform_2, window_bounds = array<i64: 128, 512>}, {pipeline_mode = #tpu.pipeline_mode<synchronous>, transform_indices = @transform_3, window_bounds = array<i64: 512, 2>}, {pipeline_mode = #tpu.pipeline_mode<synchronous>, transform_indices = @transform_4, window_bounds = array<i64: 2, 512>}, {pipeline_mode = #tpu.pipeline_mode<synchronous>, transform_indices = @transform_5, window_bounds = array<i64: 16, 72>}, {pipeline_mode = #tpu.pipeline_mode<synchronous>, transform_indices = @transform_6, window_bounds = array<i64: 16, 1>}, {pipeline_mode = #tpu.pipeline_mode<synchronous>, transform_indices = @transform_7, window_bounds = array<i64: 16, 144>}, {pipeline_mode = #tpu.pipeline_mode<synchronous>, transform_indices = @transform_8, window_bounds = array<i64: 16, 1>}, {pipeline_mode = #tpu.pipeline_mode<synchronous>, transform_indices = @transform_9, window_bounds = array<i64: 32, 144>}, {pipeline_mode = #tpu.pipeline_mode<synchronous>, transform_indices = @transform_10, window_bounds = array<i64: 32, 1>}, {pipeline_mode = #tpu.pipeline_mode<synchronous>, transform_indices = @transform_11, window_bounds = array<i64: 32, 288>}, {pipeline_mode = #tpu.pipeline_mode<synchronous>, transform_indices = @transform_12, window_bounds = array<i64: 32, 1>}, {pipeline_mode = #tpu.pipeline_mode<synchronous>, transform_indices = @transform_13, window_bounds = array<i64: 16, 432>}, {pipeline_mode = #tpu.pipeline_mode<synchronous>, transform_indices = @transform_14, window_bounds = array<i64: 16, 1>}, {pipeline_mode = #tpu.pipeline_mode<synchronous>, transform_indices = @transform_15, window_bounds = array<i64: 16, 144>}, {pipeline_mode = #tpu.pipeline_mode<synchronous>, transform_indices = @transform_16, window_bounds = array<i64: 16, 1>}, {pipeline_mode = #tpu.pipeline_mode<synchronous>, transform_indices = @transform_17, window_bounds = array<i64: 4, 16>}, {pipeline_mode = #tpu.pipeline_mode<synchronous>, transform_indices = @transform_18, window_bounds = array<i64: 4, 1>}, {pipeline_mode = #tpu.pipeline_mode<synchronous>, transform_indices = @transform_19, window_bounds = array<i64: 16, 4>}, {pipeline_mode = #tpu.pipeline_mode<synchronous>, transform_indices = @transform_20, window_bounds = array<i64: 16, 1>}, {pipeline_mode = #tpu.pipeline_mode<synchronous>, transform_indices = @transform_21, window_bounds = array<i64: 1, 16>}, {pipeline_mode = #tpu.pipeline_mode<synchronous>, transform_indices = @transform_22, window_bounds = array<i64: 1, 1>}, {pipeline_mode = #tpu.pipeline_mode<synchronous>, transform_indices = @transform_23, window_bounds = array<i64: 1, 16>}, {pipeline_mode = #tpu.pipeline_mode<synchronous>, transform_indices = @transform_24, window_bounds = array<i64: 1, 1>}, {transform_indices = @transform_25, window_bounds = array<i64: 1, 512>}]} {
    %0 = tpu.iota {dimensions = array<i32: 1>} : vector<1x512xi32>
    %c255_i32 = arith.constant 255 : i32
    %1 = vector.broadcast %c255_i32 : i32 to vector<1x512xi32>
    %2 = arith.andi %0, %1 : vector<1x512xi32>
    %c15_i32 = arith.constant 15 : i32
    %3 = vector.broadcast %c15_i32 : i32 to vector<1x512xi32>
    %4 = arith.andi %2, %3 : vector<1x512xi32>
    %c4_i32 = arith.constant 4 : i32
    %5 = vector.broadcast %c4_i32 : i32 to vector<1x512xi32>
    %6 = arith.shrsi %2, %5 : vector<1x512xi32>
    %c1_i32 = arith.constant 1 : i32
    %7 = vector.broadcast %c1_i32 : i32 to vector<1x512xi32>
    %8 = arith.cmpi sge, %4, %7 : vector<1x512xi32>
    %c14_i32 = arith.constant 14 : i32
    %9 = vector.broadcast %c14_i32 : i32 to vector<1x512xi32>
    %10 = arith.cmpi sle, %4, %9 : vector<1x512xi32>
    %c1_i32_0 = arith.constant 1 : i32
    %11 = vector.broadcast %c1_i32_0 : i32 to vector<1x512xi32>
    %12 = arith.cmpi sge, %6, %11 : vector<1x512xi32>
    %c14_i32_1 = arith.constant 14 : i32
    %13 = vector.broadcast %c14_i32_1 : i32 to vector<1x512xi32>
    %14 = arith.cmpi sle, %6, %13 : vector<1x512xi32>
    %15 = arith.andi %12, %8 : vector<1x512xi1>
    %16 = arith.extui %15 : vector<1x512xi1> to vector<1x512xi32>
    %17 = arith.sitofp %16 : vector<1x512xi32> to vector<1x512xf32>
    %18 = arith.extui %12 : vector<1x512xi1> to vector<1x512xi32>
    %19 = arith.sitofp %18 : vector<1x512xi32> to vector<1x512xf32>
    %20 = arith.andi %12, %10 : vector<1x512xi1>
    %21 = arith.extui %20 : vector<1x512xi1> to vector<1x512xi32>
    %22 = arith.sitofp %21 : vector<1x512xi32> to vector<1x512xf32>
    %23 = arith.extui %8 : vector<1x512xi1> to vector<1x512xi32>
    %24 = arith.sitofp %23 : vector<1x512xi32> to vector<1x512xf32>
    %25 = arith.extui %10 : vector<1x512xi1> to vector<1x512xi32>
    %26 = arith.sitofp %25 : vector<1x512xi32> to vector<1x512xf32>
    %27 = arith.andi %14, %8 : vector<1x512xi1>
    %28 = arith.extui %27 : vector<1x512xi1> to vector<1x512xi32>
    %29 = arith.sitofp %28 : vector<1x512xi32> to vector<1x512xf32>
    %30 = arith.extui %14 : vector<1x512xi1> to vector<1x512xi32>
    %31 = arith.sitofp %30 : vector<1x512xi32> to vector<1x512xf32>
    %32 = arith.andi %14, %10 : vector<1x512xi1>
    %33 = arith.extui %32 : vector<1x512xi1> to vector<1x512xi32>
    %34 = arith.sitofp %33 : vector<1x512xi32> to vector<1x512xf32>
    %35 = tpu.iota {dimensions = array<i32: 1>} : vector<1x128xi32>
    %c63_i32 = arith.constant 63 : i32
    %36 = vector.broadcast %c63_i32 : i32 to vector<1x128xi32>
    %37 = arith.andi %35, %36 : vector<1x128xi32>
    %c7_i32 = arith.constant 7 : i32
    %38 = vector.broadcast %c7_i32 : i32 to vector<1x128xi32>
    %39 = arith.andi %37, %38 : vector<1x128xi32>
    %c3_i32 = arith.constant 3 : i32
    %40 = vector.broadcast %c3_i32 : i32 to vector<1x128xi32>
    %41 = arith.shrsi %37, %40 : vector<1x128xi32>
    %c1_i32_2 = arith.constant 1 : i32
    %42 = vector.broadcast %c1_i32_2 : i32 to vector<1x128xi32>
    %43 = arith.cmpi sge, %39, %42 : vector<1x128xi32>
    %c6_i32 = arith.constant 6 : i32
    %44 = vector.broadcast %c6_i32 : i32 to vector<1x128xi32>
    %45 = arith.cmpi sle, %39, %44 : vector<1x128xi32>
    %c1_i32_3 = arith.constant 1 : i32
    %46 = vector.broadcast %c1_i32_3 : i32 to vector<1x128xi32>
    %47 = arith.cmpi sge, %41, %46 : vector<1x128xi32>
    %c6_i32_4 = arith.constant 6 : i32
    %48 = vector.broadcast %c6_i32_4 : i32 to vector<1x128xi32>
    %49 = arith.cmpi sle, %41, %48 : vector<1x128xi32>
    %50 = arith.andi %47, %43 : vector<1x128xi1>
    %51 = arith.extui %50 : vector<1x128xi1> to vector<1x128xi32>
    %52 = arith.sitofp %51 : vector<1x128xi32> to vector<1x128xf32>
    %53 = arith.extui %47 : vector<1x128xi1> to vector<1x128xi32>
    %54 = arith.sitofp %53 : vector<1x128xi32> to vector<1x128xf32>
    %55 = arith.andi %47, %45 : vector<1x128xi1>
    %56 = arith.extui %55 : vector<1x128xi1> to vector<1x128xi32>
    %57 = arith.sitofp %56 : vector<1x128xi32> to vector<1x128xf32>
    %58 = arith.extui %43 : vector<1x128xi1> to vector<1x128xi32>
    %59 = arith.sitofp %58 : vector<1x128xi32> to vector<1x128xf32>
    %60 = arith.extui %45 : vector<1x128xi1> to vector<1x128xi32>
    %61 = arith.sitofp %60 : vector<1x128xi32> to vector<1x128xf32>
    %62 = arith.andi %49, %43 : vector<1x128xi1>
    %63 = arith.extui %62 : vector<1x128xi1> to vector<1x128xi32>
    %64 = arith.sitofp %63 : vector<1x128xi32> to vector<1x128xf32>
    %65 = arith.extui %49 : vector<1x128xi1> to vector<1x128xi32>
    %66 = arith.sitofp %65 : vector<1x128xi32> to vector<1x128xf32>
    %67 = arith.andi %49, %45 : vector<1x128xi1>
    %68 = arith.extui %67 : vector<1x128xi1> to vector<1x128xi32>
    %69 = arith.sitofp %68 : vector<1x128xi32> to vector<1x128xf32>
    %c0 = arith.constant 0 : index
    %c0_5 = arith.constant 0 : index
    %70 = vector.load %arg1[%c0, %c0_5] : memref<8x512xf32, #tpu.memory_space<vmem>>, vector<8x512xf32>
    %c0_6 = arith.constant 0 : index
    %c0_7 = arith.constant 0 : index
    %71 = vector.load %arg6[%c0_6, %c0_7] : memref<16x72xbf16, #tpu.memory_space<vmem>>, vector<16x72xbf16>
    %c0_8 = arith.constant 0 : index
    %c0_9 = arith.constant 0 : index
    %72 = vector.load %arg7[%c0_8, %c0_9] : memref<16x1xf32, #tpu.memory_space<vmem>>, vector<16x1xf32>
    %c17_i32 = arith.constant 17 : i32
    %73 = tpu.dynamic_rotate %70 by %c17_i32 dim 1 : vector<8x512xf32>, i32 -> vector<8x512xf32>
    %74 = vector.broadcast %17 : vector<1x512xf32> to vector<8x512xf32>
    %75 = arith.mulf %73, %74 : vector<8x512xf32>
    %c16_i32 = arith.constant 16 : i32
    %76 = tpu.dynamic_rotate %70 by %c16_i32 dim 1 : vector<8x512xf32>, i32 -> vector<8x512xf32>
    %77 = vector.broadcast %19 : vector<1x512xf32> to vector<8x512xf32>
    %78 = arith.mulf %76, %77 : vector<8x512xf32>
    %c15_i32_10 = arith.constant 15 : i32
    %79 = tpu.dynamic_rotate %70 by %c15_i32_10 dim 1 : vector<8x512xf32>, i32 -> vector<8x512xf32>
    %80 = vector.broadcast %22 : vector<1x512xf32> to vector<8x512xf32>
    %81 = arith.mulf %79, %80 : vector<8x512xf32>
    %c1_i32_11 = arith.constant 1 : i32
    %82 = tpu.dynamic_rotate %70 by %c1_i32_11 dim 1 : vector<8x512xf32>, i32 -> vector<8x512xf32>
    %83 = vector.broadcast %24 : vector<1x512xf32> to vector<8x512xf32>
    %84 = arith.mulf %82, %83 : vector<8x512xf32>
    %c511_i32 = arith.constant 511 : i32
    %85 = tpu.dynamic_rotate %70 by %c511_i32 dim 1 : vector<8x512xf32>, i32 -> vector<8x512xf32>
    %86 = vector.broadcast %26 : vector<1x512xf32> to vector<8x512xf32>
    %87 = arith.mulf %85, %86 : vector<8x512xf32>
    %c497_i32 = arith.constant 497 : i32
    %88 = tpu.dynamic_rotate %70 by %c497_i32 dim 1 : vector<8x512xf32>, i32 -> vector<8x512xf32>
    %89 = vector.broadcast %29 : vector<1x512xf32> to vector<8x512xf32>
    %90 = arith.mulf %88, %89 : vector<8x512xf32>
    %c496_i32 = arith.constant 496 : i32
    %91 = tpu.dynamic_rotate %70 by %c496_i32 dim 1 : vector<8x512xf32>, i32 -> vector<8x512xf32>
    %92 = vector.broadcast %31 : vector<1x512xf32> to vector<8x512xf32>
    %93 = arith.mulf %91, %92 : vector<8x512xf32>
    %c495_i32 = arith.constant 495 : i32
    %94 = tpu.dynamic_rotate %70 by %c495_i32 dim 1 : vector<8x512xf32>, i32 -> vector<8x512xf32>
    %95 = vector.broadcast %34 : vector<1x512xf32> to vector<8x512xf32>
    %96 = arith.mulf %94, %95 : vector<8x512xf32>
    %97 = tpu.concatenate %75, %78, %81, %84, %70, %87, %90, %93, %96 in 0 : vector<8x512xf32>, vector<8x512xf32>, vector<8x512xf32>, vector<8x512xf32>, vector<8x512xf32>, vector<8x512xf32>, vector<8x512xf32>, vector<8x512xf32>, vector<8x512xf32> -> vector<72x512xf32>
    %98 = arith.truncf %97 : vector<72x512xf32> to vector<72x512xbf16>
    %cst = arith.constant dense<0.000000e+00> : vector<16x512xf32>
    %99 = tpu.matmul %71, %98, %cst {dimension_numbers = #tpu.dot_dimension_numbers<[1], [0], [0], [1], [0, 0, 1, 1], [], []>} : vector<16x72xbf16>, vector<72x512xbf16>, vector<16x512xf32> -> vector<16x512xf32>
    %100 = vector.broadcast %72 : vector<16x1xf32> to vector<16x512xf32>
    %101 = arith.addf %99, %100 : vector<16x512xf32>
    %cst_12 = arith.constant 0.000000e+00 : f32
    %102 = vector.broadcast %cst_12 : f32 to vector<16x512xf32>
    %103 = arith.maximumf %101, %102 : vector<16x512xf32>
    %c0_13 = arith.constant 0 : index
    %c0_14 = arith.constant 0 : index
    %104 = vector.load %arg8[%c0_13, %c0_14] : memref<16x144xbf16, #tpu.memory_space<vmem>>, vector<16x144xbf16>
    %c0_15 = arith.constant 0 : index
    %c0_16 = arith.constant 0 : index
    %105 = vector.load %arg9[%c0_15, %c0_16] : memref<16x1xf32, #tpu.memory_space<vmem>>, vector<16x1xf32>
    %c17_i32_17 = arith.constant 17 : i32
    %106 = tpu.dynamic_rotate %103 by %c17_i32_17 dim 1 : vector<16x512xf32>, i32 -> vector<16x512xf32>
    %107 = vector.broadcast %17 : vector<1x512xf32> to vector<16x512xf32>
    %108 = arith.mulf %106, %107 : vector<16x512xf32>
    %c16_i32_18 = arith.constant 16 : i32
    %109 = tpu.dynamic_rotate %103 by %c16_i32_18 dim 1 : vector<16x512xf32>, i32 -> vector<16x512xf32>
    %110 = vector.broadcast %19 : vector<1x512xf32> to vector<16x512xf32>
    %111 = arith.mulf %109, %110 : vector<16x512xf32>
    %c15_i32_19 = arith.constant 15 : i32
    %112 = tpu.dynamic_rotate %103 by %c15_i32_19 dim 1 : vector<16x512xf32>, i32 -> vector<16x512xf32>
    %113 = vector.broadcast %22 : vector<1x512xf32> to vector<16x512xf32>
    %114 = arith.mulf %112, %113 : vector<16x512xf32>
    %c1_i32_20 = arith.constant 1 : i32
    %115 = tpu.dynamic_rotate %103 by %c1_i32_20 dim 1 : vector<16x512xf32>, i32 -> vector<16x512xf32>
    %116 = vector.broadcast %24 : vector<1x512xf32> to vector<16x512xf32>
    %117 = arith.mulf %115, %116 : vector<16x512xf32>
    %c511_i32_21 = arith.constant 511 : i32
    %118 = tpu.dynamic_rotate %103 by %c511_i32_21 dim 1 : vector<16x512xf32>, i32 -> vector<16x512xf32>
    %119 = vector.broadcast %26 : vector<1x512xf32> to vector<16x512xf32>
    %120 = arith.mulf %118, %119 : vector<16x512xf32>
    %c497_i32_22 = arith.constant 497 : i32
    %121 = tpu.dynamic_rotate %103 by %c497_i32_22 dim 1 : vector<16x512xf32>, i32 -> vector<16x512xf32>
    %122 = vector.broadcast %29 : vector<1x512xf32> to vector<16x512xf32>
    %123 = arith.mulf %121, %122 : vector<16x512xf32>
    %c496_i32_23 = arith.constant 496 : i32
    %124 = tpu.dynamic_rotate %103 by %c496_i32_23 dim 1 : vector<16x512xf32>, i32 -> vector<16x512xf32>
    %125 = vector.broadcast %31 : vector<1x512xf32> to vector<16x512xf32>
    %126 = arith.mulf %124, %125 : vector<16x512xf32>
    %c495_i32_24 = arith.constant 495 : i32
    %127 = tpu.dynamic_rotate %103 by %c495_i32_24 dim 1 : vector<16x512xf32>, i32 -> vector<16x512xf32>
    %128 = vector.broadcast %34 : vector<1x512xf32> to vector<16x512xf32>
    %129 = arith.mulf %127, %128 : vector<16x512xf32>
    %130 = tpu.concatenate %108, %111, %114, %117, %103, %120, %123, %126, %129 in 0 : vector<16x512xf32>, vector<16x512xf32>, vector<16x512xf32>, vector<16x512xf32>, vector<16x512xf32>, vector<16x512xf32>, vector<16x512xf32>, vector<16x512xf32>, vector<16x512xf32> -> vector<144x512xf32>
    %131 = arith.truncf %130 : vector<144x512xf32> to vector<144x512xbf16>
    %cst_25 = arith.constant dense<0.000000e+00> : vector<16x512xf32>
    %132 = tpu.matmul %104, %131, %cst_25 {dimension_numbers = #tpu.dot_dimension_numbers<[1], [0], [0], [1], [0, 0, 1, 1], [], []>} : vector<16x144xbf16>, vector<144x512xbf16>, vector<16x512xf32> -> vector<16x512xf32>
    %133 = vector.broadcast %105 : vector<16x1xf32> to vector<16x512xf32>
    %134 = arith.addf %132, %133 : vector<16x512xf32>
    %cst_26 = arith.constant 0.000000e+00 : f32
    %135 = vector.broadcast %cst_26 : f32 to vector<16x512xf32>
    %136 = arith.maximumf %134, %135 : vector<16x512xf32>
    %c511_i32_27 = arith.constant 511 : i32
    %137 = tpu.dynamic_rotate %136 by %c511_i32_27 dim 1 : vector<16x512xf32>, i32 -> vector<16x512xf32>
    %138 = arith.maximumf %136, %137 : vector<16x512xf32>
    %c496_i32_28 = arith.constant 496 : i32
    %139 = tpu.dynamic_rotate %136 by %c496_i32_28 dim 1 : vector<16x512xf32>, i32 -> vector<16x512xf32>
    %c495_i32_29 = arith.constant 495 : i32
    %140 = tpu.dynamic_rotate %136 by %c495_i32_29 dim 1 : vector<16x512xf32>, i32 -> vector<16x512xf32>
    %141 = arith.maximumf %139, %140 : vector<16x512xf32>
    %142 = arith.maximumf %138, %141 : vector<16x512xf32>
    %143 = arith.truncf %142 : vector<16x512xf32> to vector<16x512xbf16>
    %c0_30 = arith.constant 0 : index
    %c0_31 = arith.constant 0 : index
    %144 = vector.load %arg2[%c0_30, %c0_31] : memref<512x128xbf16, #tpu.memory_space<vmem>>, vector<512x128xbf16>
    %cst_32 = arith.constant dense<0.000000e+00> : vector<16x128xf32>
    %145 = tpu.matmul %143, %144, %cst_32 {dimension_numbers = #tpu.dot_dimension_numbers<[1], [0], [0], [1], [0, 0, 1, 1], [], []>} : vector<16x512xbf16>, vector<512x128xbf16>, vector<16x128xf32> -> vector<16x128xf32>
    %c0_33 = arith.constant 0 : index
    %c0_34 = arith.constant 0 : index
    %146 = vector.load %arg10[%c0_33, %c0_34] : memref<32x144xbf16, #tpu.memory_space<vmem>>, vector<32x144xbf16>
    %c0_35 = arith.constant 0 : index
    %c0_36 = arith.constant 0 : index
    %147 = vector.load %arg11[%c0_35, %c0_36] : memref<32x1xf32, #tpu.memory_space<vmem>>, vector<32x1xf32>
    %c9_i32 = arith.constant 9 : i32
    %148 = tpu.dynamic_rotate %145 by %c9_i32 dim 1 : vector<16x128xf32>, i32 -> vector<16x128xf32>
    %149 = vector.broadcast %52 : vector<1x128xf32> to vector<16x128xf32>
    %150 = arith.mulf %148, %149 : vector<16x128xf32>
    %c8_i32 = arith.constant 8 : i32
    %151 = tpu.dynamic_rotate %145 by %c8_i32 dim 1 : vector<16x128xf32>, i32 -> vector<16x128xf32>
    %152 = vector.broadcast %54 : vector<1x128xf32> to vector<16x128xf32>
    %153 = arith.mulf %151, %152 : vector<16x128xf32>
    %c7_i32_37 = arith.constant 7 : i32
    %154 = tpu.dynamic_rotate %145 by %c7_i32_37 dim 1 : vector<16x128xf32>, i32 -> vector<16x128xf32>
    %155 = vector.broadcast %57 : vector<1x128xf32> to vector<16x128xf32>
    %156 = arith.mulf %154, %155 : vector<16x128xf32>
    %c1_i32_38 = arith.constant 1 : i32
    %157 = tpu.dynamic_rotate %145 by %c1_i32_38 dim 1 : vector<16x128xf32>, i32 -> vector<16x128xf32>
    %158 = vector.broadcast %59 : vector<1x128xf32> to vector<16x128xf32>
    %159 = arith.mulf %157, %158 : vector<16x128xf32>
    %c127_i32 = arith.constant 127 : i32
    %160 = tpu.dynamic_rotate %145 by %c127_i32 dim 1 : vector<16x128xf32>, i32 -> vector<16x128xf32>
    %161 = vector.broadcast %61 : vector<1x128xf32> to vector<16x128xf32>
    %162 = arith.mulf %160, %161 : vector<16x128xf32>
    %c121_i32 = arith.constant 121 : i32
    %163 = tpu.dynamic_rotate %145 by %c121_i32 dim 1 : vector<16x128xf32>, i32 -> vector<16x128xf32>
    %164 = vector.broadcast %64 : vector<1x128xf32> to vector<16x128xf32>
    %165 = arith.mulf %163, %164 : vector<16x128xf32>
    %c120_i32 = arith.constant 120 : i32
    %166 = tpu.dynamic_rotate %145 by %c120_i32 dim 1 : vector<16x128xf32>, i32 -> vector<16x128xf32>
    %167 = vector.broadcast %66 : vector<1x128xf32> to vector<16x128xf32>
    %168 = arith.mulf %166, %167 : vector<16x128xf32>
    %c119_i32 = arith.constant 119 : i32
    %169 = tpu.dynamic_rotate %145 by %c119_i32 dim 1 : vector<16x128xf32>, i32 -> vector<16x128xf32>
    %170 = vector.broadcast %69 : vector<1x128xf32> to vector<16x128xf32>
    %171 = arith.mulf %169, %170 : vector<16x128xf32>
    %172 = tpu.concatenate %150, %153, %156, %159, %145, %162, %165, %168, %171 in 0 : vector<16x128xf32>, vector<16x128xf32>, vector<16x128xf32>, vector<16x128xf32>, vector<16x128xf32>, vector<16x128xf32>, vector<16x128xf32>, vector<16x128xf32>, vector<16x128xf32> -> vector<144x128xf32>
    %173 = arith.truncf %172 : vector<144x128xf32> to vector<144x128xbf16>
    %cst_39 = arith.constant dense<0.000000e+00> : vector<32x128xf32>
    %174 = tpu.matmul %146, %173, %cst_39 {dimension_numbers = #tpu.dot_dimension_numbers<[1], [0], [0], [1], [0, 0, 1, 1], [], []>} : vector<32x144xbf16>, vector<144x128xbf16>, vector<32x128xf32> -> vector<32x128xf32>
    %175 = vector.broadcast %147 : vector<32x1xf32> to vector<32x128xf32>
    %176 = arith.addf %174, %175 : vector<32x128xf32>
    %cst_40 = arith.constant 0.000000e+00 : f32
    %177 = vector.broadcast %cst_40 : f32 to vector<32x128xf32>
    %178 = arith.maximumf %176, %177 : vector<32x128xf32>
    %c0_41 = arith.constant 0 : index
    %c0_42 = arith.constant 0 : index
    %179 = vector.load %arg12[%c0_41, %c0_42] : memref<32x288xbf16, #tpu.memory_space<vmem>>, vector<32x288xbf16>
    %c0_43 = arith.constant 0 : index
    %c0_44 = arith.constant 0 : index
    %180 = vector.load %arg13[%c0_43, %c0_44] : memref<32x1xf32, #tpu.memory_space<vmem>>, vector<32x1xf32>
    %c9_i32_45 = arith.constant 9 : i32
    %181 = tpu.dynamic_rotate %178 by %c9_i32_45 dim 1 : vector<32x128xf32>, i32 -> vector<32x128xf32>
    %182 = vector.broadcast %52 : vector<1x128xf32> to vector<32x128xf32>
    %183 = arith.mulf %181, %182 : vector<32x128xf32>
    %c8_i32_46 = arith.constant 8 : i32
    %184 = tpu.dynamic_rotate %178 by %c8_i32_46 dim 1 : vector<32x128xf32>, i32 -> vector<32x128xf32>
    %185 = vector.broadcast %54 : vector<1x128xf32> to vector<32x128xf32>
    %186 = arith.mulf %184, %185 : vector<32x128xf32>
    %c7_i32_47 = arith.constant 7 : i32
    %187 = tpu.dynamic_rotate %178 by %c7_i32_47 dim 1 : vector<32x128xf32>, i32 -> vector<32x128xf32>
    %188 = vector.broadcast %57 : vector<1x128xf32> to vector<32x128xf32>
    %189 = arith.mulf %187, %188 : vector<32x128xf32>
    %c1_i32_48 = arith.constant 1 : i32
    %190 = tpu.dynamic_rotate %178 by %c1_i32_48 dim 1 : vector<32x128xf32>, i32 -> vector<32x128xf32>
    %191 = vector.broadcast %59 : vector<1x128xf32> to vector<32x128xf32>
    %192 = arith.mulf %190, %191 : vector<32x128xf32>
    %c127_i32_49 = arith.constant 127 : i32
    %193 = tpu.dynamic_rotate %178 by %c127_i32_49 dim 1 : vector<32x128xf32>, i32 -> vector<32x128xf32>
    %194 = vector.broadcast %61 : vector<1x128xf32> to vector<32x128xf32>
    %195 = arith.mulf %193, %194 : vector<32x128xf32>
    %c121_i32_50 = arith.constant 121 : i32
    %196 = tpu.dynamic_rotate %178 by %c121_i32_50 dim 1 : vector<32x128xf32>, i32 -> vector<32x128xf32>
    %197 = vector.broadcast %64 : vector<1x128xf32> to vector<32x128xf32>
    %198 = arith.mulf %196, %197 : vector<32x128xf32>
    %c120_i32_51 = arith.constant 120 : i32
    %199 = tpu.dynamic_rotate %178 by %c120_i32_51 dim 1 : vector<32x128xf32>, i32 -> vector<32x128xf32>
    %200 = vector.broadcast %66 : vector<1x128xf32> to vector<32x128xf32>
    %201 = arith.mulf %199, %200 : vector<32x128xf32>
    %c119_i32_52 = arith.constant 119 : i32
    %202 = tpu.dynamic_rotate %178 by %c119_i32_52 dim 1 : vector<32x128xf32>, i32 -> vector<32x128xf32>
    %203 = vector.broadcast %69 : vector<1x128xf32> to vector<32x128xf32>
    %204 = arith.mulf %202, %203 : vector<32x128xf32>
    %205 = tpu.concatenate %183, %186, %189, %192, %178, %195, %198, %201, %204 in 0 : vector<32x128xf32>, vector<32x128xf32>, vector<32x128xf32>, vector<32x128xf32>, vector<32x128xf32>, vector<32x128xf32>, vector<32x128xf32>, vector<32x128xf32>, vector<32x128xf32> -> vector<288x128xf32>
    %206 = arith.truncf %205 : vector<288x128xf32> to vector<288x128xbf16>
    %cst_53 = arith.constant dense<0.000000e+00> : vector<32x128xf32>
    %207 = tpu.matmul %179, %206, %cst_53 {dimension_numbers = #tpu.dot_dimension_numbers<[1], [0], [0], [1], [0, 0, 1, 1], [], []>} : vector<32x288xbf16>, vector<288x128xbf16>, vector<32x128xf32> -> vector<32x128xf32>
    %208 = vector.broadcast %180 : vector<32x1xf32> to vector<32x128xf32>
    %209 = arith.addf %207, %208 : vector<32x128xf32>
    %cst_54 = arith.constant 0.000000e+00 : f32
    %210 = vector.broadcast %cst_54 : f32 to vector<32x128xf32>
    %211 = arith.maximumf %209, %210 : vector<32x128xf32>
    %212 = arith.truncf %211 : vector<32x128xf32> to vector<32x128xbf16>
    %c0_55 = arith.constant 0 : index
    %c0_56 = arith.constant 0 : index
    %213 = vector.load %arg3[%c0_55, %c0_56] : memref<128x512xbf16, #tpu.memory_space<vmem>>, vector<128x512xbf16>
    %cst_57 = arith.constant dense<0.000000e+00> : vector<32x512xf32>
    %214 = tpu.matmul %212, %213, %cst_57 {dimension_numbers = #tpu.dot_dimension_numbers<[1], [0], [0], [1], [0, 0, 1, 1], [], []>} : vector<32x128xbf16>, vector<128x512xbf16>, vector<32x512xf32> -> vector<32x512xf32>
    %215 = tpu.concatenate %214, %136 in 0 : vector<32x512xf32>, vector<16x512xf32> -> vector<48x512xf32>
    %c0_58 = arith.constant 0 : index
    %c0_59 = arith.constant 0 : index
    %216 = vector.load %arg14[%c0_58, %c0_59] : memref<16x432xbf16, #tpu.memory_space<vmem>>, vector<16x432xbf16>
    %c0_60 = arith.constant 0 : index
    %c0_61 = arith.constant 0 : index
    %217 = vector.load %arg15[%c0_60, %c0_61] : memref<16x1xf32, #tpu.memory_space<vmem>>, vector<16x1xf32>
    %c17_i32_62 = arith.constant 17 : i32
    %218 = tpu.dynamic_rotate %215 by %c17_i32_62 dim 1 : vector<48x512xf32>, i32 -> vector<48x512xf32>
    %219 = vector.broadcast %17 : vector<1x512xf32> to vector<48x512xf32>
    %220 = arith.mulf %218, %219 : vector<48x512xf32>
    %c16_i32_63 = arith.constant 16 : i32
    %221 = tpu.dynamic_rotate %215 by %c16_i32_63 dim 1 : vector<48x512xf32>, i32 -> vector<48x512xf32>
    %222 = vector.broadcast %19 : vector<1x512xf32> to vector<48x512xf32>
    %223 = arith.mulf %221, %222 : vector<48x512xf32>
    %c15_i32_64 = arith.constant 15 : i32
    %224 = tpu.dynamic_rotate %215 by %c15_i32_64 dim 1 : vector<48x512xf32>, i32 -> vector<48x512xf32>
    %225 = vector.broadcast %22 : vector<1x512xf32> to vector<48x512xf32>
    %226 = arith.mulf %224, %225 : vector<48x512xf32>
    %c1_i32_65 = arith.constant 1 : i32
    %227 = tpu.dynamic_rotate %215 by %c1_i32_65 dim 1 : vector<48x512xf32>, i32 -> vector<48x512xf32>
    %228 = vector.broadcast %24 : vector<1x512xf32> to vector<48x512xf32>
    %229 = arith.mulf %227, %228 : vector<48x512xf32>
    %c511_i32_66 = arith.constant 511 : i32
    %230 = tpu.dynamic_rotate %215 by %c511_i32_66 dim 1 : vector<48x512xf32>, i32 -> vector<48x512xf32>
    %231 = vector.broadcast %26 : vector<1x512xf32> to vector<48x512xf32>
    %232 = arith.mulf %230, %231 : vector<48x512xf32>
    %c497_i32_67 = arith.constant 497 : i32
    %233 = tpu.dynamic_rotate %215 by %c497_i32_67 dim 1 : vector<48x512xf32>, i32 -> vector<48x512xf32>
    %234 = vector.broadcast %29 : vector<1x512xf32> to vector<48x512xf32>
    %235 = arith.mulf %233, %234 : vector<48x512xf32>
    %c496_i32_68 = arith.constant 496 : i32
    %236 = tpu.dynamic_rotate %215 by %c496_i32_68 dim 1 : vector<48x512xf32>, i32 -> vector<48x512xf32>
    %237 = vector.broadcast %31 : vector<1x512xf32> to vector<48x512xf32>
    %238 = arith.mulf %236, %237 : vector<48x512xf32>
    %c495_i32_69 = arith.constant 495 : i32
    %239 = tpu.dynamic_rotate %215 by %c495_i32_69 dim 1 : vector<48x512xf32>, i32 -> vector<48x512xf32>
    %240 = vector.broadcast %34 : vector<1x512xf32> to vector<48x512xf32>
    %241 = arith.mulf %239, %240 : vector<48x512xf32>
    %242 = tpu.concatenate %220, %223, %226, %229, %215, %232, %235, %238, %241 in 0 : vector<48x512xf32>, vector<48x512xf32>, vector<48x512xf32>, vector<48x512xf32>, vector<48x512xf32>, vector<48x512xf32>, vector<48x512xf32>, vector<48x512xf32>, vector<48x512xf32> -> vector<432x512xf32>
    %243 = arith.truncf %242 : vector<432x512xf32> to vector<432x512xbf16>
    %cst_70 = arith.constant dense<0.000000e+00> : vector<16x512xf32>
    %244 = tpu.matmul %216, %243, %cst_70 {dimension_numbers = #tpu.dot_dimension_numbers<[1], [0], [0], [1], [0, 0, 1, 1], [], []>} : vector<16x432xbf16>, vector<432x512xbf16>, vector<16x512xf32> -> vector<16x512xf32>
    %245 = vector.broadcast %217 : vector<16x1xf32> to vector<16x512xf32>
    %246 = arith.addf %244, %245 : vector<16x512xf32>
    %cst_71 = arith.constant 0.000000e+00 : f32
    %247 = vector.broadcast %cst_71 : f32 to vector<16x512xf32>
    %248 = arith.maximumf %246, %247 : vector<16x512xf32>
    %c0_72 = arith.constant 0 : index
    %c0_73 = arith.constant 0 : index
    %249 = vector.load %arg16[%c0_72, %c0_73] : memref<16x144xbf16, #tpu.memory_space<vmem>>, vector<16x144xbf16>
    %c0_74 = arith.constant 0 : index
    %c0_75 = arith.constant 0 : index
    %250 = vector.load %arg17[%c0_74, %c0_75] : memref<16x1xf32, #tpu.memory_space<vmem>>, vector<16x1xf32>
    %c17_i32_76 = arith.constant 17 : i32
    %251 = tpu.dynamic_rotate %248 by %c17_i32_76 dim 1 : vector<16x512xf32>, i32 -> vector<16x512xf32>
    %252 = vector.broadcast %17 : vector<1x512xf32> to vector<16x512xf32>
    %253 = arith.mulf %251, %252 : vector<16x512xf32>
    %c16_i32_77 = arith.constant 16 : i32
    %254 = tpu.dynamic_rotate %248 by %c16_i32_77 dim 1 : vector<16x512xf32>, i32 -> vector<16x512xf32>
    %255 = vector.broadcast %19 : vector<1x512xf32> to vector<16x512xf32>
    %256 = arith.mulf %254, %255 : vector<16x512xf32>
    %c15_i32_78 = arith.constant 15 : i32
    %257 = tpu.dynamic_rotate %248 by %c15_i32_78 dim 1 : vector<16x512xf32>, i32 -> vector<16x512xf32>
    %258 = vector.broadcast %22 : vector<1x512xf32> to vector<16x512xf32>
    %259 = arith.mulf %257, %258 : vector<16x512xf32>
    %c1_i32_79 = arith.constant 1 : i32
    %260 = tpu.dynamic_rotate %248 by %c1_i32_79 dim 1 : vector<16x512xf32>, i32 -> vector<16x512xf32>
    %261 = vector.broadcast %24 : vector<1x512xf32> to vector<16x512xf32>
    %262 = arith.mulf %260, %261 : vector<16x512xf32>
    %c511_i32_80 = arith.constant 511 : i32
    %263 = tpu.dynamic_rotate %248 by %c511_i32_80 dim 1 : vector<16x512xf32>, i32 -> vector<16x512xf32>
    %264 = vector.broadcast %26 : vector<1x512xf32> to vector<16x512xf32>
    %265 = arith.mulf %263, %264 : vector<16x512xf32>
    %c497_i32_81 = arith.constant 497 : i32
    %266 = tpu.dynamic_rotate %248 by %c497_i32_81 dim 1 : vector<16x512xf32>, i32 -> vector<16x512xf32>
    %267 = vector.broadcast %29 : vector<1x512xf32> to vector<16x512xf32>
    %268 = arith.mulf %266, %267 : vector<16x512xf32>
    %c496_i32_82 = arith.constant 496 : i32
    %269 = tpu.dynamic_rotate %248 by %c496_i32_82 dim 1 : vector<16x512xf32>, i32 -> vector<16x512xf32>
    %270 = vector.broadcast %31 : vector<1x512xf32> to vector<16x512xf32>
    %271 = arith.mulf %269, %270 : vector<16x512xf32>
    %c495_i32_83 = arith.constant 495 : i32
    %272 = tpu.dynamic_rotate %248 by %c495_i32_83 dim 1 : vector<16x512xf32>, i32 -> vector<16x512xf32>
    %273 = vector.broadcast %34 : vector<1x512xf32> to vector<16x512xf32>
    %274 = arith.mulf %272, %273 : vector<16x512xf32>
    %275 = tpu.concatenate %253, %256, %259, %262, %248, %265, %268, %271, %274 in 0 : vector<16x512xf32>, vector<16x512xf32>, vector<16x512xf32>, vector<16x512xf32>, vector<16x512xf32>, vector<16x512xf32>, vector<16x512xf32>, vector<16x512xf32>, vector<16x512xf32> -> vector<144x512xf32>
    %276 = arith.truncf %275 : vector<144x512xf32> to vector<144x512xbf16>
    %cst_84 = arith.constant dense<0.000000e+00> : vector<16x512xf32>
    %277 = tpu.matmul %249, %276, %cst_84 {dimension_numbers = #tpu.dot_dimension_numbers<[1], [0], [0], [1], [0, 0, 1, 1], [], []>} : vector<16x144xbf16>, vector<144x512xbf16>, vector<16x512xf32> -> vector<16x512xf32>
    %278 = vector.broadcast %250 : vector<16x1xf32> to vector<16x512xf32>
    %279 = arith.addf %277, %278 : vector<16x512xf32>
    %cst_85 = arith.constant 0.000000e+00 : f32
    %280 = vector.broadcast %cst_85 : f32 to vector<16x512xf32>
    %281 = arith.maximumf %279, %280 : vector<16x512xf32>
    %c0_86 = arith.constant 0 : index
    %c0_87 = arith.constant 0 : index
    %282 = vector.load %arg4[%c0_86, %c0_87] : memref<512x2xf32, #tpu.memory_space<vmem>>, vector<512x2xf32>
    %cst_88 = arith.constant dense<0.000000e+00> : vector<16x2xf32>
    %283 = tpu.matmul %281, %282, %cst_88 {dimension_numbers = #tpu.dot_dimension_numbers<[1], [0], [0], [1], [0, 0, 1, 1], [], []>} : vector<16x512xf32>, vector<512x2xf32>, vector<16x2xf32> -> vector<16x2xf32>
    %c0_89 = arith.constant 0 : index
    %c0_90 = arith.constant 0 : index
    %284 = vector.load %arg18[%c0_89, %c0_90] : memref<4x16xf32, #tpu.memory_space<vmem>>, vector<4x16xf32>
    %cst_91 = arith.constant dense<0.000000e+00> : vector<4x2xf32>
    %285 = tpu.matmul %284, %283, %cst_91 {dimension_numbers = #tpu.dot_dimension_numbers<[1], [0], [0], [1], [0, 0, 1, 1], [], []>} : vector<4x16xf32>, vector<16x2xf32>, vector<4x2xf32> -> vector<4x2xf32>
    %c0_92 = arith.constant 0 : index
    %c0_93 = arith.constant 0 : index
    %286 = vector.load %arg19[%c0_92, %c0_93] : memref<4x1xf32, #tpu.memory_space<vmem>>, vector<4x1xf32>
    %287 = vector.broadcast %286 : vector<4x1xf32> to vector<4x2xf32>
    %288 = arith.addf %285, %287 : vector<4x2xf32>
    %cst_94 = arith.constant 0.000000e+00 : f32
    %289 = vector.broadcast %cst_94 : f32 to vector<4x2xf32>
    %290 = arith.maximumf %288, %289 : vector<4x2xf32>
    %c0_95 = arith.constant 0 : index
    %c0_96 = arith.constant 0 : index
    %291 = vector.load %arg20[%c0_95, %c0_96] : memref<16x4xf32, #tpu.memory_space<vmem>>, vector<16x4xf32>
    %cst_97 = arith.constant dense<0.000000e+00> : vector<16x2xf32>
    %292 = tpu.matmul %291, %290, %cst_97 {dimension_numbers = #tpu.dot_dimension_numbers<[1], [0], [0], [1], [0, 0, 1, 1], [], []>} : vector<16x4xf32>, vector<4x2xf32>, vector<16x2xf32> -> vector<16x2xf32>
    %c0_98 = arith.constant 0 : index
    %c0_99 = arith.constant 0 : index
    %293 = vector.load %arg21[%c0_98, %c0_99] : memref<16x1xf32, #tpu.memory_space<vmem>>, vector<16x1xf32>
    %294 = vector.broadcast %293 : vector<16x1xf32> to vector<16x2xf32>
    %295 = arith.addf %292, %294 : vector<16x2xf32>
    %296 = arith.negf %295 : vector<16x2xf32>
    %297 = math.exp %296 : vector<16x2xf32>
    %cst_100 = arith.constant 1.000000e+00 : f32
    %298 = vector.broadcast %cst_100 : f32 to vector<16x2xf32>
    %299 = arith.addf %298, %297 : vector<16x2xf32>
    %300 = arith.divf %298, %299 : vector<16x2xf32>
    %c0_101 = arith.constant 0 : index
    %c0_102 = arith.constant 0 : index
    %301 = vector.load %arg5[%c0_101, %c0_102] : memref<2x512xf32, #tpu.memory_space<vmem>>, vector<2x512xf32>
    %cst_103 = arith.constant dense<0.000000e+00> : vector<16x512xf32>
    %302 = tpu.matmul %300, %301, %cst_103 {dimension_numbers = #tpu.dot_dimension_numbers<[1], [0], [0], [1], [0, 0, 1, 1], [], []>} : vector<16x2xf32>, vector<2x512xf32>, vector<16x512xf32> -> vector<16x512xf32>
    %c0_104 = arith.constant 0 : index
    %c0_105 = arith.constant 0 : index
    %303 = vector.load %arg22[%c0_104, %c0_105] : memref<1x16xf32, #tpu.memory_space<vmem>>, vector<1x16xf32>
    %cst_106 = arith.constant dense<0.000000e+00> : vector<1x512xf32>
    %304 = tpu.matmul %303, %281, %cst_106 {dimension_numbers = #tpu.dot_dimension_numbers<[1], [0], [0], [1], [0, 0, 1, 1], [], []>} : vector<1x16xf32>, vector<16x512xf32>, vector<1x512xf32> -> vector<1x512xf32>
    %c0_107 = arith.constant 0 : index
    %c0_108 = arith.constant 0 : index
    %305 = vector.load %arg23[%c0_107, %c0_108] : memref<1x1xf32, #tpu.memory_space<vmem>>, vector<1x1xf32>
    %306 = vector.broadcast %305 : vector<1x1xf32> to vector<1x512xf32>
    %307 = arith.addf %304, %306 : vector<1x512xf32>
    %308 = arith.negf %307 : vector<1x512xf32>
    %309 = math.exp %308 : vector<1x512xf32>
    %cst_109 = arith.constant 1.000000e+00 : f32
    %310 = vector.broadcast %cst_109 : f32 to vector<1x512xf32>
    %311 = arith.addf %310, %309 : vector<1x512xf32>
    %312 = arith.divf %310, %311 : vector<1x512xf32>
    %313 = vector.broadcast %312 : vector<1x512xf32> to vector<16x512xf32>
    %314 = arith.addf %302, %313 : vector<16x512xf32>
    %315 = arith.mulf %281, %314 : vector<16x512xf32>
    %c0_110 = arith.constant 0 : index
    %c0_111 = arith.constant 0 : index
    %316 = vector.load %arg24[%c0_110, %c0_111] : memref<1x16xf32, #tpu.memory_space<vmem>>, vector<1x16xf32>
    %cst_112 = arith.constant dense<0.000000e+00> : vector<1x512xf32>
    %317 = tpu.matmul %316, %315, %cst_112 {dimension_numbers = #tpu.dot_dimension_numbers<[1], [0], [0], [1], [0, 0, 1, 1], [], []>} : vector<1x16xf32>, vector<16x512xf32>, vector<1x512xf32> -> vector<1x512xf32>
    %c0_113 = arith.constant 0 : index
    %c0_114 = arith.constant 0 : index
    %318 = vector.load %arg25[%c0_113, %c0_114] : memref<1x1xf32, #tpu.memory_space<vmem>>, vector<1x1xf32>
    %319 = vector.broadcast %318 : vector<1x1xf32> to vector<1x512xf32>
    %320 = arith.addf %317, %319 : vector<1x512xf32>
    %321 = arith.negf %320 : vector<1x512xf32>
    %322 = math.exp %321 : vector<1x512xf32>
    %cst_115 = arith.constant 1.000000e+00 : f32
    %323 = vector.broadcast %cst_115 : f32 to vector<1x512xf32>
    %324 = arith.addf %323, %322 : vector<1x512xf32>
    %325 = arith.divf %323, %324 : vector<1x512xf32>
    %c0_116 = arith.constant 0 : index
    %c0_117 = arith.constant 0 : index
    %326 = vector.load %arg26[%c0_116, %c0_117] : memref<1x512xf32, #tpu.memory_space<vmem>>, vector<1x512xf32>
    tpu.vector_store %arg26[%c0_116, %c0_117], %325 {strides = array<i32>} : memref<1x512xf32, #tpu.memory_space<vmem>>, vector<1x512xf32>,
    return
  }
  func.func @transform_0(%arg0: i32) -> (i32, i32) {
    %c0_i32 = arith.constant 0 : i32
    %c0_i32_0 = arith.constant 0 : i32
    return %c0_i32, %arg0 : i32, i32
  }
  func.func @transform_1(%arg0: i32) -> (i32, i32) {
    %c0_i32 = arith.constant 0 : i32
    %c0_i32_0 = arith.constant 0 : i32
    %c0_i32_1 = arith.constant 0 : i32
    return %c0_i32, %c0_i32_0 : i32, i32
  }
  func.func @transform_2(%arg0: i32) -> (i32, i32) {
    %c0_i32 = arith.constant 0 : i32
    %c0_i32_0 = arith.constant 0 : i32
    %c0_i32_1 = arith.constant 0 : i32
    return %c0_i32, %c0_i32_0 : i32, i32
  }
  func.func @transform_3(%arg0: i32) -> (i32, i32) {
    %c0_i32 = arith.constant 0 : i32
    %c0_i32_0 = arith.constant 0 : i32
    %c0_i32_1 = arith.constant 0 : i32
    return %c0_i32, %c0_i32_0 : i32, i32
  }
  func.func @transform_4(%arg0: i32) -> (i32, i32) {
    %c0_i32 = arith.constant 0 : i32
    %c0_i32_0 = arith.constant 0 : i32
    %c0_i32_1 = arith.constant 0 : i32
    return %c0_i32, %c0_i32_0 : i32, i32
  }
  func.func @transform_5(%arg0: i32) -> (i32, i32) {
    %c0_i32 = arith.constant 0 : i32
    %c0_i32_0 = arith.constant 0 : i32
    %c0_i32_1 = arith.constant 0 : i32
    return %c0_i32, %c0_i32_0 : i32, i32
  }
  func.func @transform_6(%arg0: i32) -> (i32, i32) {
    %c0_i32 = arith.constant 0 : i32
    %c0_i32_0 = arith.constant 0 : i32
    %c0_i32_1 = arith.constant 0 : i32
    return %c0_i32, %c0_i32_0 : i32, i32
  }
  func.func @transform_7(%arg0: i32) -> (i32, i32) {
    %c0_i32 = arith.constant 0 : i32
    %c0_i32_0 = arith.constant 0 : i32
    %c0_i32_1 = arith.constant 0 : i32
    return %c0_i32, %c0_i32_0 : i32, i32
  }
  func.func @transform_8(%arg0: i32) -> (i32, i32) {
    %c0_i32 = arith.constant 0 : i32
    %c0_i32_0 = arith.constant 0 : i32
    %c0_i32_1 = arith.constant 0 : i32
    return %c0_i32, %c0_i32_0 : i32, i32
  }
  func.func @transform_9(%arg0: i32) -> (i32, i32) {
    %c0_i32 = arith.constant 0 : i32
    %c0_i32_0 = arith.constant 0 : i32
    %c0_i32_1 = arith.constant 0 : i32
    return %c0_i32, %c0_i32_0 : i32, i32
  }
  func.func @transform_10(%arg0: i32) -> (i32, i32) {
    %c0_i32 = arith.constant 0 : i32
    %c0_i32_0 = arith.constant 0 : i32
    %c0_i32_1 = arith.constant 0 : i32
    return %c0_i32, %c0_i32_0 : i32, i32
  }
  func.func @transform_11(%arg0: i32) -> (i32, i32) {
    %c0_i32 = arith.constant 0 : i32
    %c0_i32_0 = arith.constant 0 : i32
    %c0_i32_1 = arith.constant 0 : i32
    return %c0_i32, %c0_i32_0 : i32, i32
  }
  func.func @transform_12(%arg0: i32) -> (i32, i32) {
    %c0_i32 = arith.constant 0 : i32
    %c0_i32_0 = arith.constant 0 : i32
    %c0_i32_1 = arith.constant 0 : i32
    return %c0_i32, %c0_i32_0 : i32, i32
  }
  func.func @transform_13(%arg0: i32) -> (i32, i32) {
    %c0_i32 = arith.constant 0 : i32
    %c0_i32_0 = arith.constant 0 : i32
    %c0_i32_1 = arith.constant 0 : i32
    return %c0_i32, %c0_i32_0 : i32, i32
  }
  func.func @transform_14(%arg0: i32) -> (i32, i32) {
    %c0_i32 = arith.constant 0 : i32
    %c0_i32_0 = arith.constant 0 : i32
    %c0_i32_1 = arith.constant 0 : i32
    return %c0_i32, %c0_i32_0 : i32, i32
  }
  func.func @transform_15(%arg0: i32) -> (i32, i32) {
    %c0_i32 = arith.constant 0 : i32
    %c0_i32_0 = arith.constant 0 : i32
    %c0_i32_1 = arith.constant 0 : i32
    return %c0_i32, %c0_i32_0 : i32, i32
  }
  func.func @transform_16(%arg0: i32) -> (i32, i32) {
    %c0_i32 = arith.constant 0 : i32
    %c0_i32_0 = arith.constant 0 : i32
    %c0_i32_1 = arith.constant 0 : i32
    return %c0_i32, %c0_i32_0 : i32, i32
  }
  func.func @transform_17(%arg0: i32) -> (i32, i32) {
    %c0_i32 = arith.constant 0 : i32
    %c0_i32_0 = arith.constant 0 : i32
    %c0_i32_1 = arith.constant 0 : i32
    return %c0_i32, %c0_i32_0 : i32, i32
  }
  func.func @transform_18(%arg0: i32) -> (i32, i32) {
    %c0_i32 = arith.constant 0 : i32
    %c0_i32_0 = arith.constant 0 : i32
    %c0_i32_1 = arith.constant 0 : i32
    return %c0_i32, %c0_i32_0 : i32, i32
  }
  func.func @transform_19(%arg0: i32) -> (i32, i32) {
    %c0_i32 = arith.constant 0 : i32
    %c0_i32_0 = arith.constant 0 : i32
    %c0_i32_1 = arith.constant 0 : i32
    return %c0_i32, %c0_i32_0 : i32, i32
  }
  func.func @transform_20(%arg0: i32) -> (i32, i32) {
    %c0_i32 = arith.constant 0 : i32
    %c0_i32_0 = arith.constant 0 : i32
    %c0_i32_1 = arith.constant 0 : i32
    return %c0_i32, %c0_i32_0 : i32, i32
  }
  func.func @transform_21(%arg0: i32) -> (i32, i32) {
    %c0_i32 = arith.constant 0 : i32
    %c0_i32_0 = arith.constant 0 : i32
    %c0_i32_1 = arith.constant 0 : i32
    return %c0_i32, %c0_i32_0 : i32, i32
  }
  func.func @transform_22(%arg0: i32) -> (i32, i32) {
    %c0_i32 = arith.constant 0 : i32
    %c0_i32_0 = arith.constant 0 : i32
    %c0_i32_1 = arith.constant 0 : i32
    return %c0_i32, %c0_i32_0 : i32, i32
  }
  func.func @transform_23(%arg0: i32) -> (i32, i32) {
    %c0_i32 = arith.constant 0 : i32
    %c0_i32_0 = arith.constant 0 : i32
    %c0_i32_1 = arith.constant 0 : i32
    return %c0_i32, %c0_i32_0 : i32, i32
  }
  func.func @transform_24(%arg0: i32) -> (i32, i32) {
    %c0_i32 = arith.constant 0 : i32
    %c0_i32_0 = arith.constant 0 : i32
    %c0_i32_1 = arith.constant 0 : i32
    return %c0_i32, %c0_i32_0 : i32, i32
  }
  func.func @transform_25(%arg0: i32) -> (i32, i32) {
    %c0_i32 = arith.constant 0 : i32
    %c0_i32_0 = arith.constant 0 : i32
    return %c0_i32, %arg0 : i32, i32
  }
}

</mosaic_0001>

<llo_original>
// kernel: detector_forward.1
$region0: #{detector_forward.1}
  #allocation0 [shape = 'u32[]', space=smem, size = 0x4, offset = 0x4, fixed_abs, tag = 'smem constant byte address 0x4 - core index']
  #allocation1 [shape = 'u32[144,128]{1,0:T(1,128)}', space=vmem, size = 0x12000, scoped, tag = 'internal scratch']
  #allocation2 [shape = 'f32[1,1]{1,0:T(1,128)S(1)}', space=vmem, size = 0x200, scoped, tag = 'scoped memory for detector_forward.1']
  #allocation3 [shape = 'f32[1,1]{1,0:T(1,128)S(1)}', space=vmem, size = 0x200, scoped, tag = 'scoped memory for detector_forward.1']
  %s0 = inlined_call_operand.vmem [shape: f32[8,512], index: 0, kind: input, shape index: {}]
  %s1 = inlined_call_operand.vmem [shape: bf16[512,128], index: 1, kind: input, shape index: {}]
  %s2 = inlined_call_operand.vmem [shape: bf16[128,512], index: 2, kind: input, shape index: {}]
  %s3 = inlined_call_operand.vmem [shape: f32[512,2], index: 3, kind: input, shape index: {}]
  %s4 = inlined_call_operand.vmem [shape: f32[2,512], index: 4, kind: input, shape index: {}]
  %s5 = inlined_call_operand.vmem [shape: bf16[16,72], index: 5, kind: input, shape index: {}]
  %s6 = inlined_call_operand.vmem [shape: f32[16,1], index: 6, kind: input, shape index: {}, may-alias: {6,8,14,16,20}]
  %s7 = inlined_call_operand.vmem [shape: bf16[16,144], index: 7, kind: input, shape index: {}]
  %s8 = inlined_call_operand.vmem [shape: f32[16,1], index: 8, kind: input, shape index: {}, may-alias: {6,8,14,16,20}]
  %s9 = inlined_call_operand.vmem [shape: bf16[32,144], index: 9, kind: input, shape index: {}]
  %s10 = inlined_call_operand.vmem [shape: f32[32,1], index: 10, kind: input, shape index: {}, may-alias: {10,12}]
  %s11 = inlined_call_operand.vmem [shape: bf16[32,288], index: 11, kind: input, shape index: {}]
  %s12 = inlined_call_operand.vmem [shape: f32[32,1], index: 12, kind: input, shape index: {}, may-alias: {10,12}]
  %s13 = inlined_call_operand.vmem [shape: bf16[16,432], index: 13, kind: input, shape index: {}]
  %s14 = inlined_call_operand.vmem [shape: f32[16,1], index: 14, kind: input, shape index: {}, may-alias: {6,8,14,16,20}]
  %s15 = inlined_call_operand.vmem [shape: bf16[16,144], index: 15, kind: input, shape index: {}]
  %s16 = inlined_call_operand.vmem [shape: f32[16,1], index: 16, kind: input, shape index: {}, may-alias: {6,8,14,16,20}]
  %s17 = inlined_call_operand.vmem [shape: f32[4,16], index: 17, kind: input, shape index: {}]
  %s18 = inlined_call_operand.vmem [shape: f32[4,1], index: 18, kind: input, shape index: {}]
  %s19 = inlined_call_operand.vmem [shape: f32[16,4], index: 19, kind: input, shape index: {}]
  %s20 = inlined_call_operand.vmem [shape: f32[16,1], index: 20, kind: input, shape index: {}, may-alias: {6,8,14,16,20}]
  %s21 = inlined_call_operand.vmem [shape: f32[1,16], index: 21, kind: input, shape index: {}]
  %s22 = inlined_call_operand.<no memory space> [shape: f32[1,1], index: 22, kind: input, shape index: {}, may-alias: {22,24}]
  %s23 = inlined_call_operand.vmem [shape: f32[1,16], index: 23, kind: input, shape index: {}]
  %s24 = inlined_call_operand.<no memory space> [shape: f32[1,1], index: 24, kind: input, shape index: {}, may-alias: {22,24}]
  %s25 = inlined_call_operand.vmem [shape: f32[1,512], index: 25, kind: output, shape index: {}]
  %s26 = sld [smem:[#allocation0]]
  $region110: #{detector_forward.1} parent=0
    _
  %s28 = ssub.s32 1, %s26
  %s29 = scalar_select 0, %s28, %s26
  %v30 = vstv %s22
  %31 = vst [vmem:[#allocation2] sm:$0x1] %v30
  %v32 = vstv %s24
  %33 = vst [vmem:[#allocation3] sm:$0x1] %v32
  // Predicated region
  $region2: #{detector_forward.1} parent=0 // pred_check
    _
  $region3: #{detector_forward.1} parent=0 // pred_check_branch
    %35 = sbr.rel (0) target = $region5
  $region4: #{detector_forward.1} parent=0 // pred_region
    _
  $region5: #{detector_forward.1} parent=0 // pred_fallthru
    _
  // Predicated region
  $region6: #{detector_forward.1} parent=0 // pred_check
    _
  $region7: #{detector_forward.1} parent=0 // pred_check_branch
    %37 = sbr.rel (0) target = $region9
  $region8: #{detector_forward.1} parent=0 // pred_region
    _
  $region9: #{detector_forward.1} parent=0 // pred_fallthru
    _
  // Predicated region
  $region10: #{detector_forward.1} parent=0 // pred_check
    _
  $region11: #{detector_forward.1} parent=0 // pred_check_branch
    %39 = sbr.rel (0) target = $region13
  $region12: #{detector_forward.1} parent=0 // pred_region
    _
  $region13: #{detector_forward.1} parent=0 // pred_fallthru
    _
  // Predicated region
  $region14: #{detector_forward.1} parent=0 // pred_check
    _
  $region15: #{detector_forward.1} parent=0 // pred_check_branch
    %41 = sbr.rel (0) target = $region17
  $region16: #{detector_forward.1} parent=0 // pred_region
    _
  $region17: #{detector_forward.1} parent=0 // pred_fallthru
    _
  // Predicated region
  $region18: #{detector_forward.1} parent=0 // pred_check
    _
  $region19: #{detector_forward.1} parent=0 // pred_check_branch
    %43 = sbr.rel (0) target = $region21
  $region20: #{detector_forward.1} parent=0 // pred_region
    _
  $region21: #{detector_forward.1} parent=0 // pred_fallthru
    _
  // Predicated region
  $region22: #{detector_forward.1} parent=0 // pred_check
    _
  $region23: #{detector_forward.1} parent=0 // pred_check_branch
    %45 = sbr.rel (0) target = $region25
  $region24: #{detector_forward.1} parent=0 // pred_region
    _
  $region25: #{detector_forward.1} parent=0 // pred_fallthru
    _
  // Predicated region
  $region26: #{detector_forward.1} parent=0 // pred_check
    _
  $region27: #{detector_forward.1} parent=0 // pred_check_branch
    %47 = sbr.rel (0) target = $region29
  $region28: #{detector_forward.1} parent=0 // pred_region
    _
  $region29: #{detector_forward.1} parent=0 // pred_fallthru
    _
  // Predicated region
  $region30: #{detector_forward.1} parent=0 // pred_check
    _
  $region31: #{detector_forward.1} parent=0 // pred_check_branch
    %49 = sbr.rel (0) target = $region33
  $region32: #{detector_forward.1} parent=0 // pred_region
    _
  $region33: #{detector_forward.1} parent=0 // pred_fallthru
    _
  // Predicated region
  $region34: #{detector_forward.1} parent=0 // pred_check
    _
  $region35: #{detector_forward.1} parent=0 // pred_check_branch
    %51 = sbr.rel (0) target = $region37
  $region36: #{detector_forward.1} parent=0 // pred_region
    _
  $region37: #{detector_forward.1} parent=0 // pred_fallthru
    _
  // Predicated region
  $region38: #{detector_forward.1} parent=0 // pred_check
    _
  $region39: #{detector_forward.1} parent=0 // pred_check_branch
    %53 = sbr.rel (0) target = $region41
  $region40: #{detector_forward.1} parent=0 // pred_region
    _
  $region41: #{detector_forward.1} parent=0 // pred_fallthru
    _
  // Predicated region
  $region42: #{detector_forward.1} parent=0 // pred_check
    _
  $region43: #{detector_forward.1} parent=0 // pred_check_branch
    %55 = sbr.rel (0) target = $region45
  $region44: #{detector_forward.1} parent=0 // pred_region
    _
  $region45: #{detector_forward.1} parent=0 // pred_fallthru
    _
  // Predicated region
  $region46: #{detector_forward.1} parent=0 // pred_check
    _
  $region47: #{detector_forward.1} parent=0 // pred_check_branch
    %57 = sbr.rel (0) target = $region49
  $region48: #{detector_forward.1} parent=0 // pred_region
    _
  $region49: #{detector_forward.1} parent=0 // pred_fallthru
    _
  // Predicated region
  $region50: #{detector_forward.1} parent=0 // pred_check
    _
  $region51: #{detector_forward.1} parent=0 // pred_check_branch
    %59 = sbr.rel (0) target = $region53
  $region52: #{detector_forward.1} parent=0 // pred_region
    _
  $region53: #{detector_forward.1} parent=0 // pred_fallthru
    _
  // Predicated region
  $region54: #{detector_forward.1} parent=0 // pred_check
    _
  $region55: #{detector_forward.1} parent=0 // pred_check_branch
    %61 = sbr.rel (0) target = $region57
  $region56: #{detector_forward.1} parent=0 // pred_region
    _
  $region57: #{detector_forward.1} parent=0 // pred_fallthru
    _
  // Predicated region
  $region58: #{detector_forward.1} parent=0 // pred_check
    _
  $region59: #{detector_forward.1} parent=0 // pred_check_branch
    %63 = sbr.rel (0) target = $region61
  $region60: #{detector_forward.1} parent=0 // pred_region
    _
  $region61: #{detector_forward.1} parent=0 // pred_fallthru
    _
  // Predicated region
  $region62: #{detector_forward.1} parent=0 // pred_check
    _
  $region63: #{detector_forward.1} parent=0 // pred_check_branch
    %65 = sbr.rel (0) target = $region65
  $region64: #{detector_forward.1} parent=0 // pred_region
    _
  $region65: #{detector_forward.1} parent=0 // pred_fallthru
    _
  // Predicated region
  $region66: #{detector_forward.1} parent=0 // pred_check
    _
  $region67: #{detector_forward.1} parent=0 // pred_check_branch
    %67 = sbr.rel (0) target = $region69
  $region68: #{detector_forward.1} parent=0 // pred_region
    _
  $region69: #{detector_forward.1} parent=0 // pred_fallthru
    _
  // Predicated region
  $region70: #{detector_forward.1} parent=0 // pred_check
    _
  $region71: #{detector_forward.1} parent=0 // pred_check_branch
    %69 = sbr.rel (0) target = $region73
  $region72: #{detector_forward.1} parent=0 // pred_region
    _
  $region73: #{detector_forward.1} parent=0 // pred_fallthru
    _
  // Predicated region
  $region74: #{detector_forward.1} parent=0 // pred_check
    _
  $region75: #{detector_forward.1} parent=0 // pred_check_branch
    %71 = sbr.rel (0) target = $region77
  $region76: #{detector_forward.1} parent=0 // pred_region
    _
  $region77: #{detector_forward.1} parent=0 // pred_fallthru
    _
  // Predicated region
  $region78: #{detector_forward.1} parent=0 // pred_check
    _
  $region79: #{detector_forward.1} parent=0 // pred_check_branch
    %73 = sbr.rel (0) target = $region81
  $region80: #{detector_forward.1} parent=0 // pred_region
    _
  $region81: #{detector_forward.1} parent=0 // pred_fallthru
    _
  // Predicated region
  $region82: #{detector_forward.1} parent=0 // pred_check
    _
  $region83: #{detector_forward.1} parent=0 // pred_check_branch
    %75 = sbr.rel (0) target = $region85
  $region84: #{detector_forward.1} parent=0 // pred_region
    _
  $region85: #{detector_forward.1} parent=0 // pred_fallthru
    _
  // Predicated region
  $region86: #{detector_forward.1} parent=0 // pred_check
    _
  $region87: #{detector_forward.1} parent=0 // pred_check_branch
    %77 = sbr.rel (0) target = $region89
  $region88: #{detector_forward.1} parent=0 // pred_region
    _
  $region89: #{detector_forward.1} parent=0 // pred_fallthru
    _
  // Predicated region
  $region90: #{detector_forward.1} parent=0 // pred_check
    _
  $region91: #{detector_forward.1} parent=0 // pred_check_branch
    %79 = sbr.rel (0) target = $region93
  $region92: #{detector_forward.1} parent=0 // pred_region
    _
  $region93: #{detector_forward.1} parent=0 // pred_fallthru
    _
  // Predicated region
  $region94: #{detector_forward.1} parent=0 // pred_check
    _
  $region95: #{detector_forward.1} parent=0 // pred_check_branch
    %81 = sbr.rel (0) target = $region97
  $region96: #{detector_forward.1} parent=0 // pred_region
    _
  $region97: #{detector_forward.1} parent=0 // pred_fallthru
    _
  // Predicated region
  $region98: #{detector_forward.1} parent=0 // pred_check
    _
  $region99: #{detector_forward.1} parent=0 // pred_check_branch
    %83 = sbr.rel (0) target = $region101
  $region100: #{detector_forward.1} parent=0 // pred_region
    _
  $region101: #{detector_forward.1} parent=0 // pred_fallthru
    _
  %v85 = vlaneseq
  %v86 = vand.u32 %v85, 127
  %v87 = vadd.s32 %v86, 128
  %v88 = vadd.s32 %v86, 256
  %v89 = vadd.s32 %v86, 384
  %v90 = vand.u32 %v86, 255
  %v91 = vand.u32 %v87, 255
  %v92 = vand.u32 %v88, 255
  %v93 = vand.u32 %v89, 255
  %v94 = vand.u32 %v90, 15
  %v95 = vand.u32 %v91, 15
  %v96 = vand.u32 %v92, 15
  %v97 = vand.u32 %v93, 15
  %v98 = vshra.s32 %v90, 4
  %v99 = vshra.s32 %v91, 4
  %v100 = vshra.s32 %v92, 4
  %v101 = vshra.s32 %v93, 4
  %vm102 = vcmp.ge.s32.totalorder %v94, 1
  %vm103 = vcmp.ge.s32.totalorder %v95, 1
  %vm104 = vcmp.ge.s32.totalorder %v96, 1
  %vm105 = vcmp.ge.s32.totalorder %v97, 1
  %vm106 = vcmp.le.s32.totalorder %v94, 14
  %vm107 = vcmp.le.s32.totalorder %v95, 14
  %vm108 = vcmp.le.s32.totalorder %v96, 14
  %vm109 = vcmp.le.s32.totalorder %v97, 14
  %vm110 = vcmp.ge.s32.totalorder %v98, 1
  %vm111 = vcmp.ge.s32.totalorder %v99, 1
  %vm112 = vcmp.ge.s32.totalorder %v100, 1
  %vm113 = vcmp.ge.s32.totalorder %v101, 1
  %vm114 = vcmp.le.s32.totalorder %v98, 14
  %vm115 = vcmp.le.s32.totalorder %v99, 14
  %vm116 = vcmp.le.s32.totalorder %v100, 14
  %vm117 = vcmp.le.s32.totalorder %v101, 14
  %vm118 = vmand %vm110, %vm102
  %vm119 = vmand %vm111, %vm103
  %vm120 = vmand %vm112, %vm104
  %vm121 = vmand %vm113, %vm105
  %v122 = vsel %vm118, 1, 0
  %v123 = vsel %vm119, 1, 0
  %v124 = vsel %vm120, 1, 0
  %v125 = vsel %vm121, 1, 0
  %v126 = vcvt.s32.f32 %v122
  %v127 = vcvt.s32.f32 %v123
  %v128 = vcvt.s32.f32 %v124
  %v129 = vcvt.s32.f32 %v125
  %v130 = vsel %vm110, 1, 0
  %v131 = vsel %vm111, 1, 0
  %v132 = vsel %vm112, 1, 0
  %v133 = vsel %vm113, 1, 0
  %v134 = vcvt.s32.f32 %v130
  %v135 = vcvt.s32.f32 %v131
  %v136 = vcvt.s32.f32 %v132
  %v137 = vcvt.s32.f32 %v133
  %vm138 = vmand %vm110, %vm106
  %vm139 = vmand %vm111, %vm107
  %vm140 = vmand %vm112, %vm108
  %vm141 = vmand %vm113, %vm109
  %v142 = vsel %vm138, 1, 0
  %v143 = vsel %vm139, 1, 0
  %v144 = vsel %vm140, 1, 0
  %v145 = vsel %vm141, 1, 0
  %v146 = vcvt.s32.f32 %v142
  %v147 = vcvt.s32.f32 %v143
  %v148 = vcvt.s32.f32 %v144
  %v149 = vcvt.s32.f32 %v145
  %v150 = vsel %vm102, 1, 0
  %v151 = vsel %vm103, 1, 0
  %v152 = vsel %vm104, 1, 0
  %v153 = vsel %vm105, 1, 0
  %v154 = vcvt.s32.f32 %v150
  %v155 = vcvt.s32.f32 %v151
  %v156 = vcvt.s32.f32 %v152
  %v157 = vcvt.s32.f32 %v153
  %v158 = vsel %vm106, 1, 0
  %v159 = vsel %vm107, 1, 0
  %v160 = vsel %vm108, 1, 0
  %v161 = vsel %vm109, 1, 0
  %v162 = vcvt.s32.f32 %v158
  %v163 = vcvt.s32.f32 %v159
  %v164 = vcvt.s32.f32 %v160
  %v165 = vcvt.s32.f32 %v161
  %vm166 = vmand %vm114, %vm102
  %vm167 = vmand %vm115, %vm103
  %vm168 = vmand %vm116, %vm104
  %vm169 = vmand %vm117, %vm105
  %v170 = vsel %vm166, 1, 0
  %v171 = vsel %vm167, 1, 0
  %v172 = vsel %vm168, 1, 0
  %v173 = vsel %vm169, 1, 0
  %v174 = vcvt.s32.f32 %v170
  %v175 = vcvt.s32.f32 %v171
  %v176 = vcvt.s32.f32 %v172
  %v177 = vcvt.s32.f32 %v173
  %v178 = vsel %vm114, 1, 0
  %v179 = vsel %vm115, 1, 0
  %v180 = vsel %vm116, 1, 0
  %v181 = vsel %vm117, 1, 0
  %v182 = vcvt.s32.f32 %v178
  %v183 = vcvt.s32.f32 %v179
  %v184 = vcvt.s32.f32 %v180
  %v185 = vcvt.s32.f32 %v181
  %vm186 = vmand %vm114, %vm106
  %vm187 = vmand %vm115, %vm107
  %vm188 = vmand %vm116, %vm108
  %vm189 = vmand %vm117, %vm109
  %v190 = vsel %vm186, 1, 0
  %v191 = vsel %vm187, 1, 0
  %v192 = vsel %vm188, 1, 0
  %v193 = vsel %vm189, 1, 0
  %v194 = vcvt.s32.f32 %v190
  %v195 = vcvt.s32.f32 %v191
  %v196 = vcvt.s32.f32 %v192
  %v197 = vcvt.s32.f32 %v193
  %v198 = vand.u32 %v86, 63
  %v199 = vand.u32 %v198, 7
  %v200 = vshra.s32 %v198, 3
  %vm201 = vcmp.ge.s32.totalorder %v199, 1
  %vm202 = vcmp.le.s32.totalorder %v199, 6
  %vm203 = vcmp.ge.s32.totalorder %v200, 1
  %vm204 = vcmp.le.s32.totalorder %v200, 6
  %vm205 = vmand %vm203, %vm201
  %v206 = vsel %vm205, 1, 0
  %v207 = vcvt.s32.f32 %v206
  %v208 = vsel %vm203, 1, 0
  %v209 = vcvt.s32.f32 %v208
  %vm210 = vmand %vm203, %vm202
  %v211 = vsel %vm210, 1, 0
  %v212 = vcvt.s32.f32 %v211
  %v213 = vsel %vm201, 1, 0
  %v214 = vcvt.s32.f32 %v213
  %v215 = vsel %vm202, 1, 0
  %v216 = vcvt.s32.f32 %v215
  %vm217 = vmand %vm204, %vm201
  %v218 = vsel %vm217, 1, 0
  %v219 = vcvt.s32.f32 %v218
  %v220 = vsel %vm204, 1, 0
  %v221 = vcvt.s32.f32 %v220
  %vm222 = vmand %vm204, %vm202
  %v223 = vsel %vm222, 1, 0
  %v224 = vcvt.s32.f32 %v223
  %v225 = vld [vmem:[%s0] sm:$0xff]
  %v226 = vld [vmem:[%s0 + $0x8] sm:$0xff]
  %v227 = vld [vmem:[%s0 + $0x10] sm:$0xff]
  %v228 = vld [vmem:[%s0 + $0x18] sm:$0xff]
  %v229 = vld [vmem:[%s5] sm:$0xf]
  %v230 = vld [vmem:[%s5 + $0x4] sm:$0xf]
  %v231 = vld [vmem:[%s6] sm:$0xff]
  %v232 = vld [vmem:[%s6 + $0x8] sm:$0xff]
  %233 = vrot.lane.b32.xlu0 %v225, 17
  %v234 = vpop.permute.xlu0 %233
  %235 = vrot.lane.b32.xlu0 %v226, 17
  %v236 = vpop.permute.xlu0 %235
  %237 = vrot.lane.b32.xlu0 %v227, 17
  %v238 = vpop.permute.xlu0 %237
  %239 = vrot.lane.b32.xlu0 %v228, 17
  %v240 = vpop.permute.xlu0 %239
  %vm241 = vcmp.lt.s32.totalorder %v86, 17
  %v242 = vsel %vm241, %v238, %v240
  %v243 = vsel %vm241, %v236, %v238
  %v244 = vsel %vm241, %v234, %v236
  %v245 = vsel %vm241, %v240, %v234
  %v246 = vmul.f32 %v245, %v126
  %v247 = vmul.f32 %v244, %v127
  %v248 = vmul.f32 %v243, %v128
  %v249 = vmul.f32 %v242, %v129
  %250 = vrot.lane.b32.xlu0 %v225, 16
  %v251 = vpop.permute.xlu0 %250
  %252 = vrot.lane.b32.xlu0 %v226, 16
  %v253 = vpop.permute.xlu0 %252
  %254 = vrot.lane.b32.xlu0 %v227, 16
  %v255 = vpop.permute.xlu0 %254
  %256 = vrot.lane.b32.xlu0 %v228, 16
  %v257 = vpop.permute.xlu0 %256
  %vm258 = vcmp.lt.s32.totalorder %v86, 16
  %v259 = vsel %vm258, %v255, %v257
  %v260 = vsel %vm258, %v253, %v255
  %v261 = vsel %vm258, %v251, %v253
  %v262 = vsel %vm258, %v257, %v251
  %v263 = vmul.f32 %v262, %v134
  %v264 = vmul.f32 %v261, %v135
  %v265 = vmul.f32 %v260, %v136
  %v266 = vmul.f32 %v259, %v137
  %267 = vrot.lane.b32.xlu0 %v225, 15
  %v268 = vpop.permute.xlu0 %267
  %269 = vrot.lane.b32.xlu0 %v226, 15
  %v270 = vpop.permute.xlu0 %269
  %271 = vrot.lane.b32.xlu0 %v227, 15
  %v272 = vpop.permute.xlu0 %271
  %273 = vrot.lane.b32.xlu0 %v228, 15
  %v274 = vpop.permute.xlu0 %273
  %vm275 = vcmp.lt.s32.totalorder %v86, 15
  %v276 = vsel %vm275, %v272, %v274
  %v277 = vsel %vm275, %v270, %v272
  %v278 = vsel %vm275, %v268, %v270
  %v279 = vsel %vm275, %v274, %v268
  %v280 = vmul.f32 %v279, %v146
  %v281 = vmul.f32 %v278, %v147
  %v282 = vmul.f32 %v277, %v148
  %v283 = vmul.f32 %v276, %v149
  %284 = vrot.lane.b32.xlu0 %v225, 1
  %v285 = vpop.permute.xlu0 %284
  %286 = vrot.lane.b32.xlu0 %v226, 1
  %v287 = vpop.permute.xlu0 %286
  %288 = vrot.lane.b32.xlu0 %v227, 1
  %v289 = vpop.permute.xlu0 %288
  %290 = vrot.lane.b32.xlu0 %v228, 1
  %v291 = vpop.permute.xlu0 %290
  %vm292 = vcmp.lt.s32.totalorder %v86, 1
  %v293 = vsel %vm292, %v289, %v291
  %v294 = vsel %vm292, %v287, %v289
  %v295 = vsel %vm292, %v285, %v287
  %v296 = vsel %vm292, %v291, %v285
  %v297 = vmul.f32 %v296, %v154
  %v298 = vmul.f32 %v295, %v155
  %v299 = vmul.f32 %v294, %v156
  %v300 = vmul.f32 %v293, %v157
  %301 = vrot.lane.b32.xlu0 %v225, 127
  %v302 = vpop.permute.xlu0 %301
  %303 = vrot.lane.b32.xlu0 %v226, 127
  %v304 = vpop.permute.xlu0 %303
  %305 = vrot.lane.b32.xlu0 %v227, 127
  %v306 = vpop.permute.xlu0 %305
  %307 = vrot.lane.b32.xlu0 %v228, 127
  %v308 = vpop.permute.xlu0 %307
  %vm309 = vcmp.lt.s32.totalorder %v86, 127
  %v310 = vsel %vm309, %v306, %v308
  %v311 = vsel %vm309, %v304, %v306
  %v312 = vsel %vm309, %v302, %v304
  %v313 = vsel %vm309, %v308, %v302
  %v314 = vmul.f32 %v312, %v162
  %v315 = vmul.f32 %v311, %v163
  %v316 = vmul.f32 %v310, %v164
  %v317 = vmul.f32 %v313, %v165
  %318 = vrot.lane.b32.xlu0 %v225, 113
  %v319 = vpop.permute.xlu0 %318
  %320 = vrot.lane.b32.xlu0 %v226, 113
  %v321 = vpop.permute.xlu0 %320
  %322 = vrot.lane.b32.xlu0 %v227, 113
  %v323 = vpop.permute.xlu0 %322
  %324 = vrot.lane.b32.xlu0 %v228, 113
  %v325 = vpop.permute.xlu0 %324
  %vm326 = vcmp.lt.s32.totalorder %v86, 113
  %v327 = vsel %vm326, %v323, %v325
  %v328 = vsel %vm326, %v321, %v323
  %v329 = vsel %vm326, %v319, %v321
  %v330 = vsel %vm326, %v325, %v319
  %v331 = vmul.f32 %v329, %v174
  %v332 = vmul.f32 %v328, %v175
  %v333 = vmul.f32 %v327, %v176
  %v334 = vmul.f32 %v330, %v177
  %335 = vrot.lane.b32.xlu0 %v225, 112
  %v336 = vpop.permute.xlu0 %335
  %337 = vrot.lane.b32.xlu0 %v226, 112
  %v338 = vpop.permute.xlu0 %337
  %339 = vrot.lane.b32.xlu0 %v227, 112
  %v340 = vpop.permute.xlu0 %339
  %341 = vrot.lane.b32.xlu0 %v228, 112
  %v342 = vpop.permute.xlu0 %341
  %vm343 = vcmp.lt.s32.totalorder %v86, 112
  %v344 = vsel %vm343, %v340, %v342
  %v345 = vsel %vm343, %v338, %v340
  %v346 = vsel %vm343, %v336, %v338
  %v347 = vsel %vm343, %v342, %v336
  %v348 = vmul.f32 %v346, %v182
  %v349 = vmul.f32 %v345, %v183
  %v350 = vmul.f32 %v344, %v184
  %v351 = vmul.f32 %v347, %v185
  %352 = vrot.lane.b32.xlu0 %v225, 111
  %v353 = vpop.permute.xlu0 %352
  %354 = vrot.lane.b32.xlu0 %v226, 111
  %v355 = vpop.permute.xlu0 %354
  %356 = vrot.lane.b32.xlu0 %v227, 111
  %v357 = vpop.permute.xlu0 %356
  %358 = vrot.lane.b32.xlu0 %v228, 111
  %v359 = vpop.permute.xlu0 %358
  %vm360 = vcmp.lt.s32.totalorder %v86, 111
  %v361 = vsel %vm360, %v357, %v359
  %v362 = vsel %vm360, %v355, %v357
  %v363 = vsel %vm360, %v353, %v355
  %v364 = vsel %vm360, %v359, %v353
  %v365 = vmul.f32 %v363, %v194
  %v366 = vmul.f32 %v362, %v195
  %v367 = vmul.f32 %v361, %v196
  %v368 = vmul.f32 %v364, %v197
  %v369 = vpack.c.bf16 %v263, %v246
  %v370 = vpack.c.bf16 %v264, %v247
  %v371 = vpack.c.bf16 %v265, %v248
  %v372 = vpack.c.bf16 %v266, %v249
  %v373 = vpack.c.bf16 %v297, %v280
  %v374 = vpack.c.bf16 %v298, %v281
  %v375 = vpack.c.bf16 %v299, %v282
  %v376 = vpack.c.bf16 %v300, %v283
  %v377 = vpack.c.bf16 %v314, %v225
  %v378 = vpack.c.bf16 %v315, %v226
  %v379 = vpack.c.bf16 %v316, %v227
  %v380 = vpack.c.bf16 %v317, %v228
  %v381 = vpack.c.bf16 %v348, %v331
  %v382 = vpack.c.bf16 %v349, %v332
  %v383 = vpack.c.bf16 %v350, %v333
  %v384 = vpack.c.bf16 %v351, %v334
  %v385 = vpack.c.bf16 %v365, %v365
  %v386 = vpack.c.bf16 %v366, %v366
  %v387 = vpack.c.bf16 %v367, %v367
  %v388 = vpack.c.bf16 %v368, %v368
  %390 = vset.pattern.permute.xlu0 0
  %391 = vperm.xlu0 %390, %v231
  %v392 = vpop.permute.xlu0 %391
  %395 = vset.pattern.permute.xlu0 0
  %396 = vperm.xlu0 %395, %v232
  %v397 = vpop.permute.xlu0 %396
  %v401 = vunpack.c.l.b16 %v229
  %v402 = vunpack.c.l.b16 %v230
  %v403 = vpack.c.b16 %v402, %v401
  %vm404 = vcmask 588800
  %v406 = vsel %vm404, %v403, 0
  %vm408 = vcmask 1043456
  %v410 = vsel %vm408, %v385, 0
  %v413 = vsel %vm408, %v386, 0
  %v416 = vsel %vm408, %v387, 0
  %v419 = vsel %vm408, %v388, 0
  %421 = vmatprep.subr.bf16.mxu0 %v370
  %422 = vmatpush1.bf16.msra.mxu0 %v369
  %423 = vmatprep.subr.bf16.mxu0 %v374
  %424 = vmatpush1.bf16.msra.mxu0 %v373
  %425 = vmatprep.subr.bf16.mxu0 %v378
  %426 = vmatpush1.bf16.msra.mxu0 %v377
  %427 = vmatprep.subr.bf16.mxu0 %v382
  %428 = vmatpush1.bf16.msra.mxu0 %v381
  %429 = vmatprep.subr.bf16.mxu0 %v413
  %430 = vmatpush1.bf16.msra.mxu0 %v410
  %431 = vmatprep.subr.bf16.mxu0 0
  %432 = vmatpush1.bf16.msra.mxu0 0
  %433 = vmatprep.subr.bf16.mxu0 0
  %434 = vmatpush1.bf16.msra.mxu0 0
  %435 = vmatprep.subr.bf16.mxu0 0
  %436 = vmatpush1.bf16.msra.mxu0 0
  %437 = vmatprep.subr.bf16.mxu0 0
  %438 = vmatpush1.bf16.msra.mxu0 0
  %439 = vmatprep.subr.bf16.mxu0 0
  %440 = vmatpush1.bf16.msra.mxu0 0
  %441 = vmatprep.subr.bf16.mxu0 0
  %442 = vmatpush1.bf16.msra.mxu0 0
  %443 = vmatprep.subr.bf16.mxu0 0
  %444 = vmatpush1.bf16.msra.mxu0 0
  %445 = vmatprep.subr.bf16.mxu0 0
  %446 = vmatpush1.bf16.msra.mxu0 0
  %447 = vmatprep.subr.bf16.mxu0 0
  %448 = vmatpush1.bf16.msra.mxu0 0
  %449 = vmatprep.subr.bf16.mxu0 0
  %450 = vmatpush1.bf16.msra.mxu0 0
  %451 = vmatprep.subr.bf16.mxu0 0
  %452 = vmatpush1.bf16.msra.mxu0 0
  %453 = vmatprep.mubr.bf16.mxu0 0
  %454 = vmatmul.mubr.bf16.gmra.mrb[0].mxu0 %v406
  %v455 = vpop.f32.mrb[0].mxu0
  %v456 = vadd.f32 %v392, %v455
  %v457 = vpop.f32.mrb[0].mxu0
  %v458 = vadd.f32 %v392, %v457
  %v459 = vpop.f32.mrb[0].mxu0
  %v460 = vadd.f32 %v397, %v459
  %v461 = vpop.f32.mrb[0].mxu0
  %v462 = vadd.f32 %v397, %v461
  %463 = vdwg.mxu0
  %464 = vmatprep.subr.bf16.mxu0 %v372
  %465 = vmatpush1.bf16.msra.mxu0 %v371
  %466 = vmatprep.subr.bf16.mxu0 %v376
  %467 = vmatpush1.bf16.msra.mxu0 %v375
  %468 = vmatprep.subr.bf16.mxu0 %v380
  %469 = vmatpush1.bf16.msra.mxu0 %v379
  %470 = vmatprep.subr.bf16.mxu0 %v384
  %471 = vmatpush1.bf16.msra.mxu0 %v383
  %472 = vmatprep.subr.bf16.mxu0 %v419
  %473 = vmatpush1.bf16.msra.mxu0 %v416
  %474 = vmatprep.subr.bf16.mxu0 0
  %475 = vmatpush1.bf16.msra.mxu0 0
  %476 = vmatprep.subr.bf16.mxu0 0
  %477 = vmatpush1.bf16.msra.mxu0 0
  %478 = vmatprep.subr.bf16.mxu0 0
  %479 = vmatpush1.bf16.msra.mxu0 0
  %480 = vmatprep.subr.bf16.mxu0 0
  %481 = vmatpush1.bf16.msra.mxu0 0
  %482 = vmatprep.subr.bf16.mxu0 0
  %483 = vmatpush1.bf16.msra.mxu0 0
  %484 = vmatprep.subr.bf16.mxu0 0
  %485 = vmatpush1.bf16.msra.mxu0 0
  %486 = vmatprep.subr.bf16.mxu0 0
  %487 = vmatpush1.bf16.msra.mxu0 0
  %488 = vmatprep.subr.bf16.mxu0 0
  %489 = vmatpush1.bf16.msra.mxu0 0
  %490 = vmatprep.subr.bf16.mxu0 0
  %491 = vmatpush1.bf16.msra.mxu0 0
  %492 = vmatprep.subr.bf16.mxu0 0
  %493 = vmatpush1.bf16.msra.mxu0 0
  %494 = vmatprep.subr.bf16.mxu0 0
  %495 = vmatpush1.bf16.msra.mxu0 0
  %496 = vmatprep.mubr.bf16.mxu0 0
  %497 = vmatmul.mubr.bf16.gmra.mrb[0].mxu0 %v406
  %v498 = vpop.f32.mrb[0].mxu0
  %v499 = vadd.f32 %v392, %v498
  %v500 = vpop.f32.mrb[0].mxu0
  %v501 = vadd.f32 %v392, %v500
  %v502 = vpop.f32.mrb[0].mxu0
  %v503 = vadd.f32 %v397, %v502
  %v504 = vpop.f32.mrb[0].mxu0
  %v505 = vadd.f32 %v397, %v504
  %506 = vdwg.mxu0
  %v507 = vmax.f32 %v456, 0.0
  %v508 = vmax.f32 %v458, 0.0
  %v509 = vmax.f32 %v499, 0.0
  %v510 = vmax.f32 %v501, 0.0
  %v511 = vmax.f32 %v460, 0.0
  %v512 = vmax.f32 %v462, 0.0
  %v513 = vmax.f32 %v503, 0.0
  %v514 = vmax.f32 %v505, 0.0
  %v515 = vld [vmem:[%s7] sm:$0xff]
  %v516 = vld [vmem:[%s7 + $0x8] sm:$0xff]
  %v517 = vld [vmem:[%s8] sm:$0xff]
  %v518 = vld [vmem:[%s8 + $0x8] sm:$0xff]
  %519 = vrot.lane.b32.xlu0 %v507, 17
  %v520 = vpop.permute.xlu0 %519
  %521 = vrot.lane.b32.xlu0 %v511, 17
  %v522 = vpop.permute.xlu0 %521
  %523 = vrot.lane.b32.xlu0 %v508, 17
  %v524 = vpop.permute.xlu0 %523
  %525 = vrot.lane.b32.xlu0 %v512, 17
  %v526 = vpop.permute.xlu0 %525
  %527 = vrot.lane.b32.xlu0 %v509, 17
  %v528 = vpop.permute.xlu0 %527
  %529 = vrot.lane.b32.xlu0 %v513, 17
  %v530 = vpop.permute.xlu0 %529
  %531 = vrot.lane.b32.xlu0 %v510, 17
  %v532 = vpop.permute.xlu0 %531
  %533 = vrot.lane.b32.xlu0 %v514, 17
  %v534 = vpop.permute.xlu0 %533
  %v535 = vsel %vm241, %v528, %v532
  %v536 = vsel %vm241, %v530, %v534
  %v537 = vsel %vm241, %v524, %v528
  %v538 = vsel %vm241, %v526, %v530
  %v539 = vsel %vm241, %v520, %v524
  %v540 = vsel %vm241, %v522, %v526
  %v541 = vsel %vm241, %v532, %v520
  %v542 = vsel %vm241, %v534, %v522
  %v543 = vmul.f32 %v541, %v126
  %v544 = vmul.f32 %v539, %v127
  %v545 = vmul.f32 %v537, %v128
  %v546 = vmul.f32 %v535, %v129
  %v547 = vmul.f32 %v542, %v126
  %v548 = vmul.f32 %v540, %v127
  %v549 = vmul.f32 %v538, %v128
  %v550 = vmul.f32 %v536, %v129
  %551 = vrot.lane.b32.xlu0 %v507, 16
  %v552 = vpop.permute.xlu0 %551
  %553 = vrot.lane.b32.xlu0 %v511, 16
  %v554 = vpop.permute.xlu0 %553
  %555 = vrot.lane.b32.xlu0 %v508, 16
  %v556 = vpop.permute.xlu0 %555
  %557 = vrot.lane.b32.xlu0 %v512, 16
  %v558 = vpop.permute.xlu0 %557
  %559 = vrot.lane.b32.xlu0 %v509, 16
  %v560 = vpop.permute.xlu0 %559
  %561 = vrot.lane.b32.xlu0 %v513, 16
  %v562 = vpop.permute.xlu0 %561
  %563 = vrot.lane.b32.xlu0 %v510, 16
  %v564 = vpop.permute.xlu0 %563
  %565 = vrot.lane.b32.xlu0 %v514, 16
  %v566 = vpop.permute.xlu0 %565
  %v567 = vsel %vm258, %v560, %v564
  %v568 = vsel %vm258, %v562, %v566
  %v569 = vsel %vm258, %v556, %v560
  %v570 = vsel %vm258, %v558, %v562
  %v571 = vsel %vm258, %v552, %v556
  %v572 = vsel %vm258, %v554, %v558
  %v573 = vsel %vm258, %v564, %v552
  %v574 = vsel %vm258, %v566, %v554
  %v575 = vmul.f32 %v573, %v134
  %v576 = vmul.f32 %v571, %v135
  %v577 = vmul.f32 %v569, %v136
  %v578 = vmul.f32 %v567, %v137
  %v579 = vmul.f32 %v574, %v134
  %v580 = vmul.f32 %v572, %v135
  %v581 = vmul.f32 %v570, %v136
  %v582 = vmul.f32 %v568, %v137
  %583 = vrot.lane.b32.xlu0 %v507, 15
  %v584 = vpop.permute.xlu0 %583
  %585 = vrot.lane.b32.xlu0 %v511, 15
  %v586 = vpop.permute.xlu0 %585
  %587 = vrot.lane.b32.xlu0 %v508, 15
  %v588 = vpop.permute.xlu0 %587
  %589 = vrot.lane.b32.xlu0 %v512, 15
  %v590 = vpop.permute.xlu0 %589
  %591 = vrot.lane.b32.xlu0 %v509, 15
  %v592 = vpop.permute.xlu0 %591
  %593 = vrot.lane.b32.xlu0 %v513, 15
  %v594 = vpop.permute.xlu0 %593
  %595 = vrot.lane.b32.xlu0 %v510, 15
  %v596 = vpop.permute.xlu0 %595
  %597 = vrot.lane.b32.xlu0 %v514, 15
  %v598 = vpop.permute.xlu0 %597
  %v599 = vsel %vm275, %v592, %v596
  %v600 = vsel %vm275, %v594, %v598
  %v601 = vsel %vm275, %v588, %v592
  %v602 = vsel %vm275, %v590, %v594
  %v603 = vsel %vm275, %v584, %v588
  %v604 = vsel %vm275, %v586, %v590
  %v605 = vsel %vm275, %v596, %v584
  %v606 = vsel %vm275, %v598, %v586
  %v607 = vmul.f32 %v605, %v146
  %v608 = vmul.f32 %v603, %v147
  %v609 = vmul.f32 %v601, %v148
  %v610 = vmul.f32 %v599, %v149
  %v611 = vmul.f32 %v606, %v146
  %v612 = vmul.f32 %v604, %v147
  %v613 = vmul.f32 %v602, %v148
  %v614 = vmul.f32 %v600, %v149
  %615 = vrot.lane.b32.xlu0 %v507, 1
  %v616 = vpop.permute.xlu0 %615
  %617 = vrot.lane.b32.xlu0 %v511, 1
  %v618 = vpop.permute.xlu0 %617
  %619 = vrot.lane.b32.xlu0 %v508, 1
  %v620 = vpop.permute.xlu0 %619
  %621 = vrot.lane.b32.xlu0 %v512, 1
  %v622 = vpop.permute.xlu0 %621
  %623 = vrot.lane.b32.xlu0 %v509, 1
  %v624 = vpop.permute.xlu0 %623
  %625 = vrot.lane.b32.xlu0 %v513, 1
  %v626 = vpop.permute.xlu0 %625
  %627 = vrot.lane.b32.xlu0 %v510, 1
  %v628 = vpop.permute.xlu0 %627
  %629 = vrot.lane.b32.xlu0 %v514, 1
  %v630 = vpop.permute.xlu0 %629
  %v631 = vsel %vm292, %v624, %v628
  %v632 = vsel %vm292, %v626, %v630
  %v633 = vsel %vm292, %v620, %v624
  %v634 = vsel %vm292, %v622, %v626
  %v635 = vsel %vm292, %v616, %v620
  %v636 = vsel %vm292, %v618, %v622
  %v637 = vsel %vm292, %v628, %v616
  %v638 = vsel %vm292, %v630, %v618
  %v639 = vmul.f32 %v637, %v154
  %v640 = vmul.f32 %v635, %v155
  %v641 = vmul.f32 %v633, %v156
  %v642 = vmul.f32 %v631, %v157
  %v643 = vmul.f32 %v638, %v154
  %v644 = vmul.f32 %v636, %v155
  %v645 = vmul.f32 %v634, %v156
  %v646 = vmul.f32 %v632, %v157
  %647 = vrot.lane.b32.xlu0 %v507, 127
  %v648 = vpop.permute.xlu0 %647
  %649 = vrot.lane.b32.xlu0 %v511, 127
  %v650 = vpop.permute.xlu0 %649
  %651 = vrot.lane.b32.xlu0 %v508, 127
  %v652 = vpop.permute.xlu0 %651
  %653 = vrot.lane.b32.xlu0 %v512, 127
  %v654 = vpop.permute.xlu0 %653
  %655 = vrot.lane.b32.xlu0 %v509, 127
  %v656 = vpop.permute.xlu0 %655
  %657 = vrot.lane.b32.xlu0 %v513, 127
  %v658 = vpop.permute.xlu0 %657
  %659 = vrot.lane.b32.xlu0 %v510, 127
  %v660 = vpop.permute.xlu0 %659
  %661 = vrot.lane.b32.xlu0 %v514, 127
  %v662 = vpop.permute.xlu0 %661
  %v663 = vsel %vm309, %v656, %v660
  %v664 = vsel %vm309, %v658, %v662
  %v665 = vsel %vm309, %v652, %v656
  %v666 = vsel %vm309, %v654, %v658
  %v667 = vsel %vm309, %v648, %v652
  %v668 = vsel %vm309, %v650, %v654
  %v669 = vsel %vm309, %v660, %v648
  %v670 = vsel %vm309, %v662, %v650
  %v671 = vmul.f32 %v667, %v162
  %v672 = vmul.f32 %v665, %v163
  %v673 = vmul.f32 %v663, %v164
  %v674 = vmul.f32 %v669, %v165
  %v675 = vmul.f32 %v668, %v162
  %v676 = vmul.f32 %v666, %v163
  %v677 = vmul.f32 %v664, %v164
  %v678 = vmul.f32 %v670, %v165
  %679 = vrot.lane.b32.xlu0 %v507, 113
  %v680 = vpop.permute.xlu0 %679
  %681 = vrot.lane.b32.xlu0 %v511, 113
  %v682 = vpop.permute.xlu0 %681
  %683 = vrot.lane.b32.xlu0 %v508, 113
  %v684 = vpop.permute.xlu0 %683
  %685 = vrot.lane.b32.xlu0 %v512, 113
  %v686 = vpop.permute.xlu0 %685
  %687 = vrot.lane.b32.xlu0 %v509, 113
  %v688 = vpop.permute.xlu0 %687
  %689 = vrot.lane.b32.xlu0 %v513, 113
  %v690 = vpop.permute.xlu0 %689
  %691 = vrot.lane.b32.xlu0 %v510, 113
  %v692 = vpop.permute.xlu0 %691
  %693 = vrot.lane.b32.xlu0 %v514, 113
  %v694 = vpop.permute.xlu0 %693
  %v695 = vsel %vm326, %v688, %v692
  %v696 = vsel %vm326, %v690, %v694
  %v697 = vsel %vm326, %v684, %v688
  %v698 = vsel %vm326, %v686, %v690
  %v699 = vsel %vm326, %v680, %v684
  %v700 = vsel %vm326, %v682, %v686
  %v701 = vsel %vm326, %v692, %v680
  %v702 = vsel %vm326, %v694, %v682
  %v703 = vmul.f32 %v699, %v174
  %v704 = vmul.f32 %v697, %v175
  %v705 = vmul.f32 %v695, %v176
  %v706 = vmul.f32 %v701, %v177
  %v707 = vmul.f32 %v700, %v174
  %v708 = vmul.f32 %v698, %v175
  %v709 = vmul.f32 %v696, %v176
  %v710 = vmul.f32 %v702, %v177
  %711 = vrot.lane.b32.xlu0 %v507, 112
  %v712 = vpop.permute.xlu0 %711
  %713 = vrot.lane.b32.xlu0 %v511, 112
  %v714 = vpop.permute.xlu0 %713
  %715 = vrot.lane.b32.xlu0 %v508, 112
  %v716 = vpop.permute.xlu0 %715
  %717 = vrot.lane.b32.xlu0 %v512, 112
  %v718 = vpop.permute.xlu0 %717
  %719 = vrot.lane.b32.xlu0 %v509, 112
  %v720 = vpop.permute.xlu0 %719
  %721 = vrot.lane.b32.xlu0 %v513, 112
  %v722 = vpop.permute.xlu0 %721
  %723 = vrot.lane.b32.xlu0 %v510, 112
  %v724 = vpop.permute.xlu0 %723
  %725 = vrot.lane.b32.xlu0 %v514, 112
  %v726 = vpop.permute.xlu0 %725
  %v727 = vsel %vm343, %v720, %v724
  %v728 = vsel %vm343, %v722, %v726
  %v729 = vsel %vm343, %v716, %v720
  %v730 = vsel %vm343, %v718, %v722
  %v731 = vsel %vm343, %v712, %v716
  %v732 = vsel %vm343, %v714, %v718
  %v733 = vsel %vm343, %v724, %v712
  %v734 = vsel %vm343, %v726, %v714
  %v735 = vmul.f32 %v731, %v182
  %v736 = vmul.f32 %v729, %v183
  %v737 = vmul.f32 %v727, %v184
  %v738 = vmul.f32 %v733, %v185
  %v739 = vmul.f32 %v732, %v182
  %v740 = vmul.f32 %v730, %v183
  %v741 = vmul.f32 %v728, %v184
  %v742 = vmul.f32 %v734, %v185
  %743 = vrot.lane.b32.xlu0 %v507, 111
  %v744 = vpop.permute.xlu0 %743
  %745 = vrot.lane.b32.xlu0 %v511, 111
  %v746 = vpop.permute.xlu0 %745
  %747 = vrot.lane.b32.xlu0 %v508, 111
  %v748 = vpop.permute.xlu0 %747
  %749 = vrot.lane.b32.xlu0 %v512, 111
  %v750 = vpop.permute.xlu0 %749
  %751 = vrot.lane.b32.xlu0 %v509, 111
  %v752 = vpop.permute.xlu0 %751
  %753 = vrot.lane.b32.xlu0 %v513, 111
  %v754 = vpop.permute.xlu0 %753
  %755 = vrot.lane.b32.xlu0 %v510, 111
  %v756 = vpop.permute.xlu0 %755
  %757 = vrot.lane.b32.xlu0 %v514, 111
  %v758 = vpop.permute.xlu0 %757
  %v759 = vsel %vm360, %v752, %v756
  %v760 = vsel %vm360, %v754, %v758
  %v761 = vsel %vm360, %v748, %v752
  %v762 = vsel %vm360, %v750, %v754
  %v763 = vsel %vm360, %v744, %v748
  %v764 = vsel %vm360, %v746, %v750
  %v765 = vsel %vm360, %v756, %v744
  %v766 = vsel %vm360, %v758, %v746
  %v767 = vmul.f32 %v763, %v194
  %v768 = vmul.f32 %v761, %v195
  %v769 = vmul.f32 %v759, %v196
  %v770 = vmul.f32 %v765, %v197
  %v771 = vmul.f32 %v764, %v194
  %v772 = vmul.f32 %v762, %v195
  %v773 = vmul.f32 %v760, %v196
  %v774 = vmul.f32 %v766, %v197
  %v775 = vpack.c.bf16 %v547, %v543
  %v776 = vpack.c.bf16 %v548, %v544
  %v777 = vpack.c.bf16 %v549, %v545
  %v778 = vpack.c.bf16 %v550, %v546
  %v779 = vpack.c.bf16 %v579, %v575
  %v780 = vpack.c.bf16 %v580, %v576
  %v781 = vpack.c.bf16 %v581, %v577
  %v782 = vpack.c.bf16 %v582, %v578
  %v783 = vpack.c.bf16 %v611, %v607
  %v784 = vpack.c.bf16 %v612, %v608
  %v785 = vpack.c.bf16 %v613, %v609
  %v786 = vpack.c.bf16 %v614, %v610
  %v787 = vpack.c.bf16 %v643, %v639
  %v788 = vpack.c.bf16 %v644, %v640
  %v789 = vpack.c.bf16 %v645, %v641
  %v790 = vpack.c.bf16 %v646, %v642
  %v791 = vpack.c.bf16 %v511, %v507
  %v792 = vpack.c.bf16 %v512, %v508
  %v793 = vpack.c.bf16 %v513, %v509
  %v794 = vpack.c.bf16 %v514, %v510
  %v795 = vpack.c.bf16 %v675, %v671
  %v796 = vpack.c.bf16 %v676, %v672
  %v797 = vpack.c.bf16 %v677, %v673
  %v798 = vpack.c.bf16 %v678, %v674
  %v799 = vpack.c.bf16 %v707, %v703
  %v800 = vpack.c.bf16 %v708, %v704
  %v801 = vpack.c.bf16 %v709, %v705
  %v802 = vpack.c.bf16 %v710, %v706
  %v803 = vpack.c.bf16 %v739, %v735
  %v804 = vpack.c.bf16 %v740, %v736
  %v805 = vpack.c.bf16 %v741, %v737
  %v806 = vpack.c.bf16 %v742, %v738
  %v807 = vpack.c.bf16 %v771, %v767
  %v808 = vpack.c.bf16 %v772, %v768
  %v809 = vpack.c.bf16 %v773, %v769
  %v810 = vpack.c.bf16 %v774, %v770
  %812 = vset.pattern.permute.xlu0 0
  %813 = vperm.xlu0 %812, %v517
  %v814 = vpop.permute.xlu0 %813
  %817 = vset.pattern.permute.xlu0 0
  %818 = vperm.xlu0 %817, %v518
  %v819 = vpop.permute.xlu0 %818
  %v823 = vunpack.c.l.b16 %v515
  %v824 = vunpack.c.h.b16 %v515
  %v825 = vunpack.c.l.b16 %v516
  %v826 = vunpack.c.h.b16 %v516
  %v827 = vpack.c.b16 %v825, %v823
  %v828 = vpack.c.b16 %v826, %v824
  %vm830 = vcmask 130048
  %v832 = vsel %vm830, %v828, 0
  %834 = vmatprep.subr.bf16.mxu0 %v776
  %835 = vmatpush1.bf16.msra.mxu0 %v775
  %836 = vmatprep.subr.bf16.mxu0 %v780
  %837 = vmatpush1.bf16.msra.mxu0 %v779
  %838 = vmatprep.subr.bf16.mxu0 %v784
  %839 = vmatpush1.bf16.msra.mxu0 %v783
  %840 = vmatprep.subr.bf16.mxu0 %v788
  %841 = vmatpush1.bf16.msra.mxu0 %v787
  %842 = vmatprep.subr.bf16.mxu0 %v792
  %843 = vmatpush1.bf16.msra.mxu0 %v791
  %844 = vmatprep.subr.bf16.mxu0 %v796
  %845 = vmatpush1.bf16.msra.mxu0 %v795
  %846 = vmatprep.subr.bf16.mxu0 %v800
  %847 = vmatpush1.bf16.msra.mxu0 %v799
  %848 = vmatprep.subr.bf16.mxu0 %v804
  %849 = vmatpush1.bf16.msra.mxu0 %v803
  %850 = vmatprep.subr.bf16.mxu0 %v808
  %851 = vmatpush1.bf16.msra.mxu0 %v807
  %852 = vmatprep.subr.bf16.mxu0 0
  %853 = vmatpush1.bf16.msra.mxu0 0
  %854 = vmatprep.subr.bf16.mxu0 0
  %855 = vmatpush1.bf16.msra.mxu0 0
  %856 = vmatprep.subr.bf16.mxu0 0
  %857 = vmatpush1.bf16.msra.mxu0 0
  %858 = vmatprep.subr.bf16.mxu0 0
  %859 = vmatpush1.bf16.msra.mxu0 0
  %860 = vmatprep.subr.bf16.mxu0 0
  %861 = vmatpush1.bf16.msra.mxu0 0
  %862 = vmatprep.subr.bf16.mxu0 0
  %863 = vmatpush1.bf16.msra.mxu0 0
  %864 = vmatprep.subr.bf16.mxu0 0
  %865 = vmatpush1.bf16.msra.mxu0 0
  %866 = vmatprep.mubr.bf16.mxu0 %v832
  %867 = vmatmul.mubr.bf16.gmra.mrb[0].mxu0 %v827
  %v868 = vpop.f32.mrb[0].mxu0
  %v869 = vadd.f32 %v814, %v868
  %v870 = vpop.f32.mrb[0].mxu0
  %v871 = vadd.f32 %v814, %v870
  %v872 = vpop.f32.mrb[0].mxu0
  %v873 = vadd.f32 %v819, %v872
  %v874 = vpop.f32.mrb[0].mxu0
  %v875 = vadd.f32 %v819, %v874
  %876 = vdwg.mxu0
  %877 = vmatprep.subr.bf16.mxu0 %v778
  %878 = vmatpush1.bf16.msra.mxu0 %v777
  %879 = vmatprep.subr.bf16.mxu0 %v782
  %880 = vmatpush1.bf16.msra.mxu0 %v781
  %881 = vmatprep.subr.bf16.mxu0 %v786
  %882 = vmatpush1.bf16.msra.mxu0 %v785
  %883 = vmatprep.subr.bf16.mxu0 %v790
  %884 = vmatpush1.bf16.msra.mxu0 %v789
  %885 = vmatprep.subr.bf16.mxu0 %v794
  %886 = vmatpush1.bf16.msra.mxu0 %v793
  %887 = vmatprep.subr.bf16.mxu0 %v798
  %888 = vmatpush1.bf16.msra.mxu0 %v797
  %889 = vmatprep.subr.bf16.mxu0 %v802
  %890 = vmatpush1.bf16.msra.mxu0 %v801
  %891 = vmatprep.subr.bf16.mxu0 %v806
  %892 = vmatpush1.bf16.msra.mxu0 %v805
  %893 = vmatprep.subr.bf16.mxu0 %v810
  %894 = vmatpush1.bf16.msra.mxu0 %v809
  %895 = vmatprep.subr.bf16.mxu0 0
  %896 = vmatpush1.bf16.msra.mxu0 0
  %897 = vmatprep.subr.bf16.mxu0 0
  %898 = vmatpush1.bf16.msra.mxu0 0
  %899 = vmatprep.subr.bf16.mxu0 0
  %900 = vmatpush1.bf16.msra.mxu0 0
  %901 = vmatprep.subr.bf16.mxu0 0
  %902 = vmatpush1.bf16.msra.mxu0 0
  %903 = vmatprep.subr.bf16.mxu0 0
  %904 = vmatpush1.bf16.msra.mxu0 0
  %905 = vmatprep.subr.bf16.mxu0 0
  %906 = vmatpush1.bf16.msra.mxu0 0
  %907 = vmatprep.subr.bf16.mxu0 0
  %908 = vmatpush1.bf16.msra.mxu0 0
  %909 = vmatprep.mubr.bf16.mxu0 %v832
  %910 = vmatmul.mubr.bf16.gmra.mrb[0].mxu0 %v827
  %v911 = vpop.f32.mrb[0].mxu0
  %v912 = vadd.f32 %v814, %v911
  %v913 = vpop.f32.mrb[0].mxu0
  %v914 = vadd.f32 %v814, %v913
  %v915 = vpop.f32.mrb[0].mxu0
  %v916 = vadd.f32 %v819, %v915
  %v917 = vpop.f32.mrb[0].mxu0
  %v918 = vadd.f32 %v819, %v917
  %919 = vdwg.mxu0
  %v920 = vmax.f32 %v869, 0.0
  %v921 = vmax.f32 %v871, 0.0
  %v922 = vmax.f32 %v912, 0.0
  %v923 = vmax.f32 %v914, 0.0
  %v924 = vmax.f32 %v873, 0.0
  %v925 = vmax.f32 %v875, 0.0
  %v926 = vmax.f32 %v916, 0.0
  %v927 = vmax.f32 %v918, 0.0
  %928 = vrot.lane.b32.xlu0 %v920, 127
  %v929 = vpop.permute.xlu0 %928
  %930 = vrot.lane.b32.xlu0 %v924, 127
  %v931 = vpop.permute.xlu0 %930
  %932 = vrot.lane.b32.xlu0 %v921, 127
  %v933 = vpop.permute.xlu0 %932
  %934 = vrot.lane.b32.xlu0 %v925, 127
  %v935 = vpop.permute.xlu0 %934
  %936 = vrot.lane.b32.xlu0 %v922, 127
  %v937 = vpop.permute.xlu0 %936
  %938 = vrot.lane.b32.xlu0 %v926, 127
  %v939 = vpop.permute.xlu0 %938
  %940 = vrot.lane.b32.xlu0 %v923, 127
  %v941 = vpop.permute.xlu0 %940
  %942 = vrot.lane.b32.xlu0 %v927, 127
  %v943 = vpop.permute.xlu0 %942
  %v944 = vsel %vm309, %v937, %v941
  %v945 = vsel %vm309, %v939, %v943
  %v946 = vsel %vm309, %v933, %v937
  %v947 = vsel %vm309, %v935, %v939
  %v948 = vsel %vm309, %v929, %v933
  %v949 = vsel %vm309, %v931, %v935
  %v950 = vsel %vm309, %v941, %v929
  %v951 = vsel %vm309, %v943, %v931
  %v952 = vmax.f32 %v920, %v948
  %v953 = vmax.f32 %v921, %v946
  %v954 = vmax.f32 %v922, %v944
  %v955 = vmax.f32 %v923, %v950
  %v956 = vmax.f32 %v924, %v949
  %v957 = vmax.f32 %v925, %v947
  %v958 = vmax.f32 %v926, %v945
  %v959 = vmax.f32 %v927, %v951
  %960 = vrot.lane.b32.xlu0 %v920, 112
  %v961 = vpop.permute.xlu0 %960
  %962 = vrot.lane.b32.xlu0 %v924, 112
  %v963 = vpop.permute.xlu0 %962
  %964 = vrot.lane.b32.xlu0 %v921, 112
  %v965 = vpop.permute.xlu0 %964
  %966 = vrot.lane.b32.xlu0 %v925, 112
  %v967 = vpop.permute.xlu0 %966
  %968 = vrot.lane.b32.xlu0 %v922, 112
  %v969 = vpop.permute.xlu0 %968
  %970 = vrot.lane.b32.xlu0 %v926, 112
  %v971 = vpop.permute.xlu0 %970
  %972 = vrot.lane.b32.xlu0 %v923, 112
  %v973 = vpop.permute.xlu0 %972
  %974 = vrot.lane.b32.xlu0 %v927, 112
  %v975 = vpop.permute.xlu0 %974
  %v976 = vsel %vm343, %v969, %v973
  %v977 = vsel %vm343, %v971, %v975
  %v978 = vsel %vm343, %v965, %v969
  %v979 = vsel %vm343, %v967, %v971
  %v980 = vsel %vm343, %v961, %v965
  %v981 = vsel %vm343, %v963, %v967
  %v982 = vsel %vm343, %v973, %v961
  %v983 = vsel %vm343, %v975, %v963
  %984 = vrot.lane.b32.xlu0 %v920, 111
  %v985 = vpop.permute.xlu0 %984
  %986 = vrot.lane.b32.xlu0 %v924, 111
  %v987 = vpop.permute.xlu0 %986
  %988 = vrot.lane.b32.xlu0 %v921, 111
  %v989 = vpop.permute.xlu0 %988
  %990 = vrot.lane.b32.xlu0 %v925, 111
  %v991 = vpop.permute.xlu0 %990
  %992 = vrot.lane.b32.xlu0 %v922, 111
  %v993 = vpop.permute.xlu0 %992
  %994 = vrot.lane.b32.xlu0 %v926, 111
  %v995 = vpop.permute.xlu0 %994
  %996 = vrot.lane.b32.xlu0 %v923, 111
  %v997 = vpop.permute.xlu0 %996
  %998 = vrot.lane.b32.xlu0 %v927, 111
  %v999 = vpop.permute.xlu0 %998
  %v1000 = vsel %vm360, %v993, %v997
  %v1001 = vsel %vm360, %v995, %v999
  %v1002 = vsel %vm360, %v989, %v993
  %v1003 = vsel %vm360, %v991, %v995
  %v1004 = vsel %vm360, %v985, %v989
  %v1005 = vsel %vm360, %v987, %v991
  %v1006 = vsel %vm360, %v997, %v985
  %v1007 = vsel %vm360, %v999, %v987
  %v1008 = vmax.f32 %v980, %v1004
  %v1009 = vmax.f32 %v978, %v1002
  %v1010 = vmax.f32 %v976, %v1000
  %v1011 = vmax.f32 %v982, %v1006
  %v1012 = vmax.f32 %v981, %v1005
  %v1013 = vmax.f32 %v979, %v1003
  %v1014 = vmax.f32 %v977, %v1001
  %v1015 = vmax.f32 %v983, %v1007
  %v1016 = vmax.f32 %v952, %v1008
  %v1017 = vmax.f32 %v953, %v1009
  %v1018 = vmax.f32 %v954, %v1010
  %v1019 = vmax.f32 %v955, %v1011
  %v1020 = vmax.f32 %v956, %v1012
  %v1021 = vmax.f32 %v957, %v1013
  %v1022 = vmax.f32 %v958, %v1014
  %v1023 = vmax.f32 %v959, %v1015
  %v1024 = vpack.c.bf16 %v1020, %v1016
  %v1025 = vpack.c.bf16 %v1021, %v1017
  %v1026 = vpack.c.bf16 %v1022, %v1018
  %v1027 = vpack.c.bf16 %v1023, %v1019
  %v1028 = vld [vmem:[%s1] sm:$0xf]
  %v1029 = vld [vmem:[%s1 + $0x4] sm:$0xf]
  %v1030 = vld [vmem:[%s1 + $0x8] sm:$0xf]
  %v1031 = vld [vmem:[%s1 + $0xc] sm:$0xf]
  %v1032 = vld [vmem:[%s1 + $0x10] sm:$0xf]
  %v1033 = vld [vmem:[%s1 + $0x14] sm:$0xf]
  %v1034 = vld [vmem:[%s1 + $0x18] sm:$0xf]
  %v1035 = vld [vmem:[%s1 + $0x1c] sm:$0xf]
  %v1036 = vld [vmem:[%s1 + $0x20] sm:$0xf]
  %v1037 = vld [vmem:[%s1 + $0x24] sm:$0xf]
  %v1038 = vld [vmem:[%s1 + $0x28] sm:$0xf]
  %v1039 = vld [vmem:[%s1 + $0x2c] sm:$0xf]
  %v1040 = vld [vmem:[%s1 + $0x30] sm:$0xf]
  %v1041 = vld [vmem:[%s1 + $0x34] sm:$0xf]
  %v1042 = vld [vmem:[%s1 + $0x38] sm:$0xf]
  %v1043 = vld [vmem:[%s1 + $0x3c] sm:$0xf]
  %v1044 = vld [vmem:[%s1 + $0x40] sm:$0xf]
  %v1045 = vld [vmem:[%s1 + $0x44] sm:$0xf]
  %v1046 = vld [vmem:[%s1 + $0x48] sm:$0xf]
  %v1047 = vld [vmem:[%s1 + $0x4c] sm:$0xf]
  %v1048 = vld [vmem:[%s1 + $0x50] sm:$0xf]
  %v1049 = vld [vmem:[%s1 + $0x54] sm:$0xf]
  %v1050 = vld [vmem:[%s1 + $0x58] sm:$0xf]
  %v1051 = vld [vmem:[%s1 + $0x5c] sm:$0xf]
  %v1052 = vld [vmem:[%s1 + $0x60] sm:$0xf]
  %v1053 = vld [vmem:[%s1 + $0x64] sm:$0xf]
  %v1054 = vld [vmem:[%s1 + $0x68] sm:$0xf]
  %v1055 = vld [vmem:[%s1 + $0x6c] sm:$0xf]
  %v1056 = vld [vmem:[%s1 + $0x70] sm:$0xf]
  %v1057 = vld [vmem:[%s1 + $0x74] sm:$0xf]
  %v1058 = vld [vmem:[%s1 + $0x78] sm:$0xf]
  %v1059 = vld [vmem:[%s1 + $0x7c] sm:$0xf]
  %v1060 = vld [vmem:[%s1 + $0x80] sm:$0xf]
  %v1061 = vld [vmem:[%s1 + $0x84] sm:$0xf]
  %v1062 = vld [vmem:[%s1 + $0x88] sm:$0xf]
  %v1063 = vld [vmem:[%s1 + $0x8c] sm:$0xf]
  %v1064 = vld [vmem:[%s1 + $0x90] sm:$0xf]
  %v1065 = vld [vmem:[%s1 + $0x94] sm:$0xf]
  %v1066 = vld [vmem:[%s1 + $0x98] sm:$0xf]
  %v1067 = vld [vmem:[%s1 + $0x9c] sm:$0xf]
  %v1068 = vld [vmem:[%s1 + $0xa0] sm:$0xf]
  %v1069 = vld [vmem:[%s1 + $0xa4] sm:$0xf]
  %v1070 = vld [vmem:[%s1 + $0xa8] sm:$0xf]
  %v1071 = vld [vmem:[%s1 + $0xac] sm:$0xf]
  %v1072 = vld [vmem:[%s1 + $0xb0] sm:$0xf]
  %v1073 = vld [vmem:[%s1 + $0xb4] sm:$0xf]
  %v1074 = vld [vmem:[%s1 + $0xb8] sm:$0xf]
  %v1075 = vld [vmem:[%s1 + $0xbc] sm:$0xf]
  %v1076 = vld [vmem:[%s1 + $0xc0] sm:$0xf]
  %v1077 = vld [vmem:[%s1 + $0xc4] sm:$0xf]
  %v1078 = vld [vmem:[%s1 + $0xc8] sm:$0xf]
  %v1079 = vld [vmem:[%s1 + $0xcc] sm:$0xf]
  %v1080 = vld [vmem:[%s1 + $0xd0] sm:$0xf]
  %v1081 = vld [vmem:[%s1 + $0xd4] sm:$0xf]
  %v1082 = vld [vmem:[%s1 + $0xd8] sm:$0xf]
  %v1083 = vld [vmem:[%s1 + $0xdc] sm:$0xf]
  %v1084 = vld [vmem:[%s1 + $0xe0] sm:$0xf]
  %v1085 = vld [vmem:[%s1 + $0xe4] sm:$0xf]
  %v1086 = vld [vmem:[%s1 + $0xe8] sm:$0xf]
  %v1087 = vld [vmem:[%s1 + $0xec] sm:$0xf]
  %v1088 = vld [vmem:[%s1 + $0xf0] sm:$0xf]
  %v1089 = vld [vmem:[%s1 + $0xf4] sm:$0xf]
  %v1090 = vld [vmem:[%s1 + $0xf8] sm:$0xf]
  %v1091 = vld [vmem:[%s1 + $0xfc] sm:$0xf]
  %v1156 = vunpack.c.l.b16 %v1028
  %v1157 = vunpack.c.l.b16 %v1029
  %v1158 = vunpack.c.l.b16 %v1030
  %v1159 = vunpack.c.l.b16 %v1031
  %v1160 = vunpack.c.l.b16 %v1032
  %v1161 = vunpack.c.l.b16 %v1033
  %v1162 = vunpack.c.l.b16 %v1034
  %v1163 = vunpack.c.l.b16 %v1035
  %v1164 = vunpack.c.l.b16 %v1036
  %v1165 = vunpack.c.l.b16 %v1037
  %v1166 = vunpack.c.l.b16 %v1038
  %v1167 = vunpack.c.l.b16 %v1039
  %v1168 = vunpack.c.l.b16 %v1040
  %v1169 = vunpack.c.l.b16 %v1041
  %v1170 = vunpack.c.l.b16 %v1042
  %v1171 = vunpack.c.l.b16 %v1043
  %v1172 = vunpack.c.l.b16 %v1044
  %v1173 = vunpack.c.l.b16 %v1045
  %v1174 = vunpack.c.l.b16 %v1046
  %v1175 = vunpack.c.l.b16 %v1047
  %v1176 = vunpack.c.l.b16 %v1048
  %v1177 = vunpack.c.l.b16 %v1049
  %v1178 = vunpack.c.l.b16 %v1050
  %v1179 = vunpack.c.l.b16 %v1051
  %v1180 = vunpack.c.l.b16 %v1052
  %v1181 = vunpack.c.l.b16 %v1053
  %v1182 = vunpack.c.l.b16 %v1054
  %v1183 = vunpack.c.l.b16 %v1055
  %v1184 = vunpack.c.l.b16 %v1056
  %v1185 = vunpack.c.l.b16 %v1057
  %v1186 = vunpack.c.l.b16 %v1058
  %v1187 = vunpack.c.l.b16 %v1059
  %v1188 = vunpack.c.l.b16 %v1060
  %v1189 = vunpack.c.l.b16 %v1061
  %v1190 = vunpack.c.l.b16 %v1062
  %v1191 = vunpack.c.l.b16 %v1063
  %v1192 = vunpack.c.l.b16 %v1064
  %v1193 = vunpack.c.l.b16 %v1065
  %v1194 = vunpack.c.l.b16 %v1066
  %v1195 = vunpack.c.l.b16 %v1067
  %v1196 = vunpack.c.l.b16 %v1068
  %v1197 = vunpack.c.l.b16 %v1069
  %v1198 = vunpack.c.l.b16 %v1070
  %v1199 = vunpack.c.l.b16 %v1071
  %v1200 = vunpack.c.l.b16 %v1072
  %v1201 = vunpack.c.l.b16 %v1073
  %v1202 = vunpack.c.l.b16 %v1074
  %v1203 = vunpack.c.l.b16 %v1075
  %v1204 = vunpack.c.l.b16 %v1076
  %v1205 = vunpack.c.l.b16 %v1077
  %v1206 = vunpack.c.l.b16 %v1078
  %v1207 = vunpack.c.l.b16 %v1079
  %v1208 = vunpack.c.l.b16 %v1080
  %v1209 = vunpack.c.l.b16 %v1081
  %v1210 = vunpack.c.l.b16 %v1082
  %v1211 = vunpack.c.l.b16 %v1083
  %v1212 = vunpack.c.l.b16 %v1084
  %v1213 = vunpack.c.l.b16 %v1085
  %v1214 = vunpack.c.l.b16 %v1086
  %v1215 = vunpack.c.l.b16 %v1087
  %v1216 = vunpack.c.l.b16 %v1088
  %v1217 = vunpack.c.l.b16 %v1089
  %v1218 = vunpack.c.l.b16 %v1090
  %v1219 = vunpack.c.l.b16 %v1091
  %v1220 = vpack.c.b16 %v1157, %v1156
  %v1221 = vpack.c.b16 %v1159, %v1158
  %v1222 = vpack.c.b16 %v1161, %v1160
  %v1223 = vpack.c.b16 %v1163, %v1162
  %v1224 = vpack.c.b16 %v1165, %v1164
  %v1225 = vpack.c.b16 %v1167, %v1166
  %v1226 = vpack.c.b16 %v1169, %v1168
  %v1227 = vpack.c.b16 %v1171, %v1170
  %v1228 = vpack.c.b16 %v1173, %v1172
  %v1229 = vpack.c.b16 %v1175, %v1174
  %v1230 = vpack.c.b16 %v1177, %v1176
  %v1231 = vpack.c.b16 %v1179, %v1178
  %v1232 = vpack.c.b16 %v1181, %v1180
  %v1233 = vpack.c.b16 %v1183, %v1182
  %v1234 = vpack.c.b16 %v1185, %v1184
  %v1235 = vpack.c.b16 %v1187, %v1186
  %v1236 = vpack.c.b16 %v1189, %v1188
  %v1237 = vpack.c.b16 %v1191, %v1190
  %v1238 = vpack.c.b16 %v1193, %v1192
  %v1239 = vpack.c.b16 %v1195, %v1194
  %v1240 = vpack.c.b16 %v1197, %v1196
  %v1241 = vpack.c.b16 %v1199, %v1198
  %v1242 = vpack.c.b16 %v1201, %v1200
  %v1243 = vpack.c.b16 %v1203, %v1202
  %v1244 = vpack.c.b16 %v1205, %v1204
  %v1245 = vpack.c.b16 %v1207, %v1206
  %v1246 = vpack.c.b16 %v1209, %v1208
  %v1247 = vpack.c.b16 %v1211, %v1210
  %v1248 = vpack.c.b16 %v1213, %v1212
  %v1249 = vpack.c.b16 %v1215, %v1214
  %v1250 = vpack.c.b16 %v1217, %v1216
  %v1251 = vpack.c.b16 %v1219, %v1218
  %1284 = vmatprep.subr.bf16.mxu0 0
  %1285 = vmatpush1.bf16.msra.mxu0 %v1220
  %1286 = vmatprep.subr.bf16.mxu0 0
  %1287 = vmatpush1.bf16.msra.mxu0 %v1221
  %1288 = vmatprep.subr.bf16.mxu0 0
  %1289 = vmatpush1.bf16.msra.mxu0 %v1222
  %1290 = vmatprep.subr.bf16.mxu0 0
  %1291 = vmatpush1.bf16.msra.mxu0 %v1223
  %1292 = vmatprep.subr.bf16.mxu0 0
  %1293 = vmatpush1.bf16.msra.mxu0 %v1224
  %1294 = vmatprep.subr.bf16.mxu0 0
  %1295 = vmatpush1.bf16.msra.mxu0 %v1225
  %1296 = vmatprep.subr.bf16.mxu0 0
  %1297 = vmatpush1.bf16.msra.mxu0 %v1226
  %1298 = vmatprep.subr.bf16.mxu0 0
  %1299 = vmatpush1.bf16.msra.mxu0 %v1227
  %1300 = vmatprep.subr.bf16.mxu0 0
  %1301 = vmatpush1.bf16.msra.mxu0 %v1228
  %1302 = vmatprep.subr.bf16.mxu0 0
  %1303 = vmatpush1.bf16.msra.mxu0 %v1229
  %1304 = vmatprep.subr.bf16.mxu0 0
  %1305 = vmatpush1.bf16.msra.mxu0 %v1230
  %1306 = vmatprep.subr.bf16.mxu0 0
  %1307 = vmatpush1.bf16.msra.mxu0 %v1231
  %1308 = vmatprep.subr.bf16.mxu0 0
  %1309 = vmatpush1.bf16.msra.mxu0 %v1232
  %1310 = vmatprep.subr.bf16.mxu0 0
  %1311 = vmatpush1.bf16.msra.mxu0 %v1233
  %1312 = vmatprep.subr.bf16.mxu0 0
  %1313 = vmatpush1.bf16.msra.mxu0 %v1234
  %1314 = vmatprep.subr.bf16.mxu0 0
  %1315 = vmatpush1.bf16.msra.mxu0 %v1235
  %1316 = vmatprep.mubr.bf16.mxu0 %v1025
  %1317 = vmatmul.mubr.bf16.gmra.mrb[0].mxu0 %v1024
  %v1318 = vpop.f32.mrb[0].mxu0
  %v1319 = vadd.f32 0.0, %v1318
  %v1320 = vpop.f32.mrb[0].mxu0
  %v1321 = vpop.f32.mrb[0].mxu0
  %v1322 = vadd.f32 0.0, %v1321
  %v1323 = vpop.f32.mrb[0].mxu0
  %1324 = vdwg.mxu0
  %1325 = vmatprep.subr.bf16.mxu0 0
  %1326 = vmatpush1.bf16.msra.mxu0 %v1236
  %1327 = vmatprep.subr.bf16.mxu0 0
  %1328 = vmatpush1.bf16.msra.mxu0 %v1237
  %1329 = vmatprep.subr.bf16.mxu0 0
  %1330 = vmatpush1.bf16.msra.mxu0 %v1238
  %1331 = vmatprep.subr.bf16.mxu0 0
  %1332 = vmatpush1.bf16.msra.mxu0 %v1239
  %1333 = vmatprep.subr.bf16.mxu0 0
  %1334 = vmatpush1.bf16.msra.mxu0 %v1240
  %1335 = vmatprep.subr.bf16.mxu0 0
  %1336 = vmatpush1.bf16.msra.mxu0 %v1241
  %1337 = vmatprep.subr.bf16.mxu0 0
  %1338 = vmatpush1.bf16.msra.mxu0 %v1242
  %1339 = vmatprep.subr.bf16.mxu0 0
  %1340 = vmatpush1.bf16.msra.mxu0 %v1243
  %1341 = vmatprep.subr.bf16.mxu0 0
  %1342 = vmatpush1.bf16.msra.mxu0 %v1244
  %1343 = vmatprep.subr.bf16.mxu0 0
  %1344 = vmatpush1.bf16.msra.mxu0 %v1245
  %1345 = vmatprep.subr.bf16.mxu0 0
  %1346 = vmatpush1.bf16.msra.mxu0 %v1246
  %1347 = vmatprep.subr.bf16.mxu0 0
  %1348 = vmatpush1.bf16.msra.mxu0 %v1247
  %1349 = vmatprep.subr.bf16.mxu0 0
  %1350 = vmatpush1.bf16.msra.mxu0 %v1248
  %1351 = vmatprep.subr.bf16.mxu0 0
  %1352 = vmatpush1.bf16.msra.mxu0 %v1249
  %1353 = vmatprep.subr.bf16.mxu0 0
  %1354 = vmatpush1.bf16.msra.mxu0 %v1250
  %1355 = vmatprep.subr.bf16.mxu0 0
  %1356 = vmatpush1.bf16.msra.mxu0 %v1251
  %1357 = vmatprep.mubr.bf16.mxu0 %v1027
  %1358 = vmatmul.mubr.bf16.gmra.mrb[0].mxu0 %v1026
  %v1359 = vpop.f32.mrb[0].mxu0
  %v1360 = vadd.f32 %v1319, %v1359
  %v1361 = vpop.f32.mrb[0].mxu0
  %v1362 = vpop.f32.mrb[0].mxu0
  %v1363 = vadd.f32 %v1322, %v1362
  %v1364 = vpop.f32.mrb[0].mxu0
  %1365 = vdwg.mxu0
  %v1366 = vld [vmem:[%s9] sm:$0xff]
  %v1367 = vld [vmem:[%s9 + $0x8] sm:$0xff]
  %v1368 = vld [vmem:[%s9 + $0x10] sm:$0xff]
  %v1369 = vld [vmem:[%s9 + $0x18] sm:$0xff]
  %v1370 = vld [vmem:[%s10] sm:$0xff]
  %v1371 = vld [vmem:[%s10 + $0x8] sm:$0xff]
  %v1372 = vld [vmem:[%s10 + $0x10] sm:$0xff]
  %v1373 = vld [vmem:[%s10 + $0x18] sm:$0xff]
  %1374 = vrot.lane.b32.xlu0 %v1360, 9
  %v1375 = vpop.permute.xlu0 %1374
  %1376 = vrot.lane.b32.xlu0 %v1363, 9
  %v1377 = vpop.permute.xlu0 %1376
  %v1378 = vmul.f32 %v1375, %v207
  %v1379 = vmul.f32 %v1377, %v207
  %1380 = vrot.lane.b32.xlu0 %v1360, 8
  %v1381 = vpop.permute.xlu0 %1380
  %1382 = vrot.lane.b32.xlu0 %v1363, 8
  %v1383 = vpop.permute.xlu0 %1382
  %v1384 = vmul.f32 %v1381, %v209
  %v1385 = vmul.f32 %v1383, %v209
  %1386 = vrot.lane.b32.xlu0 %v1360, 7
  %v1387 = vpop.permute.xlu0 %1386
  %1388 = vrot.lane.b32.xlu0 %v1363, 7
  %v1389 = vpop.permute.xlu0 %1388
  %v1390 = vmul.f32 %v1387, %v212
  %v1391 = vmul.f32 %v1389, %v212
  %1392 = vrot.lane.b32.xlu0 %v1360, 1
  %v1393 = vpop.permute.xlu0 %1392
  %1394 = vrot.lane.b32.xlu0 %v1363, 1
  %v1395 = vpop.permute.xlu0 %1394
  %v1396 = vmul.f32 %v1393, %v214
  %v1397 = vmul.f32 %v1395, %v214
  %1398 = vrot.lane.b32.xlu0 %v1360, 127
  %v1399 = vpop.permute.xlu0 %1398
  %1400 = vrot.lane.b32.xlu0 %v1363, 127
  %v1401 = vpop.permute.xlu0 %1400
  %v1402 = vmul.f32 %v1399, %v216
  %v1403 = vmul.f32 %v1401, %v216
  %1404 = vrot.lane.b32.xlu0 %v1360, 121
  %v1405 = vpop.permute.xlu0 %1404
  %1406 = vrot.lane.b32.xlu0 %v1363, 121
  %v1407 = vpop.permute.xlu0 %1406
  %v1408 = vmul.f32 %v1405, %v219
  %v1409 = vmul.f32 %v1407, %v219
  %1410 = vrot.lane.b32.xlu0 %v1360, 120
  %v1411 = vpop.permute.xlu0 %1410
  %1412 = vrot.lane.b32.xlu0 %v1363, 120
  %v1413 = vpop.permute.xlu0 %1412
  %v1414 = vmul.f32 %v1411, %v221
  %v1415 = vmul.f32 %v1413, %v221
  %1416 = vrot.lane.b32.xlu0 %v1360, 119
  %v1417 = vpop.permute.xlu0 %1416
  %1418 = vrot.lane.b32.xlu0 %v1363, 119
  %v1419 = vpop.permute.xlu0 %1418
  %v1420 = vmul.f32 %v1417, %v224
  %v1421 = vmul.f32 %v1419, %v224
  %v1422 = vpack.c.bf16 %v1379, %v1378
  %v1423 = vpack.c.bf16 %v1385, %v1384
  %v1424 = vpack.c.bf16 %v1391, %v1390
  %v1425 = vpack.c.bf16 %v1397, %v1396
  %v1426 = vpack.c.bf16 %v1363, %v1360
  %v1427 = vpack.c.bf16 %v1403, %v1402
  %v1428 = vpack.c.bf16 %v1409, %v1408
  %v1429 = vpack.c.bf16 %v1415, %v1414
  %v1430 = vpack.c.bf16 %v1421, %v1420
  %1432 = vset.pattern.permute.xlu0 0
  %1433 = vperm.xlu0 %1432, %v1370
  %v1434 = vpop.permute.xlu0 %1433
  %1437 = vset.pattern.permute.xlu0 0
  %1438 = vperm.xlu0 %1437, %v1371
  %v1439 = vpop.permute.xlu0 %1438
  %1442 = vset.pattern.permute.xlu0 0
  %1443 = vperm.xlu0 %1442, %v1372
  %v1444 = vpop.permute.xlu0 %1443
  %1447 = vset.pattern.permute.xlu0 0
  %1448 = vperm.xlu0 %1447, %v1373
  %v1449 = vpop.permute.xlu0 %1448
  %v1455 = vunpack.c.l.b16 %v1366
  %v1456 = vunpack.c.h.b16 %v1366
  %v1457 = vunpack.c.l.b16 %v1367
  %v1458 = vunpack.c.h.b16 %v1367
  %v1459 = vunpack.c.l.b16 %v1368
  %v1460 = vunpack.c.h.b16 %v1368
  %v1461 = vunpack.c.l.b16 %v1369
  %v1462 = vunpack.c.h.b16 %v1369
  %v1463 = vpack.c.b16 %v1457, %v1455
  %v1464 = vpack.c.b16 %v1458, %v1456
  %v1465 = vpack.c.b16 %v1461, %v1459
  %v1466 = vpack.c.b16 %v1462, %v1460
  %v1470 = vsel %vm830, %v1464, 0
  %v1473 = vsel %vm830, %v1466, 0
  %1475 = vmatprep.subr.bf16.mxu0 0
  %1476 = vmatpush1.bf16.msra.mxu0 %v1422
  %1477 = vmatprep.subr.bf16.mxu0 0
  %1478 = vmatpush1.bf16.msra.mxu0 %v1423
  %1479 = vmatprep.subr.bf16.mxu0 0
  %1480 = vmatpush1.bf16.msra.mxu0 %v1424
  %1481 = vmatprep.subr.bf16.mxu0 0
  %1482 = vmatpush1.bf16.msra.mxu0 %v1425
  %1483 = vmatprep.subr.bf16.mxu0 0
  %1484 = vmatpush1.bf16.msra.mxu0 %v1426
  %1485 = vmatprep.subr.bf16.mxu0 0
  %1486 = vmatpush1.bf16.msra.mxu0 %v1427
  %1487 = vmatprep.subr.bf16.mxu0 0
  %1488 = vmatpush1.bf16.msra.mxu0 %v1428
  %1489 = vmatprep.subr.bf16.mxu0 0
  %1490 = vmatpush1.bf16.msra.mxu0 %v1429
  %1491 = vmatprep.subr.bf16.mxu0 0
  %1492 = vmatpush1.bf16.msra.mxu0 %v1430
  %1493 = vmatprep.subr.bf16.mxu0 0
  %1494 = vmatpush1.bf16.msra.mxu0 0
  %1495 = vmatprep.subr.bf16.mxu0 0
  %1496 = vmatpush1.bf16.msra.mxu0 0
  %1497 = vmatprep.subr.bf16.mxu0 0
  %1498 = vmatpush1.bf16.msra.mxu0 0
  %1499 = vmatprep.subr.bf16.mxu0 0
  %1500 = vmatpush1.bf16.msra.mxu0 0
  %1501 = vmatprep.subr.bf16.mxu0 0
  %1502 = vmatpush1.bf16.msra.mxu0 0
  %1503 = vmatprep.subr.bf16.mxu0 0
  %1504 = vmatpush1.bf16.msra.mxu0 0
  %1505 = vmatprep.subr.bf16.mxu0 0
  %1506 = vmatpush1.bf16.msra.mxu0 0
  %1507 = vmatprep.mubr.bf16.mxu0 %v1470
  %1508 = vmatmul.mubr.bf16.gmra.mrb[0].mxu0 %v1463
  %v1509 = vpop.f32.mrb[0].mxu0
  %v1510 = vadd.f32 %v1434, %v1509
  %v1511 = vpop.f32.mrb[0].mxu0
  %v1512 = vpop.f32.mrb[0].mxu0
  %v1513 = vadd.f32 %v1439, %v1512
  %v1514 = vpop.f32.mrb[0].mxu0
  %1515 = vmatprep.mubr.bf16.mxu0 %v1473
  %1516 = vmatmul.mubr.bf16.gmra.mrb[0].mxu0 %v1465
  %v1517 = vpop.f32.mrb[0].mxu0
  %v1518 = vadd.f32 %v1444, %v1517
  %v1519 = vpop.f32.mrb[0].mxu0
  %v1520 = vpop.f32.mrb[0].mxu0
  %v1521 = vadd.f32 %v1449, %v1520
  %v1522 = vpop.f32.mrb[0].mxu0
  %1523 = vdwg.mxu0
  %v1524 = vmax.f32 %v1510, 0.0
  %v1525 = vmax.f32 %v1513, 0.0
  %v1526 = vmax.f32 %v1518, 0.0
  %v1527 = vmax.f32 %v1521, 0.0
  %v1528 = vld [vmem:[%s11] sm:$0xff]
  %v1529 = vld [vmem:[%s11 + $0x8] sm:$0xf]
  %v1530 = vld [vmem:[%s11 + $0xc] sm:$0xff]
  %v1531 = vld [vmem:[%s11 + $0x14] sm:$0xf]
  %v1532 = vld [vmem:[%s11 + $0x18] sm:$0xff]
  %v1533 = vld [vmem:[%s11 + $0x20] sm:$0xf]
  %v1534 = vld [vmem:[%s11 + $0x24] sm:$0xff]
  %v1535 = vld [vmem:[%s11 + $0x2c] sm:$0xf]
  %v1536 = vld [vmem:[%s12] sm:$0xff]
  %v1537 = vld [vmem:[%s12 + $0x8] sm:$0xff]
  %v1538 = vld [vmem:[%s12 + $0x10] sm:$0xff]
  %v1539 = vld [vmem:[%s12 + $0x18] sm:$0xff]
  %1540 = vrot.lane.b32.xlu0 %v1524, 9
  %v1541 = vpop.permute.xlu0 %1540
  %1542 = vrot.lane.b32.xlu0 %v1525, 9
  %v1543 = vpop.permute.xlu0 %1542
  %1544 = vrot.lane.b32.xlu0 %v1526, 9
  %v1545 = vpop.permute.xlu0 %1544
  %1546 = vrot.lane.b32.xlu0 %v1527, 9
  %v1547 = vpop.permute.xlu0 %1546
  %v1548 = vmul.f32 %v1541, %v207
  %v1549 = vmul.f32 %v1543, %v207
  %v1550 = vmul.f32 %v1545, %v207
  %v1551 = vmul.f32 %v1547, %v207
  %1552 = vrot.lane.b32.xlu0 %v1524, 8
  %v1553 = vpop.permute.xlu0 %1552
  %1554 = vrot.lane.b32.xlu0 %v1525, 8
  %v1555 = vpop.permute.xlu0 %1554
  %1556 = vrot.lane.b32.xlu0 %v1526, 8
  %v1557 = vpop.permute.xlu0 %1556
  %1558 = vrot.lane.b32.xlu0 %v1527, 8
  %v1559 = vpop.permute.xlu0 %1558
  %v1560 = vmul.f32 %v1553, %v209
  %v1561 = vmul.f32 %v1555, %v209
  %v1562 = vmul.f32 %v1557, %v209
  %v1563 = vmul.f32 %v1559, %v209
  %1564 = vrot.lane.b32.xlu0 %v1524, 7
  %v1565 = vpop.permute.xlu0 %1564
  %1566 = vrot.lane.b32.xlu0 %v1525, 7
  %v1567 = vpop.permute.xlu0 %1566
  %1568 = vrot.lane.b32.xlu0 %v1526, 7
  %v1569 = vpop.permute.xlu0 %1568
  %1570 = vrot.lane.b32.xlu0 %v1527, 7
  %v1571 = vpop.permute.xlu0 %1570
  %v1572 = vmul.f32 %v1565, %v212
  %v1573 = vmul.f32 %v1567, %v212
  %v1574 = vmul.f32 %v1569, %v212
  %v1575 = vmul.f32 %v1571, %v212
  %1576 = vrot.lane.b32.xlu0 %v1524, 1
  %v1577 = vpop.permute.xlu0 %1576
  %1578 = vrot.lane.b32.xlu0 %v1525, 1
  %v1579 = vpop.permute.xlu0 %1578
  %1580 = vrot.lane.b32.xlu0 %v1526, 1
  %v1581 = vpop.permute.xlu0 %1580
  %1582 = vrot.lane.b32.xlu0 %v1527, 1
  %v1583 = vpop.permute.xlu0 %1582
  %v1584 = vmul.f32 %v1577, %v214
  %v1585 = vmul.f32 %v1579, %v214
  %v1586 = vmul.f32 %v1581, %v214
  %v1587 = vmul.f32 %v1583, %v214
  %1588 = vrot.lane.b32.xlu0 %v1524, 127
  %v1589 = vpop.permute.xlu0 %1588
  %1590 = vrot.lane.b32.xlu0 %v1525, 127
  %v1591 = vpop.permute.xlu0 %1590
  %1592 = vrot.lane.b32.xlu0 %v1526, 127
  %v1593 = vpop.permute.xlu0 %1592
  %1594 = vrot.lane.b32.xlu0 %v1527, 127
  %v1595 = vpop.permute.xlu0 %1594
  %v1596 = vmul.f32 %v1589, %v216
  %v1597 = vmul.f32 %v1591, %v216
  %v1598 = vmul.f32 %v1593, %v216
  %v1599 = vmul.f32 %v1595, %v216
  %1600 = vrot.lane.b32.xlu0 %v1524, 121
  %v1601 = vpop.permute.xlu0 %1600
  %1602 = vrot.lane.b32.xlu0 %v1525, 121
  %v1603 = vpop.permute.xlu0 %1602
  %1604 = vrot.lane.b32.xlu0 %v1526, 121
  %v1605 = vpop.permute.xlu0 %1604
  %1606 = vrot.lane.b32.xlu0 %v1527, 121
  %v1607 = vpop.permute.xlu0 %1606
  %v1608 = vmul.f32 %v1601, %v219
  %v1609 = vmul.f32 %v1603, %v219
  %v1610 = vmul.f32 %v1605, %v219
  %v1611 = vmul.f32 %v1607, %v219
  %1612 = vrot.lane.b32.xlu0 %v1524, 120
  %v1613 = vpop.permute.xlu0 %1612
  %1614 = vrot.lane.b32.xlu0 %v1525, 120
  %v1615 = vpop.permute.xlu0 %1614
  %1616 = vrot.lane.b32.xlu0 %v1526, 120
  %v1617 = vpop.permute.xlu0 %1616
  %1618 = vrot.lane.b32.xlu0 %v1527, 120
  %v1619 = vpop.permute.xlu0 %1618
  %v1620 = vmul.f32 %v1613, %v221
  %v1621 = vmul.f32 %v1615, %v221
  %v1622 = vmul.f32 %v1617, %v221
  %v1623 = vmul.f32 %v1619, %v221
  %1624 = vrot.lane.b32.xlu0 %v1524, 119
  %v1625 = vpop.permute.xlu0 %1624
  %1626 = vrot.lane.b32.xlu0 %v1525, 119
  %v1627 = vpop.permute.xlu0 %1626
  %1628 = vrot.lane.b32.xlu0 %v1526, 119
  %v1629 = vpop.permute.xlu0 %1628
  %1630 = vrot.lane.b32.xlu0 %v1527, 119
  %v1631 = vpop.permute.xlu0 %1630
  %v1632 = vmul.f32 %v1625, %v224
  %v1633 = vmul.f32 %v1627, %v224
  %v1634 = vmul.f32 %v1629, %v224
  %v1635 = vmul.f32 %v1631, %v224
  %v1636 = vpack.c.bf16 %v1549, %v1548
  %v1637 = vpack.c.bf16 %v1551, %v1550
  %v1638 = vpack.c.bf16 %v1561, %v1560
  %v1639 = vpack.c.bf16 %v1563, %v1562
  %v1640 = vpack.c.bf16 %v1573, %v1572
  %v1641 = vpack.c.bf16 %v1575, %v1574
  %v1642 = vpack.c.bf16 %v1585, %v1584
  %v1643 = vpack.c.bf16 %v1587, %v1586
  %v1644 = vpack.c.bf16 %v1525, %v1524
  %v1645 = vpack.c.bf16 %v1527, %v1526
  %v1646 = vpack.c.bf16 %v1597, %v1596
  %v1647 = vpack.c.bf16 %v1599, %v1598
  %v1648 = vpack.c.bf16 %v1609, %v1608
  %v1649 = vpack.c.bf16 %v1611, %v1610
  %v1650 = vpack.c.bf16 %v1621, %v1620
  %v1651 = vpack.c.bf16 %v1623, %v1622
  %v1652 = vpack.c.bf16 %v1633, %v1632
  %v1653 = vpack.c.bf16 %v1635, %v1634
  %1655 = vset.pattern.permute.xlu0 0
  %1656 = vperm.xlu0 %1655, %v1536
  %v1657 = vpop.permute.xlu0 %1656
  %1660 = vset.pattern.permute.xlu0 0
  %1661 = vperm.xlu0 %1660, %v1537
  %v1662 = vpop.permute.xlu0 %1661
  %1665 = vset.pattern.permute.xlu0 0
  %1666 = vperm.xlu0 %1665, %v1538
  %v1667 = vpop.permute.xlu0 %1666
  %1670 = vset.pattern.permute.xlu0 0
  %1671 = vperm.xlu0 %1670, %v1539
  %v1672 = vpop.permute.xlu0 %1671
  %v1682 = vunpack.c.l.b16 %v1528
  %v1683 = vunpack.c.h.b16 %v1528
  %v1684 = vunpack.c.l.b16 %v1529
  %v1685 = vunpack.c.l.b16 %v1530
  %v1686 = vunpack.c.h.b16 %v1530
  %v1687 = vunpack.c.l.b16 %v1531
  %v1688 = vunpack.c.l.b16 %v1532
  %v1689 = vunpack.c.h.b16 %v1532
  %v1690 = vunpack.c.l.b16 %v1533
  %v1691 = vunpack.c.l.b16 %v1534
  %v1692 = vunpack.c.h.b16 %v1534
  %v1693 = vunpack.c.l.b16 %v1535
  %v1694 = vpack.c.b16 %v1685, %v1682
  %v1695 = vpack.c.b16 %v1686, %v1683
  %v1696 = vpack.c.b16 %v1687, %v1684
  %v1697 = vpack.c.b16 %v1691, %v1688
  %v1698 = vpack.c.b16 %v1692, %v1689
  %v1699 = vpack.c.b16 %v1693, %v1690
  %vm1704 = vcmask 261120
  %v1706 = vsel %vm1704, %v1696, 0
  %v1709 = vsel %vm1704, %v1699, 0
  %1711 = vmatprep.subr.bf16.mxu0 0
  %1712 = vmatpush1.bf16.msra.mxu0 %v1636
  %1713 = vmatprep.subr.bf16.mxu0 0
  %1714 = vmatpush1.bf16.msra.mxu0 %v1637
  %1715 = vmatprep.subr.bf16.mxu0 0
  %1716 = vmatpush1.bf16.msra.mxu0 %v1638
  %1717 = vmatprep.subr.bf16.mxu0 0
  %1718 = vmatpush1.bf16.msra.mxu0 %v1639
  %1719 = vmatprep.subr.bf16.mxu0 0
  %1720 = vmatpush1.bf16.msra.mxu0 %v1640
  %1721 = vmatprep.subr.bf16.mxu0 0
  %1722 = vmatpush1.bf16.msra.mxu0 %v1641
  %1723 = vmatprep.subr.bf16.mxu0 0
  %1724 = vmatpush1.bf16.msra.mxu0 %v1642
  %1725 = vmatprep.subr.bf16.mxu0 0
  %1726 = vmatpush1.bf16.msra.mxu0 %v1643
  %1727 = vmatprep.subr.bf16.mxu0 0
  %1728 = vmatpush1.bf16.msra.mxu0 %v1644
  %1729 = vmatprep.subr.bf16.mxu0 0
  %1730 = vmatpush1.bf16.msra.mxu0 %v1645
  %1731 = vmatprep.subr.bf16.mxu0 0
  %1732 = vmatpush1.bf16.msra.mxu0 %v1646
  %1733 = vmatprep.subr.bf16.mxu0 0
  %1734 = vmatpush1.bf16.msra.mxu0 %v1647
  %1735 = vmatprep.subr.bf16.mxu0 0
  %1736 = vmatpush1.bf16.msra.mxu0 %v1648
  %1737 = vmatprep.subr.bf16.mxu0 0
  %1738 = vmatpush1.bf16.msra.mxu0 %v1649
  %1739 = vmatprep.subr.bf16.mxu0 0
  %1740 = vmatpush1.bf16.msra.mxu0 %v1650
  %1741 = vmatprep.subr.bf16.mxu0 0
  %1742 = vmatpush1.bf16.msra.mxu0 %v1651
  %1743 = vmatprep.mubr.bf16.mxu0 %v1695
  %1744 = vmatmul.mubr.bf16.gmra.mrb[0].mxu0 %v1694
  %v1745 = vpop.f32.mrb[0].mxu0
  %v1746 = vadd.f32 %v1657, %v1745
  %v1747 = vpop.f32.mrb[0].mxu0
  %v1748 = vpop.f32.mrb[0].mxu0
  %v1749 = vadd.f32 %v1662, %v1748
  %v1750 = vpop.f32.mrb[0].mxu0
  %1751 = vmatprep.mubr.bf16.mxu0 %v1698
  %1752 = vmatmul.mubr.bf16.gmra.mrb[0].mxu0 %v1697
  %v1753 = vpop.f32.mrb[0].mxu0
  %v1754 = vadd.f32 %v1667, %v1753
  %v1755 = vpop.f32.mrb[0].mxu0
  %v1756 = vpop.f32.mrb[0].mxu0
  %v1757 = vadd.f32 %v1672, %v1756
  %v1758 = vpop.f32.mrb[0].mxu0
  %1759 = vdwg.mxu0
  %1760 = vmatprep.subr.bf16.mxu0 0
  %1761 = vmatpush1.bf16.msra.mxu0 %v1652
  %1762 = vmatprep.subr.bf16.mxu0 0
  %1763 = vmatpush1.bf16.msra.mxu0 %v1653
  %1764 = vmatprep.subr.bf16.mxu0 0
  %1765 = vmatpush1.bf16.msra.mxu0 0
  %1766 = vmatprep.subr.bf16.mxu0 0
  %1767 = vmatpush1.bf16.msra.mxu0 0
  %1768 = vmatprep.subr.bf16.mxu0 0
  %1769 = vmatpush1.bf16.msra.mxu0 0
  %1770 = vmatprep.subr.bf16.mxu0 0
  %1771 = vmatpush1.bf16.msra.mxu0 0
  %1772 = vmatprep.subr.bf16.mxu0 0
  %1773 = vmatpush1.bf16.msra.mxu0 0
  %1774 = vmatprep.subr.bf16.mxu0 0
  %1775 = vmatpush1.bf16.msra.mxu0 0
  %1776 = vmatprep.subr.bf16.mxu0 0
  %1777 = vmatpush1.bf16.msra.mxu0 0
  %1778 = vmatprep.subr.bf16.mxu0 0
  %1779 = vmatpush1.bf16.msra.mxu0 0
  %1780 = vmatprep.subr.bf16.mxu0 0
  %1781 = vmatpush1.bf16.msra.mxu0 0
  %1782 = vmatprep.subr.bf16.mxu0 0
  %1783 = vmatpush1.bf16.msra.mxu0 0
  %1784 = vmatprep.subr.bf16.mxu0 0
  %1785 = vmatpush1.bf16.msra.mxu0 0
  %1786 = vmatprep.subr.bf16.mxu0 0
  %1787 = vmatpush1.bf16.msra.mxu0 0
  %1788 = vmatprep.subr.bf16.mxu0 0
  %1789 = vmatpush1.bf16.msra.mxu0 0
  %1790 = vmatprep.subr.bf16.mxu0 0
  %1791 = vmatpush1.bf16.msra.mxu0 0
  %1792 = vmatprep.mubr.bf16.mxu0 0
  %1793 = vmatmul.mubr.bf16.gmra.mrb[0].mxu0 %v1706
  %v1794 = vpop.f32.mrb[0].mxu0
  %v1795 = vadd.f32 %v1746, %v1794
  %v1796 = vpop.f32.mrb[0].mxu0
  %v1797 = vpop.f32.mrb[0].mxu0
  %v1798 = vadd.f32 %v1749, %v1797
  %v1799 = vpop.f32.mrb[0].mxu0
  %1800 = vmatprep.mubr.bf16.mxu0 0
  %1801 = vmatmul.mubr.bf16.gmra.mrb[0].mxu0 %v1709
  %v1802 = vpop.f32.mrb[0].mxu0
  %v1803 = vadd.f32 %v1754, %v1802
  %v1804 = vpop.f32.mrb[0].mxu0
  %v1805 = vpop.f32.mrb[0].mxu0
  %v1806 = vadd.f32 %v1757, %v1805
  %v1807 = vpop.f32.mrb[0].mxu0
  %1808 = vdwg.mxu0
  %v1809 = vmax.f32 %v1795, 0.0
  %v1810 = vmax.f32 %v1798, 0.0
  %v1811 = vmax.f32 %v1803, 0.0
  %v1812 = vmax.f32 %v1806, 0.0
  %v1813 = vpack.c.bf16 %v1810, %v1809
  %v1814 = vpack.c.bf16 %v1812, %v1811
  %v1815 = vld [vmem:[%s2] sm:$0xff]
  %v1816 = vld [vmem:[%s2 + $0x8] sm:$0xff]
  %v1817 = vld [vmem:[%s2 + $0x10] sm:$0xff]
  %v1818 = vld [vmem:[%s2 + $0x18] sm:$0xff]
  %v1819 = vld [vmem:[%s2 + $0x20] sm:$0xff]
  %v1820 = vld [vmem:[%s2 + $0x28] sm:$0xff]
  %v1821 = vld [vmem:[%s2 + $0x30] sm:$0xff]
  %v1822 = vld [vmem:[%s2 + $0x38] sm:$0xff]
  %v1823 = vld [vmem:[%s2 + $0x40] sm:$0xff]
  %v1824 = vld [vmem:[%s2 + $0x48] sm:$0xff]
  %v1825 = vld [vmem:[%s2 + $0x50] sm:$0xff]
  %v1826 = vld [vmem:[%s2 + $0x58] sm:$0xff]
  %v1827 = vld [vmem:[%s2 + $0x60] sm:$0xff]
  %v1828 = vld [vmem:[%s2 + $0x68] sm:$0xff]
  %v1829 = vld [vmem:[%s2 + $0x70] sm:$0xff]
  %v1830 = vld [vmem:[%s2 + $0x78] sm:$0xff]
  %v1831 = vld [vmem:[%s2 + $0x80] sm:$0xff]
  %v1832 = vld [vmem:[%s2 + $0x88] sm:$0xff]
  %v1833 = vld [vmem:[%s2 + $0x90] sm:$0xff]
  %v1834 = vld [vmem:[%s2 + $0x98] sm:$0xff]
  %v1835 = vld [vmem:[%s2 + $0xa0] sm:$0xff]
  %v1836 = vld [vmem:[%s2 + $0xa8] sm:$0xff]
  %v1837 = vld [vmem:[%s2 + $0xb0] sm:$0xff]
  %v1838 = vld [vmem:[%s2 + $0xb8] sm:$0xff]
  %v1839 = vld [vmem:[%s2 + $0xc0] sm:$0xff]
  %v1840 = vld [vmem:[%s2 + $0xc8] sm:$0xff]
  %v1841 = vld [vmem:[%s2 + $0xd0] sm:$0xff]
  %v1842 = vld [vmem:[%s2 + $0xd8] sm:$0xff]
  %v1843 = vld [vmem:[%s2 + $0xe0] sm:$0xff]
  %v1844 = vld [vmem:[%s2 + $0xe8] sm:$0xff]
  %v1845 = vld [vmem:[%s2 + $0xf0] sm:$0xff]
  %v1846 = vld [vmem:[%s2 + $0xf8] sm:$0xff]
  %v1879 = vunpack.c.l.b16 %v1815
  %v1880 = vunpack.c.h.b16 %v1815
  %v1881 = vunpack.c.l.b16 %v1816
  %v1882 = vunpack.c.h.b16 %v1816
  %v1883 = vunpack.c.l.b16 %v1817
  %v1884 = vunpack.c.h.b16 %v1817
  %v1885 = vunpack.c.l.b16 %v1818
  %v1886 = vunpack.c.h.b16 %v1818
  %v1887 = vunpack.c.l.b16 %v1819
  %v1888 = vunpack.c.h.b16 %v1819
  %v1889 = vunpack.c.l.b16 %v1820
  %v1890 = vunpack.c.h.b16 %v1820
  %v1891 = vunpack.c.l.b16 %v1821
  %v1892 = vunpack.c.h.b16 %v1821
  %v1893 = vunpack.c.l.b16 %v1822
  %v1894 = vunpack.c.h.b16 %v1822
  %v1895 = vunpack.c.l.b16 %v1823
  %v1896 = vunpack.c.h.b16 %v1823
  %v1897 = vunpack.c.l.b16 %v1824
  %v1898 = vunpack.c.h.b16 %v1824
  %v1899 = vunpack.c.l.b16 %v1825
  %v1900 = vunpack.c.h.b16 %v1825
  %v1901 = vunpack.c.l.b16 %v1826
  %v1902 = vunpack.c.h.b16 %v1826
  %v1903 = vunpack.c.l.b16 %v1827
  %v1904 = vunpack.c.h.b16 %v1827
  %v1905 = vunpack.c.l.b16 %v1828
  %v1906 = vunpack.c.h.b16 %v1828
  %v1907 = vunpack.c.l.b16 %v1829
  %v1908 = vunpack.c.h.b16 %v1829
  %v1909 = vunpack.c.l.b16 %v1830
  %v1910 = vunpack.c.h.b16 %v1830
  %v1911 = vunpack.c.l.b16 %v1831
  %v1912 = vunpack.c.h.b16 %v1831
  %v1913 = vunpack.c.l.b16 %v1832
  %v1914 = vunpack.c.h.b16 %v1832
  %v1915 = vunpack.c.l.b16 %v1833
  %v1916 = vunpack.c.h.b16 %v1833
  %v1917 = vunpack.c.l.b16 %v1834
  %v1918 = vunpack.c.h.b16 %v1834
  %v1919 = vunpack.c.l.b16 %v1835
  %v1920 = vunpack.c.h.b16 %v1835
  %v1921 = vunpack.c.l.b16 %v1836
  %v1922 = vunpack.c.h.b16 %v1836
  %v1923 = vunpack.c.l.b16 %v1837
  %v1924 = vunpack.c.h.b16 %v1837
  %v1925 = vunpack.c.l.b16 %v1838
  %v1926 = vunpack.c.h.b16 %v1838
  %v1927 = vunpack.c.l.b16 %v1839
  %v1928 = vunpack.c.h.b16 %v1839
  %v1929 = vunpack.c.l.b16 %v1840
  %v1930 = vunpack.c.h.b16 %v1840
  %v1931 = vunpack.c.l.b16 %v1841
  %v1932 = vunpack.c.h.b16 %v1841
  %v1933 = vunpack.c.l.b16 %v1842
  %v1934 = vunpack.c.h.b16 %v1842
  %v1935 = vunpack.c.l.b16 %v1843
  %v1936 = vunpack.c.h.b16 %v1843
  %v1937 = vunpack.c.l.b16 %v1844
  %v1938 = vunpack.c.h.b16 %v1844
  %v1939 = vunpack.c.l.b16 %v1845
  %v1940 = vunpack.c.h.b16 %v1845
  %v1941 = vunpack.c.l.b16 %v1846
  %v1942 = vunpack.c.h.b16 %v1846
  %v1943 = vpack.c.b16 %v1883, %v1879
  %v1944 = vpack.c.b16 %v1884, %v1880
  %v1945 = vpack.c.b16 %v1885, %v1881
  %v1946 = vpack.c.b16 %v1886, %v1882
  %v1947 = vpack.c.b16 %v1891, %v1887
  %v1948 = vpack.c.b16 %v1892, %v1888
  %v1949 = vpack.c.b16 %v1893, %v1889
  %v1950 = vpack.c.b16 %v1894, %v1890
  %v1951 = vpack.c.b16 %v1899, %v1895
  %v1952 = vpack.c.b16 %v1900, %v1896
  %v1953 = vpack.c.b16 %v1901, %v1897
  %v1954 = vpack.c.b16 %v1902, %v1898
  %v1955 = vpack.c.b16 %v1907, %v1903
  %v1956 = vpack.c.b16 %v1908, %v1904
  %v1957 = vpack.c.b16 %v1909, %v1905
  %v1958 = vpack.c.b16 %v1910, %v1906
  %v1959 = vpack.c.b16 %v1915, %v1911
  %v1960 = vpack.c.b16 %v1916, %v1912
  %v1961 = vpack.c.b16 %v1917, %v1913
  %v1962 = vpack.c.b16 %v1918, %v1914
  %v1963 = vpack.c.b16 %v1923, %v1919
  %v1964 = vpack.c.b16 %v1924, %v1920
  %v1965 = vpack.c.b16 %v1925, %v1921
  %v1966 = vpack.c.b16 %v1926, %v1922
  %v1967 = vpack.c.b16 %v1931, %v1927
  %v1968 = vpack.c.b16 %v1932, %v1928
  %v1969 = vpack.c.b16 %v1933, %v1929
  %v1970 = vpack.c.b16 %v1934, %v1930
  %v1971 = vpack.c.b16 %v1939, %v1935
  %v1972 = vpack.c.b16 %v1940, %v1936
  %v1973 = vpack.c.b16 %v1941, %v1937
  %v1974 = vpack.c.b16 %v1942, %v1938
  %2007 = vmatprep.subr.bf16.mxu0 %v1944
  %2008 = vmatpush1.bf16.msra.mxu0 %v1943
  %2009 = vmatprep.subr.bf16.mxu0 %v1948
  %2010 = vmatpush1.bf16.msra.mxu0 %v1947
  %2011 = vmatprep.subr.bf16.mxu0 %v1952
  %2012 = vmatpush1.bf16.msra.mxu0 %v1951
  %2013 = vmatprep.subr.bf16.mxu0 %v1956
  %2014 = vmatpush1.bf16.msra.mxu0 %v1955
  %2015 = vmatprep.subr.bf16.mxu0 %v1960
  %2016 = vmatpush1.bf16.msra.mxu0 %v1959
  %2017 = vmatprep.subr.bf16.mxu0 %v1964
  %2018 = vmatpush1.bf16.msra.mxu0 %v1963
  %2019 = vmatprep.subr.bf16.mxu0 %v1968
  %2020 = vmatpush1.bf16.msra.mxu0 %v1967
  %2021 = vmatprep.subr.bf16.mxu0 %v1972
  %2022 = vmatpush1.bf16.msra.mxu0 %v1971
  %2023 = vmatprep.subr.bf16.mxu0 0
  %2024 = vmatpush1.bf16.msra.mxu0 0
  %2025 = vmatprep.subr.bf16.mxu0 0
  %2026 = vmatpush1.bf16.msra.mxu0 0
  %2027 = vmatprep.subr.bf16.mxu0 0
  %2028 = vmatpush1.bf16.msra.mxu0 0
  %2029 = vmatprep.subr.bf16.mxu0 0
  %2030 = vmatpush1.bf16.msra.mxu0 0
  %2031 = vmatprep.subr.bf16.mxu0 0
  %2032 = vmatpush1.bf16.msra.mxu0 0
  %2033 = vmatprep.subr.bf16.mxu0 0
  %2034 = vmatpush1.bf16.msra.mxu0 0
  %2035 = vmatprep.subr.bf16.mxu0 0
  %2036 = vmatpush1.bf16.msra.mxu0 0
  %2037 = vmatprep.subr.bf16.mxu0 0
  %2038 = vmatpush1.bf16.msra.mxu0 0
  %2039 = vmatprep.mubr.bf16.mxu0 0
  %2040 = vmatmul.mubr.bf16.gmra.mrb[0].mxu0 %v1813
  %v2041 = vpop.f32.mrb[0].mxu0
  %v2042 = vadd.f32 0.0, %v2041
  %v2043 = vpop.f32.mrb[0].mxu0
  %v2044 = vadd.f32 0.0, %v2043
  %v2045 = vpop.f32.mrb[0].mxu0
  %v2046 = vadd.f32 0.0, %v2045
  %v2047 = vpop.f32.mrb[0].mxu0
  %v2048 = vadd.f32 0.0, %v2047
  %2049 = vmatprep.mubr.bf16.mxu0 0
  %2050 = vmatmul.mubr.bf16.gmra.mrb[0].mxu0 %v1814
  %v2051 = vpop.f32.mrb[0].mxu0
  %v2052 = vadd.f32 0.0, %v2051
  %v2053 = vpop.f32.mrb[0].mxu0
  %v2054 = vadd.f32 0.0, %v2053
  %v2055 = vpop.f32.mrb[0].mxu0
  %v2056 = vadd.f32 0.0, %v2055
  %v2057 = vpop.f32.mrb[0].mxu0
  %v2058 = vadd.f32 0.0, %v2057
  %2059 = vdwg.mxu0
  %2060 = vmatprep.subr.bf16.mxu0 %v1946
  %2061 = vmatpush1.bf16.msra.mxu0 %v1945
  %2062 = vmatprep.subr.bf16.mxu0 %v1950
  %2063 = vmatpush1.bf16.msra.mxu0 %v1949
  %2064 = vmatprep.subr.bf16.mxu0 %v1954
  %2065 = vmatpush1.bf16.msra.mxu0 %v1953
  %2066 = vmatprep.subr.bf16.mxu0 %v1958
  %2067 = vmatpush1.bf16.msra.mxu0 %v1957
  %2068 = vmatprep.subr.bf16.mxu0 %v1962
  %2069 = vmatpush1.bf16.msra.mxu0 %v1961
  %2070 = vmatprep.subr.bf16.mxu0 %v1966
  %2071 = vmatpush1.bf16.msra.mxu0 %v1965
  %2072 = vmatprep.subr.bf16.mxu0 %v1970
  %2073 = vmatpush1.bf16.msra.mxu0 %v1969
  %2074 = vmatprep.subr.bf16.mxu0 %v1974
  %2075 = vmatpush1.bf16.msra.mxu0 %v1973
  %2076 = vmatprep.subr.bf16.mxu0 0
  %2077 = vmatpush1.bf16.msra.mxu0 0
  %2078 = vmatprep.subr.bf16.mxu0 0
  %2079 = vmatpush1.bf16.msra.mxu0 0
  %2080 = vmatprep.subr.bf16.mxu0 0
  %2081 = vmatpush1.bf16.msra.mxu0 0
  %2082 = vmatprep.subr.bf16.mxu0 0
  %2083 = vmatpush1.bf16.msra.mxu0 0
  %2084 = vmatprep.subr.bf16.mxu0 0
  %2085 = vmatpush1.bf16.msra.mxu0 0
  %2086 = vmatprep.subr.bf16.mxu0 0
  %2087 = vmatpush1.bf16.msra.mxu0 0
  %2088 = vmatprep.subr.bf16.mxu0 0
  %2089 = vmatpush1.bf16.msra.mxu0 0
  %2090 = vmatprep.subr.bf16.mxu0 0
  %2091 = vmatpush1.bf16.msra.mxu0 0
  %2092 = vmatprep.mubr.bf16.mxu0 0
  %2093 = vmatmul.mubr.bf16.gmra.mrb[0].mxu0 %v1813
  %v2094 = vpop.f32.mrb[0].mxu0
  %v2095 = vadd.f32 0.0, %v2094
  %v2096 = vpop.f32.mrb[0].mxu0
  %v2097 = vadd.f32 0.0, %v2096
  %v2098 = vpop.f32.mrb[0].mxu0
  %v2099 = vadd.f32 0.0, %v2098
  %v2100 = vpop.f32.mrb[0].mxu0
  %v2101 = vadd.f32 0.0, %v2100
  %2102 = vmatprep.mubr.bf16.mxu0 0
  %2103 = vmatmul.mubr.bf16.gmra.mrb[0].mxu0 %v1814
  %v2104 = vpop.f32.mrb[0].mxu0
  %v2105 = vadd.f32 0.0, %v2104
  %v2106 = vpop.f32.mrb[0].mxu0
  %v2107 = vadd.f32 0.0, %v2106
  %v2108 = vpop.f32.mrb[0].mxu0
  %v2109 = vadd.f32 0.0, %v2108
  %v2110 = vpop.f32.mrb[0].mxu0
  %v2111 = vadd.f32 0.0, %v2110
  %2112 = vdwg.mxu0
  %v2113 = vld [vmem:[%s13] sm:$0xff]
  %v2114 = vld [vmem:[%s13 + $0x8] sm:$0xff]
  %v2115 = vld [vmem:[%s13 + $0x10] sm:$0xff]
  %v2116 = vld [vmem:[%s13 + $0x18] sm:$0xff]
  %v2117 = vld [vmem:[%s14] sm:$0xff]
  %v2118 = vld [vmem:[%s14 + $0x8] sm:$0xff]
  %2119 = vrot.lane.b32.xlu0 %v2042, 17
  %v2120 = vpop.permute.xlu0 %2119
  %2121 = vrot.lane.b32.xlu0 %v2046, 17
  %v2122 = vpop.permute.xlu0 %2121
  %2123 = vrot.lane.b32.xlu0 %v2052, 17
  %v2124 = vpop.permute.xlu0 %2123
  %2125 = vrot.lane.b32.xlu0 %v2056, 17
  %v2126 = vpop.permute.xlu0 %2125
  %2127 = vrot.lane.b32.xlu0 %v920, 17
  %v2128 = vpop.permute.xlu0 %2127
  %2129 = vrot.lane.b32.xlu0 %v924, 17
  %v2130 = vpop.permute.xlu0 %2129
  %2131 = vrot.lane.b32.xlu0 %v2044, 17
  %v2132 = vpop.permute.xlu0 %2131
  %2133 = vrot.lane.b32.xlu0 %v2048, 17
  %v2134 = vpop.permute.xlu0 %2133
  %2135 = vrot.lane.b32.xlu0 %v2054, 17
  %v2136 = vpop.permute.xlu0 %2135
  %2137 = vrot.lane.b32.xlu0 %v2058, 17
  %v2138 = vpop.permute.xlu0 %2137
  %2139 = vrot.lane.b32.xlu0 %v921, 17
  %v2140 = vpop.permute.xlu0 %2139
  %2141 = vrot.lane.b32.xlu0 %v925, 17
  %v2142 = vpop.permute.xlu0 %2141
  %2143 = vrot.lane.b32.xlu0 %v2095, 17
  %v2144 = vpop.permute.xlu0 %2143
  %2145 = vrot.lane.b32.xlu0 %v2099, 17
  %v2146 = vpop.permute.xlu0 %2145
  %2147 = vrot.lane.b32.xlu0 %v2105, 17
  %v2148 = vpop.permute.xlu0 %2147
  %2149 = vrot.lane.b32.xlu0 %v2109, 17
  %v2150 = vpop.permute.xlu0 %2149
  %2151 = vrot.lane.b32.xlu0 %v922, 17
  %v2152 = vpop.permute.xlu0 %2151
  %2153 = vrot.lane.b32.xlu0 %v926, 17
  %v2154 = vpop.permute.xlu0 %2153
  %2155 = vrot.lane.b32.xlu0 %v2097, 17
  %v2156 = vpop.permute.xlu0 %2155
  %2157 = vrot.lane.b32.xlu0 %v2101, 17
  %v2158 = vpop.permute.xlu0 %2157
  %2159 = vrot.lane.b32.xlu0 %v2107, 17
  %v2160 = vpop.permute.xlu0 %2159
  %2161 = vrot.lane.b32.xlu0 %v2111, 17
  %v2162 = vpop.permute.xlu0 %2161
  %2163 = vrot.lane.b32.xlu0 %v923, 17
  %v2164 = vpop.permute.xlu0 %2163
  %2165 = vrot.lane.b32.xlu0 %v927, 17
  %v2166 = vpop.permute.xlu0 %2165
  %v2167 = vsel %vm241, %v2144, %v2156
  %v2168 = vsel %vm241, %v2146, %v2158
  %v2169 = vsel %vm241, %v2148, %v2160
  %v2170 = vsel %vm241, %v2150, %v2162
  %v2171 = vsel %vm241, %v2152, %v2164
  %v2172 = vsel %vm241, %v2154, %v2166
  %v2173 = vsel %vm241, %v2132, %v2144
  %v2174 = vsel %vm241, %v2134, %v2146
  %v2175 = vsel %vm241, %v2136, %v2148
  %v2176 = vsel %vm241, %v2138, %v2150
  %v2177 = vsel %vm241, %v2140, %v2152
  %v2178 = vsel %vm241, %v2142, %v2154
  %v2179 = vsel %vm241, %v2120, %v2132
  %v2180 = vsel %vm241, %v2122, %v2134
  %v2181 = vsel %vm241, %v2124, %v2136
  %v2182 = vsel %vm241, %v2126, %v2138
  %v2183 = vsel %vm241, %v2128, %v2140
  %v2184 = vsel %vm241, %v2130, %v2142
  %v2185 = vsel %vm241, %v2156, %v2120
  %v2186 = vsel %vm241, %v2158, %v2122
  %v2187 = vsel %vm241, %v2160, %v2124
  %v2188 = vsel %vm241, %v2162, %v2126
  %v2189 = vsel %vm241, %v2164, %v2128
  %v2190 = vsel %vm241, %v2166, %v2130
  %v2191 = vmul.f32 %v2185, %v126
  %v2192 = vmul.f32 %v2179, %v127
  %v2193 = vmul.f32 %v2173, %v128
  %v2194 = vmul.f32 %v2167, %v129
  %v2195 = vmul.f32 %v2186, %v126
  %v2196 = vmul.f32 %v2180, %v127
  %v2197 = vmul.f32 %v2174, %v128
  %v2198 = vmul.f32 %v2168, %v129
  %v2199 = vmul.f32 %v2187, %v126
  %v2200 = vmul.f32 %v2181, %v127
  %v2201 = vmul.f32 %v2175, %v128
  %v2202 = vmul.f32 %v2169, %v129
  %v2203 = vmul.f32 %v2188, %v126
  %v2204 = vmul.f32 %v2182, %v127
  %v2205 = vmul.f32 %v2176, %v128
  %v2206 = vmul.f32 %v2170, %v129
  %v2207 = vmul.f32 %v2189, %v126
  %v2208 = vmul.f32 %v2183, %v127
  %v2209 = vmul.f32 %v2177, %v128
  %v2210 = vmul.f32 %v2171, %v129
  %v2211 = vmul.f32 %v2190, %v126
  %v2212 = vmul.f32 %v2184, %v127
  %v2213 = vmul.f32 %v2178, %v128
  %v2214 = vmul.f32 %v2172, %v129
  %2215 = vrot.lane.b32.xlu0 %v2042, 16
  %v2216 = vpop.permute.xlu0 %2215
  %2217 = vrot.lane.b32.xlu0 %v2046, 16
  %v2218 = vpop.permute.xlu0 %2217
  %2219 = vrot.lane.b32.xlu0 %v2052, 16
  %v2220 = vpop.permute.xlu0 %2219
  %2221 = vrot.lane.b32.xlu0 %v2056, 16
  %v2222 = vpop.permute.xlu0 %2221
  %2223 = vrot.lane.b32.xlu0 %v920, 16
  %v2224 = vpop.permute.xlu0 %2223
  %2225 = vrot.lane.b32.xlu0 %v924, 16
  %v2226 = vpop.permute.xlu0 %2225
  %2227 = vrot.lane.b32.xlu0 %v2044, 16
  %v2228 = vpop.permute.xlu0 %2227
  %2229 = vrot.lane.b32.xlu0 %v2048, 16
  %v2230 = vpop.permute.xlu0 %2229
  %2231 = vrot.lane.b32.xlu0 %v2054, 16
  %v2232 = vpop.permute.xlu0 %2231
  %2233 = vrot.lane.b32.xlu0 %v2058, 16
  %v2234 = vpop.permute.xlu0 %2233
  %2235 = vrot.lane.b32.xlu0 %v921, 16
  %v2236 = vpop.permute.xlu0 %2235
  %2237 = vrot.lane.b32.xlu0 %v925, 16
  %v2238 = vpop.permute.xlu0 %2237
  %2239 = vrot.lane.b32.xlu0 %v2095, 16
  %v2240 = vpop.permute.xlu0 %2239
  %2241 = vrot.lane.b32.xlu0 %v2099, 16
  %v2242 = vpop.permute.xlu0 %2241
  %2243 = vrot.lane.b32.xlu0 %v2105, 16
  %v2244 = vpop.permute.xlu0 %2243
  %2245 = vrot.lane.b32.xlu0 %v2109, 16
  %v2246 = vpop.permute.xlu0 %2245
  %2247 = vrot.lane.b32.xlu0 %v922, 16
  %v2248 = vpop.permute.xlu0 %2247
  %2249 = vrot.lane.b32.xlu0 %v926, 16
  %v2250 = vpop.permute.xlu0 %2249
  %2251 = vrot.lane.b32.xlu0 %v2097, 16
  %v2252 = vpop.permute.xlu0 %2251
  %2253 = vrot.lane.b32.xlu0 %v2101, 16
  %v2254 = vpop.permute.xlu0 %2253
  %2255 = vrot.lane.b32.xlu0 %v2107, 16
  %v2256 = vpop.permute.xlu0 %2255
  %2257 = vrot.lane.b32.xlu0 %v2111, 16
  %v2258 = vpop.permute.xlu0 %2257
  %2259 = vrot.lane.b32.xlu0 %v923, 16
  %v2260 = vpop.permute.xlu0 %2259
  %2261 = vrot.lane.b32.xlu0 %v927, 16
  %v2262 = vpop.permute.xlu0 %2261
  %v2263 = vsel %vm258, %v2240, %v2252
  %v2264 = vsel %vm258, %v2242, %v2254
  %v2265 = vsel %vm258, %v2244, %v2256
  %v2266 = vsel %vm258, %v2246, %v2258
  %v2267 = vsel %vm258, %v2248, %v2260
  %v2268 = vsel %vm258, %v2250, %v2262
  %v2269 = vsel %vm258, %v2228, %v2240
  %v2270 = vsel %vm258, %v2230, %v2242
  %v2271 = vsel %vm258, %v2232, %v2244
  %v2272 = vsel %vm258, %v2234, %v2246
  %v2273 = vsel %vm258, %v2236, %v2248
  %v2274 = vsel %vm258, %v2238, %v2250
  %v2275 = vsel %vm258, %v2216, %v2228
  %v2276 = vsel %vm258, %v2218, %v2230
  %v2277 = vsel %vm258, %v2220, %v2232
  %v2278 = vsel %vm258, %v2222, %v2234
  %v2279 = vsel %vm258, %v2224, %v2236
  %v2280 = vsel %vm258, %v2226, %v2238
  %v2281 = vsel %vm258, %v2252, %v2216
  %v2282 = vsel %vm258, %v2254, %v2218
  %v2283 = vsel %vm258, %v2256, %v2220
  %v2284 = vsel %vm258, %v2258, %v2222
  %v2285 = vsel %vm258, %v2260, %v2224
  %v2286 = vsel %vm258, %v2262, %v2226
  %v2287 = vmul.f32 %v2281, %v134
  %v2288 = vmul.f32 %v2275, %v135
  %v2289 = vmul.f32 %v2269, %v136
  %v2290 = vmul.f32 %v2263, %v137
  %v2291 = vmul.f32 %v2282, %v134
  %v2292 = vmul.f32 %v2276, %v135
  %v2293 = vmul.f32 %v2270, %v136
  %v2294 = vmul.f32 %v2264, %v137
  %v2295 = vmul.f32 %v2283, %v134
  %v2296 = vmul.f32 %v2277, %v135
  %v2297 = vmul.f32 %v2271, %v136
  %v2298 = vmul.f32 %v2265, %v137
  %v2299 = vmul.f32 %v2284, %v134
  %v2300 = vmul.f32 %v2278, %v135
  %v2301 = vmul.f32 %v2272, %v136
  %v2302 = vmul.f32 %v2266, %v137
  %v2303 = vmul.f32 %v2285, %v134
  %v2304 = vmul.f32 %v2279, %v135
  %v2305 = vmul.f32 %v2273, %v136
  %v2306 = vmul.f32 %v2267, %v137
  %v2307 = vmul.f32 %v2286, %v134
  %v2308 = vmul.f32 %v2280, %v135
  %v2309 = vmul.f32 %v2274, %v136
  %v2310 = vmul.f32 %v2268, %v137
  %2311 = vrot.lane.b32.xlu0 %v2042, 15
  %v2312 = vpop.permute.xlu0 %2311
  %2313 = vrot.lane.b32.xlu0 %v2046, 15
  %v2314 = vpop.permute.xlu0 %2313
  %2315 = vrot.lane.b32.xlu0 %v2052, 15
  %v2316 = vpop.permute.xlu0 %2315
  %2317 = vrot.lane.b32.xlu0 %v2056, 15
  %v2318 = vpop.permute.xlu0 %2317
  %2319 = vrot.lane.b32.xlu0 %v920, 15
  %v2320 = vpop.permute.xlu0 %2319
  %2321 = vrot.lane.b32.xlu0 %v924, 15
  %v2322 = vpop.permute.xlu0 %2321
  %2323 = vrot.lane.b32.xlu0 %v2044, 15
  %v2324 = vpop.permute.xlu0 %2323
  %2325 = vrot.lane.b32.xlu0 %v2048, 15
  %v2326 = vpop.permute.xlu0 %2325
  %2327 = vrot.lane.b32.xlu0 %v2054, 15
  %v2328 = vpop.permute.xlu0 %2327
  %2329 = vrot.lane.b32.xlu0 %v2058, 15
  %v2330 = vpop.permute.xlu0 %2329
  %2331 = vrot.lane.b32.xlu0 %v921, 15
  %v2332 = vpop.permute.xlu0 %2331
  %2333 = vrot.lane.b32.xlu0 %v925, 15
  %v2334 = vpop.permute.xlu0 %2333
  %2335 = vrot.lane.b32.xlu0 %v2095, 15
  %v2336 = vpop.permute.xlu0 %2335
  %2337 = vrot.lane.b32.xlu0 %v2099, 15
  %v2338 = vpop.permute.xlu0 %2337
  %2339 = vrot.lane.b32.xlu0 %v2105, 15
  %v2340 = vpop.permute.xlu0 %2339
  %2341 = vrot.lane.b32.xlu0 %v2109, 15
  %v2342 = vpop.permute.xlu0 %2341
  %2343 = vrot.lane.b32.xlu0 %v922, 15
  %v2344 = vpop.permute.xlu0 %2343
  %2345 = vrot.lane.b32.xlu0 %v926, 15
  %v2346 = vpop.permute.xlu0 %2345
  %2347 = vrot.lane.b32.xlu0 %v2097, 15
  %v2348 = vpop.permute.xlu0 %2347
  %2349 = vrot.lane.b32.xlu0 %v2101, 15
  %v2350 = vpop.permute.xlu0 %2349
  %2351 = vrot.lane.b32.xlu0 %v2107, 15
  %v2352 = vpop.permute.xlu0 %2351
  %2353 = vrot.lane.b32.xlu0 %v2111, 15
  %v2354 = vpop.permute.xlu0 %2353
  %2355 = vrot.lane.b32.xlu0 %v923, 15
  %v2356 = vpop.permute.xlu0 %2355
  %2357 = vrot.lane.b32.xlu0 %v927, 15
  %v2358 = vpop.permute.xlu0 %2357
  %v2359 = vsel %vm275, %v2336, %v2348
  %v2360 = vsel %vm275, %v2338, %v2350
  %v2361 = vsel %vm275, %v2340, %v2352
  %v2362 = vsel %vm275, %v2342, %v2354
  %v2363 = vsel %vm275, %v2344, %v2356
  %v2364 = vsel %vm275, %v2346, %v2358
  %v2365 = vsel %vm275, %v2324, %v2336
  %v2366 = vsel %vm275, %v2326, %v2338
  %v2367 = vsel %vm275, %v2328, %v2340
  %v2368 = vsel %vm275, %v2330, %v2342
  %v2369 = vsel %vm275, %v2332, %v2344
  %v2370 = vsel %vm275, %v2334, %v2346
  %v2371 = vsel %vm275, %v2312, %v2324
  %v2372 = vsel %vm275, %v2314, %v2326
  %v2373 = vsel %vm275, %v2316, %v2328
  %v2374 = vsel %vm275, %v2318, %v2330
  %v2375 = vsel %vm275, %v2320, %v2332
  %v2376 = vsel %vm275, %v2322, %v2334
  %v2377 = vsel %vm275, %v2348, %v2312
  %v2378 = vsel %vm275, %v2350, %v2314
  %v2379 = vsel %vm275, %v2352, %v2316
  %v2380 = vsel %vm275, %v2354, %v2318
  %v2381 = vsel %vm275, %v2356, %v2320
  %v2382 = vsel %vm275, %v2358, %v2322
  %v2383 = vmul.f32 %v2377, %v146
  %v2384 = vmul.f32 %v2371, %v147
  %v2385 = vmul.f32 %v2365, %v148
  %v2386 = vmul.f32 %v2359, %v149
  %v2387 = vmul.f32 %v2378, %v146
  %v2388 = vmul.f32 %v2372, %v147
  %v2389 = vmul.f32 %v2366, %v148
  %v2390 = vmul.f32 %v2360, %v149
  %v2391 = vmul.f32 %v2379, %v146
  %v2392 = vmul.f32 %v2373, %v147
  %v2393 = vmul.f32 %v2367, %v148
  %v2394 = vmul.f32 %v2361, %v149
  %v2395 = vmul.f32 %v2380, %v146
  %v2396 = vmul.f32 %v2374, %v147
  %v2397 = vmul.f32 %v2368, %v148
  %v2398 = vmul.f32 %v2362, %v149
  %v2399 = vmul.f32 %v2381, %v146
  %v2400 = vmul.f32 %v2375, %v147
  %v2401 = vmul.f32 %v2369, %v148
  %v2402 = vmul.f32 %v2363, %v149
  %v2403 = vmul.f32 %v2382, %v146
  %v2404 = vmul.f32 %v2376, %v147
  %v2405 = vmul.f32 %v2370, %v148
  %v2406 = vmul.f32 %v2364, %v149
  %2407 = vrot.lane.b32.xlu0 %v2042, 1
  %v2408 = vpop.permute.xlu0 %2407
  %2409 = vrot.lane.b32.xlu0 %v2046, 1
  %v2410 = vpop.permute.xlu0 %2409
  %2411 = vrot.lane.b32.xlu0 %v2052, 1
  %v2412 = vpop.permute.xlu0 %2411
  %2413 = vrot.lane.b32.xlu0 %v2056, 1
  %v2414 = vpop.permute.xlu0 %2413
  %2415 = vrot.lane.b32.xlu0 %v920, 1
  %v2416 = vpop.permute.xlu0 %2415
  %2417 = vrot.lane.b32.xlu0 %v924, 1
  %v2418 = vpop.permute.xlu0 %2417
  %2419 = vrot.lane.b32.xlu0 %v2044, 1
  %v2420 = vpop.permute.xlu0 %2419
  %2421 = vrot.lane.b32.xlu0 %v2048, 1
  %v2422 = vpop.permute.xlu0 %2421
  %2423 = vrot.lane.b32.xlu0 %v2054, 1
  %v2424 = vpop.permute.xlu0 %2423
  %2425 = vrot.lane.b32.xlu0 %v2058, 1
  %v2426 = vpop.permute.xlu0 %2425
  %2427 = vrot.lane.b32.xlu0 %v921, 1
  %v2428 = vpop.permute.xlu0 %2427
  %2429 = vrot.lane.b32.xlu0 %v925, 1
  %v2430 = vpop.permute.xlu0 %2429
  %2431 = vrot.lane.b32.xlu0 %v2095, 1
  %v2432 = vpop.permute.xlu0 %2431
  %2433 = vrot.lane.b32.xlu0 %v2099, 1
  %v2434 = vpop.permute.xlu0 %2433
  %2435 = vrot.lane.b32.xlu0 %v2105, 1
  %v2436 = vpop.permute.xlu0 %2435
  %2437 = vrot.lane.b32.xlu0 %v2109, 1
  %v2438 = vpop.permute.xlu0 %2437
  %2439 = vrot.lane.b32.xlu0 %v922, 1
  %v2440 = vpop.permute.xlu0 %2439
  %2441 = vrot.lane.b32.xlu0 %v926, 1
  %v2442 = vpop.permute.xlu0 %2441
  %2443 = vrot.lane.b32.xlu0 %v2097, 1
  %v2444 = vpop.permute.xlu0 %2443
  %2445 = vrot.lane.b32.xlu0 %v2101, 1
  %v2446 = vpop.permute.xlu0 %2445
  %2447 = vrot.lane.b32.xlu0 %v2107, 1
  %v2448 = vpop.permute.xlu0 %2447
  %2449 = vrot.lane.b32.xlu0 %v2111, 1
  %v2450 = vpop.permute.xlu0 %2449
  %2451 = vrot.lane.b32.xlu0 %v923, 1
  %v2452 = vpop.permute.xlu0 %2451
  %2453 = vrot.lane.b32.xlu0 %v927, 1
  %v2454 = vpop.permute.xlu0 %2453
  %v2455 = vsel %vm292, %v2432, %v2444
  %v2456 = vsel %vm292, %v2434, %v2446
  %v2457 = vsel %vm292, %v2436, %v2448
  %v2458 = vsel %vm292, %v2438, %v2450
  %v2459 = vsel %vm292, %v2440, %v2452
  %v2460 = vsel %vm292, %v2442, %v2454
  %v2461 = vsel %vm292, %v2420, %v2432
  %v2462 = vsel %vm292, %v2422, %v2434
  %v2463 = vsel %vm292, %v2424, %v2436
  %v2464 = vsel %vm292, %v2426, %v2438
  %v2465 = vsel %vm292, %v2428, %v2440
  %v2466 = vsel %vm292, %v2430, %v2442
  %v2467 = vsel %vm292, %v2408, %v2420
  %v2468 = vsel %vm292, %v2410, %v2422
  %v2469 = vsel %vm292, %v2412, %v2424
  %v2470 = vsel %vm292, %v2414, %v2426
  %v2471 = vsel %vm292, %v2416, %v2428
  %v2472 = vsel %vm292, %v2418, %v2430
  %v2473 = vsel %vm292, %v2444, %v2408
  %v2474 = vsel %vm292, %v2446, %v2410
  %v2475 = vsel %vm292, %v2448, %v2412
  %v2476 = vsel %vm292, %v2450, %v2414
  %v2477 = vsel %vm292, %v2452, %v2416
  %v2478 = vsel %vm292, %v2454, %v2418
  %v2479 = vmul.f32 %v2473, %v154
  %v2480 = vmul.f32 %v2467, %v155
  %v2481 = vmul.f32 %v2461, %v156
  %v2482 = vmul.f32 %v2455, %v157
  %v2483 = vmul.f32 %v2474, %v154
  %v2484 = vmul.f32 %v2468, %v155
  %v2485 = vmul.f32 %v2462, %v156
  %v2486 = vmul.f32 %v2456, %v157
  %v2487 = vmul.f32 %v2475, %v154
  %v2488 = vmul.f32 %v2469, %v155
  %v2489 = vmul.f32 %v2463, %v156
  %v2490 = vmul.f32 %v2457, %v157
  %v2491 = vmul.f32 %v2476, %v154
  %v2492 = vmul.f32 %v2470, %v155
  %v2493 = vmul.f32 %v2464, %v156
  %v2494 = vmul.f32 %v2458, %v157
  %v2495 = vmul.f32 %v2477, %v154
  %v2496 = vmul.f32 %v2471, %v155
  %v2497 = vmul.f32 %v2465, %v156
  %v2498 = vmul.f32 %v2459, %v157
  %v2499 = vmul.f32 %v2478, %v154
  %v2500 = vmul.f32 %v2472, %v155
  %v2501 = vmul.f32 %v2466, %v156
  %v2502 = vmul.f32 %v2460, %v157
  %2503 = vrot.lane.b32.xlu0 %v2042, 127
  %v2504 = vpop.permute.xlu0 %2503
  %2505 = vrot.lane.b32.xlu0 %v2046, 127
  %v2506 = vpop.permute.xlu0 %2505
  %2507 = vrot.lane.b32.xlu0 %v2052, 127
  %v2508 = vpop.permute.xlu0 %2507
  %2509 = vrot.lane.b32.xlu0 %v2056, 127
  %v2510 = vpop.permute.xlu0 %2509
  %2511 = vrot.lane.b32.xlu0 %v2044, 127
  %v2512 = vpop.permute.xlu0 %2511
  %2513 = vrot.lane.b32.xlu0 %v2048, 127
  %v2514 = vpop.permute.xlu0 %2513
  %2515 = vrot.lane.b32.xlu0 %v2054, 127
  %v2516 = vpop.permute.xlu0 %2515
  %2517 = vrot.lane.b32.xlu0 %v2058, 127
  %v2518 = vpop.permute.xlu0 %2517
  %2519 = vrot.lane.b32.xlu0 %v2095, 127
  %v2520 = vpop.permute.xlu0 %2519
  %2521 = vrot.lane.b32.xlu0 %v2099, 127
  %v2522 = vpop.permute.xlu0 %2521
  %2523 = vrot.lane.b32.xlu0 %v2105, 127
  %v2524 = vpop.permute.xlu0 %2523
  %2525 = vrot.lane.b32.xlu0 %v2109, 127
  %v2526 = vpop.permute.xlu0 %2525
  %2527 = vrot.lane.b32.xlu0 %v2097, 127
  %v2528 = vpop.permute.xlu0 %2527
  %2529 = vrot.lane.b32.xlu0 %v2101, 127
  %v2530 = vpop.permute.xlu0 %2529
  %2531 = vrot.lane.b32.xlu0 %v2107, 127
  %v2532 = vpop.permute.xlu0 %2531
  %2533 = vrot.lane.b32.xlu0 %v2111, 127
  %v2534 = vpop.permute.xlu0 %2533
  %v2535 = vsel %vm309, %v2520, %v2528
  %v2536 = vsel %vm309, %v2522, %v2530
  %v2537 = vsel %vm309, %v2524, %v2532
  %v2538 = vsel %vm309, %v2526, %v2534
  %v2539 = vsel %vm309, %v2512, %v2520
  %v2540 = vsel %vm309, %v2514, %v2522
  %v2541 = vsel %vm309, %v2516, %v2524
  %v2542 = vsel %vm309, %v2518, %v2526
  %v2543 = vsel %vm309, %v2504, %v2512
  %v2544 = vsel %vm309, %v2506, %v2514
  %v2545 = vsel %vm309, %v2508, %v2516
  %v2546 = vsel %vm309, %v2510, %v2518
  %v2547 = vsel %vm309, %v2528, %v2504
  %v2548 = vsel %vm309, %v2530, %v2506
  %v2549 = vsel %vm309, %v2532, %v2508
  %v2550 = vsel %vm309, %v2534, %v2510
  %v2551 = vmul.f32 %v2543, %v162
  %v2552 = vmul.f32 %v2539, %v163
  %v2553 = vmul.f32 %v2535, %v164
  %v2554 = vmul.f32 %v2547, %v165
  %v2555 = vmul.f32 %v2544, %v162
  %v2556 = vmul.f32 %v2540, %v163
  %v2557 = vmul.f32 %v2536, %v164
  %v2558 = vmul.f32 %v2548, %v165
  %v2559 = vmul.f32 %v2545, %v162
  %v2560 = vmul.f32 %v2541, %v163
  %v2561 = vmul.f32 %v2537, %v164
  %v2562 = vmul.f32 %v2549, %v165
  %v2563 = vmul.f32 %v2546, %v162
  %v2564 = vmul.f32 %v2542, %v163
  %v2565 = vmul.f32 %v2538, %v164
  %v2566 = vmul.f32 %v2550, %v165
  %v2567 = vmul.f32 %v948, %v162
  %v2568 = vmul.f32 %v946, %v163
  %v2569 = vmul.f32 %v944, %v164
  %v2570 = vmul.f32 %v950, %v165
  %v2571 = vmul.f32 %v949, %v162
  %v2572 = vmul.f32 %v947, %v163
  %v2573 = vmul.f32 %v945, %v164
  %v2574 = vmul.f32 %v951, %v165
  %2575 = vrot.lane.b32.xlu0 %v2042, 113
  %v2576 = vpop.permute.xlu0 %2575
  %2577 = vrot.lane.b32.xlu0 %v2046, 113
  %v2578 = vpop.permute.xlu0 %2577
  %2579 = vrot.lane.b32.xlu0 %v2052, 113
  %v2580 = vpop.permute.xlu0 %2579
  %2581 = vrot.lane.b32.xlu0 %v2056, 113
  %v2582 = vpop.permute.xlu0 %2581
  %2583 = vrot.lane.b32.xlu0 %v920, 113
  %v2584 = vpop.permute.xlu0 %2583
  %2585 = vrot.lane.b32.xlu0 %v924, 113
  %v2586 = vpop.permute.xlu0 %2585
  %2587 = vrot.lane.b32.xlu0 %v2044, 113
  %v2588 = vpop.permute.xlu0 %2587
  %2589 = vrot.lane.b32.xlu0 %v2048, 113
  %v2590 = vpop.permute.xlu0 %2589
  %2591 = vrot.lane.b32.xlu0 %v2054, 113
  %v2592 = vpop.permute.xlu0 %2591
  %2593 = vrot.lane.b32.xlu0 %v2058, 113
  %v2594 = vpop.permute.xlu0 %2593
  %2595 = vrot.lane.b32.xlu0 %v921, 113
  %v2596 = vpop.permute.xlu0 %2595
  %2597 = vrot.lane.b32.xlu0 %v925, 113
  %v2598 = vpop.permute.xlu0 %2597
  %2599 = vrot.lane.b32.xlu0 %v2095, 113
  %v2600 = vpop.permute.xlu0 %2599
  %2601 = vrot.lane.b32.xlu0 %v2099, 113
  %v2602 = vpop.permute.xlu0 %2601
  %2603 = vrot.lane.b32.xlu0 %v2105, 113
  %v2604 = vpop.permute.xlu0 %2603
  %2605 = vrot.lane.b32.xlu0 %v2109, 113
  %v2606 = vpop.permute.xlu0 %2605
  %2607 = vrot.lane.b32.xlu0 %v922, 113
  %v2608 = vpop.permute.xlu0 %2607
  %2609 = vrot.lane.b32.xlu0 %v926, 113
  %v2610 = vpop.permute.xlu0 %2609
  %2611 = vrot.lane.b32.xlu0 %v2097, 113
  %v2612 = vpop.permute.xlu0 %2611
  %2613 = vrot.lane.b32.xlu0 %v2101, 113
  %v2614 = vpop.permute.xlu0 %2613
  %2615 = vrot.lane.b32.xlu0 %v2107, 113
  %v2616 = vpop.permute.xlu0 %2615
  %2617 = vrot.lane.b32.xlu0 %v2111, 113
  %v2618 = vpop.permute.xlu0 %2617
  %2619 = vrot.lane.b32.xlu0 %v923, 113
  %v2620 = vpop.permute.xlu0 %2619
  %2621 = vrot.lane.b32.xlu0 %v927, 113
  %v2622 = vpop.permute.xlu0 %2621
  %v2623 = vsel %vm326, %v2600, %v2612
  %v2624 = vsel %vm326, %v2602, %v2614
  %v2625 = vsel %vm326, %v2604, %v2616
  %v2626 = vsel %vm326, %v2606, %v2618
  %v2627 = vsel %vm326, %v2608, %v2620
  %v2628 = vsel %vm326, %v2610, %v2622
  %v2629 = vsel %vm326, %v2588, %v2600
  %v2630 = vsel %vm326, %v2590, %v2602
  %v2631 = vsel %vm326, %v2592, %v2604
  %v2632 = vsel %vm326, %v2594, %v2606
  %v2633 = vsel %vm326, %v2596, %v2608
  %v2634 = vsel %vm326, %v2598, %v2610
  %v2635 = vsel %vm326, %v2576, %v2588
  %v2636 = vsel %vm326, %v2578, %v2590
  %v2637 = vsel %vm326, %v2580, %v2592
  %v2638 = vsel %vm326, %v2582, %v2594
  %v2639 = vsel %vm326, %v2584, %v2596
  %v2640 = vsel %vm326, %v2586, %v2598
  %v2641 = vsel %vm326, %v2612, %v2576
  %v2642 = vsel %vm326, %v2614, %v2578
  %v2643 = vsel %vm326, %v2616, %v2580
  %v2644 = vsel %vm326, %v2618, %v2582
  %v2645 = vsel %vm326, %v2620, %v2584
  %v2646 = vsel %vm326, %v2622, %v2586
  %v2647 = vmul.f32 %v2635, %v174
  %v2648 = vmul.f32 %v2629, %v175
  %v2649 = vmul.f32 %v2623, %v176
  %v2650 = vmul.f32 %v2641, %v177
  %v2651 = vmul.f32 %v2636, %v174
  %v2652 = vmul.f32 %v2630, %v175
  %v2653 = vmul.f32 %v2624, %v176
  %v2654 = vmul.f32 %v2642, %v177
  %v2655 = vmul.f32 %v2637, %v174
  %v2656 = vmul.f32 %v2631, %v175
  %v2657 = vmul.f32 %v2625, %v176
  %v2658 = vmul.f32 %v2643, %v177
  %v2659 = vmul.f32 %v2638, %v174
  %v2660 = vmul.f32 %v2632, %v175
  %v2661 = vmul.f32 %v2626, %v176
  %v2662 = vmul.f32 %v2644, %v177
  %v2663 = vmul.f32 %v2639, %v174
  %v2664 = vmul.f32 %v2633, %v175
  %v2665 = vmul.f32 %v2627, %v176
  %v2666 = vmul.f32 %v2645, %v177
  %v2667 = vmul.f32 %v2640, %v174
  %v2668 = vmul.f32 %v2634, %v175
  %v2669 = vmul.f32 %v2628, %v176
  %v2670 = vmul.f32 %v2646, %v177
  %2671 = vrot.lane.b32.xlu0 %v2042, 112
  %v2672 = vpop.permute.xlu0 %2671
  %2673 = vrot.lane.b32.xlu0 %v2046, 112
  %v2674 = vpop.permute.xlu0 %2673
  %2675 = vrot.lane.b32.xlu0 %v2052, 112
  %v2676 = vpop.permute.xlu0 %2675
  %2677 = vrot.lane.b32.xlu0 %v2056, 112
  %v2678 = vpop.permute.xlu0 %2677
  %2679 = vrot.lane.b32.xlu0 %v2044, 112
  %v2680 = vpop.permute.xlu0 %2679
  %2681 = vrot.lane.b32.xlu0 %v2048, 112
  %v2682 = vpop.permute.xlu0 %2681
  %2683 = vrot.lane.b32.xlu0 %v2054, 112
  %v2684 = vpop.permute.xlu0 %2683
  %2685 = vrot.lane.b32.xlu0 %v2058, 112
  %v2686 = vpop.permute.xlu0 %2685
  %2687 = vrot.lane.b32.xlu0 %v2095, 112
  %v2688 = vpop.permute.xlu0 %2687
  %2689 = vrot.lane.b32.xlu0 %v2099, 112
  %v2690 = vpop.permute.xlu0 %2689
  %2691 = vrot.lane.b32.xlu0 %v2105, 112
  %v2692 = vpop.permute.xlu0 %2691
  %2693 = vrot.lane.b32.xlu0 %v2109, 112
  %v2694 = vpop.permute.xlu0 %2693
  %2695 = vrot.lane.b32.xlu0 %v2097, 112
  %v2696 = vpop.permute.xlu0 %2695
  %2697 = vrot.lane.b32.xlu0 %v2101, 112
  %v2698 = vpop.permute.xlu0 %2697
  %2699 = vrot.lane.b32.xlu0 %v2107, 112
  %v2700 = vpop.permute.xlu0 %2699
  %2701 = vrot.lane.b32.xlu0 %v2111, 112
  %v2702 = vpop.permute.xlu0 %2701
  %v2703 = vsel %vm343, %v2688, %v2696
  %v2704 = vsel %vm343, %v2690, %v2698
  %v2705 = vsel %vm343, %v2692, %v2700
  %v2706 = vsel %vm343, %v2694, %v2702
  %v2707 = vsel %vm343, %v2680, %v2688
  %v2708 = vsel %vm343, %v2682, %v2690
  %v2709 = vsel %vm343, %v2684, %v2692
  %v2710 = vsel %vm343, %v2686, %v2694
  %v2711 = vsel %vm343, %v2672, %v2680
  %v2712 = vsel %vm343, %v2674, %v2682
  %v2713 = vsel %vm343, %v2676, %v2684
  %v2714 = vsel %vm343, %v2678, %v2686
  %v2715 = vsel %vm343, %v2696, %v2672
  %v2716 = vsel %vm343, %v2698, %v2674
  %v2717 = vsel %vm343, %v2700, %v2676
  %v2718 = vsel %vm343, %v2702, %v2678
  %v2719 = vmul.f32 %v2711, %v182
  %v2720 = vmul.f32 %v2707, %v183
  %v2721 = vmul.f32 %v2703, %v184
  %v2722 = vmul.f32 %v2715, %v185
  %v2723 = vmul.f32 %v2712, %v182
  %v2724 = vmul.f32 %v2708, %v183
  %v2725 = vmul.f32 %v2704, %v184
  %v2726 = vmul.f32 %v2716, %v185
  %v2727 = vmul.f32 %v2713, %v182
  %v2728 = vmul.f32 %v2709, %v183
  %v2729 = vmul.f32 %v2705, %v184
  %v2730 = vmul.f32 %v2717, %v185
  %v2731 = vmul.f32 %v2714, %v182
  %v2732 = vmul.f32 %v2710, %v183
  %v2733 = vmul.f32 %v2706, %v184
  %v2734 = vmul.f32 %v2718, %v185
  %v2735 = vmul.f32 %v980, %v182
  %v2736 = vmul.f32 %v978, %v183
  %v2737 = vmul.f32 %v976, %v184
  %v2738 = vmul.f32 %v982, %v185
  %v2739 = vmul.f32 %v981, %v182
  %v2740 = vmul.f32 %v979, %v183
  %v2741 = vmul.f32 %v977, %v184
  %v2742 = vmul.f32 %v983, %v185
  %2743 = vrot.lane.b32.xlu0 %v2042, 111
  %v2744 = vpop.permute.xlu0 %2743
  %2745 = vrot.lane.b32.xlu0 %v2046, 111
  %v2746 = vpop.permute.xlu0 %2745
  %2747 = vrot.lane.b32.xlu0 %v2052, 111
  %v2748 = vpop.permute.xlu0 %2747
  %2749 = vrot.lane.b32.xlu0 %v2056, 111
  %v2750 = vpop.permute.xlu0 %2749
  %2751 = vrot.lane.b32.xlu0 %v2044, 111
  %v2752 = vpop.permute.xlu0 %2751
  %2753 = vrot.lane.b32.xlu0 %v2048, 111
  %v2754 = vpop.permute.xlu0 %2753
  %2755 = vrot.lane.b32.xlu0 %v2054, 111
  %v2756 = vpop.permute.xlu0 %2755
  %2757 = vrot.lane.b32.xlu0 %v2058, 111
  %v2758 = vpop.permute.xlu0 %2757
  %2759 = vrot.lane.b32.xlu0 %v2095, 111
  %v2760 = vpop.permute.xlu0 %2759
  %2761 = vrot.lane.b32.xlu0 %v2099, 111
  %v2762 = vpop.permute.xlu0 %2761
  %2763 = vrot.lane.b32.xlu0 %v2105, 111
  %v2764 = vpop.permute.xlu0 %2763
  %2765 = vrot.lane.b32.xlu0 %v2109, 111
  %v2766 = vpop.permute.xlu0 %2765
  %2767 = vrot.lane.b32.xlu0 %v2097, 111
  %v2768 = vpop.permute.xlu0 %2767
  %2769 = vrot.lane.b32.xlu0 %v2101, 111
  %v2770 = vpop.permute.xlu0 %2769
  %2771 = vrot.lane.b32.xlu0 %v2107, 111
  %v2772 = vpop.permute.xlu0 %2771
  %2773 = vrot.lane.b32.xlu0 %v2111, 111
  %v2774 = vpop.permute.xlu0 %2773
  %v2775 = vsel %vm360, %v2760, %v2768
  %v2776 = vsel %vm360, %v2762, %v2770
  %v2777 = vsel %vm360, %v2764, %v2772
  %v2778 = vsel %vm360, %v2766, %v2774
  %v2779 = vsel %vm360, %v2752, %v2760
  %v2780 = vsel %vm360, %v2754, %v2762
  %v2781 = vsel %vm360, %v2756, %v2764
  %v2782 = vsel %vm360, %v2758, %v2766
  %v2783 = vsel %vm360, %v2744, %v2752
  %v2784 = vsel %vm360, %v2746, %v2754
  %v2785 = vsel %vm360, %v2748, %v2756
  %v2786 = vsel %vm360, %v2750, %v2758
  %v2787 = vsel %vm360, %v2768, %v2744
  %v2788 = vsel %vm360, %v2770, %v2746
  %v2789 = vsel %vm360, %v2772, %v2748
  %v2790 = vsel %vm360, %v2774, %v2750
  %v2791 = vmul.f32 %v2783, %v194
  %v2792 = vmul.f32 %v2779, %v195
  %v2793 = vmul.f32 %v2775, %v196
  %v2794 = vmul.f32 %v2787, %v197
  %v2795 = vmul.f32 %v2784, %v194
  %v2796 = vmul.f32 %v2780, %v195
  %v2797 = vmul.f32 %v2776, %v196
  %v2798 = vmul.f32 %v2788, %v197
  %v2799 = vmul.f32 %v2785, %v194
  %v2800 = vmul.f32 %v2781, %v195
  %v2801 = vmul.f32 %v2777, %v196
  %v2802 = vmul.f32 %v2789, %v197
  %v2803 = vmul.f32 %v2786, %v194
  %v2804 = vmul.f32 %v2782, %v195
  %v2805 = vmul.f32 %v2778, %v196
  %v2806 = vmul.f32 %v2790, %v197
  %v2807 = vmul.f32 %v1004, %v194
  %v2808 = vmul.f32 %v1002, %v195
  %v2809 = vmul.f32 %v1000, %v196
  %v2810 = vmul.f32 %v1006, %v197
  %v2811 = vmul.f32 %v1005, %v194
  %v2812 = vmul.f32 %v1003, %v195
  %v2813 = vmul.f32 %v1001, %v196
  %v2814 = vmul.f32 %v1007, %v197
  %v2815 = vpack.c.bf16 %v2195, %v2191
  %v2816 = vpack.c.bf16 %v2196, %v2192
  %v2817 = vpack.c.bf16 %v2197, %v2193
  %v2818 = vpack.c.bf16 %v2198, %v2194
  %v2819 = vpack.c.bf16 %v2203, %v2199
  %v2820 = vpack.c.bf16 %v2204, %v2200
  %v2821 = vpack.c.bf16 %v2205, %v2201
  %v2822 = vpack.c.bf16 %v2206, %v2202
  %v2823 = vpack.c.bf16 %v2211, %v2207
  %v2824 = vpack.c.bf16 %v2212, %v2208
  %v2825 = vpack.c.bf16 %v2213, %v2209
  %v2826 = vpack.c.bf16 %v2214, %v2210
  %v2827 = vpack.c.bf16 %v2291, %v2287
  %v2828 = vpack.c.bf16 %v2292, %v2288
  %v2829 = vpack.c.bf16 %v2293, %v2289
  %v2830 = vpack.c.bf16 %v2294, %v2290
  %v2831 = vpack.c.bf16 %v2299, %v2295
  %v2832 = vpack.c.bf16 %v2300, %v2296
  %v2833 = vpack.c.bf16 %v2301, %v2297
  %v2834 = vpack.c.bf16 %v2302, %v2298
  %v2835 = vpack.c.bf16 %v2307, %v2303
  %v2836 = vpack.c.bf16 %v2308, %v2304
  %v2837 = vpack.c.bf16 %v2309, %v2305
  %v2838 = vpack.c.bf16 %v2310, %v2306
  %v2839 = vpack.c.bf16 %v2387, %v2383
  %v2840 = vpack.c.bf16 %v2388, %v2384
  %v2841 = vpack.c.bf16 %v2389, %v2385
  %v2842 = vpack.c.bf16 %v2390, %v2386
  %v2843 = vpack.c.bf16 %v2395, %v2391
  %v2844 = vpack.c.bf16 %v2396, %v2392
  %v2845 = vpack.c.bf16 %v2397, %v2393
  %v2846 = vpack.c.bf16 %v2398, %v2394
  %v2847 = vpack.c.bf16 %v2403, %v2399
  %v2848 = vpack.c.bf16 %v2404, %v2400
  %v2849 = vpack.c.bf16 %v2405, %v2401
  %v2850 = vpack.c.bf16 %v2406, %v2402
  %v2851 = vpack.c.bf16 %v2483, %v2479
  %v2852 = vpack.c.bf16 %v2484, %v2480
  %v2853 = vpack.c.bf16 %v2485, %v2481
  %v2854 = vpack.c.bf16 %v2486, %v2482
  %v2855 = vpack.c.bf16 %v2491, %v2487
  %v2856 = vpack.c.bf16 %v2492, %v2488
  %v2857 = vpack.c.bf16 %v2493, %v2489
  %v2858 = vpack.c.bf16 %v2494, %v2490
  %v2859 = vpack.c.bf16 %v2499, %v2495
  %v2860 = vpack.c.bf16 %v2500, %v2496
  %v2861 = vpack.c.bf16 %v2501, %v2497
  %v2862 = vpack.c.bf16 %v2502, %v2498
  %v2863 = vpack.c.bf16 %v2046, %v2042
  %v2864 = vpack.c.bf16 %v2048, %v2044
  %v2865 = vpack.c.bf16 %v2099, %v2095
  %v2866 = vpack.c.bf16 %v2101, %v2097
  %v2867 = vpack.c.bf16 %v2056, %v2052
  %v2868 = vpack.c.bf16 %v2058, %v2054
  %v2869 = vpack.c.bf16 %v2109, %v2105
  %v2870 = vpack.c.bf16 %v2111, %v2107
  %v2871 = vpack.c.bf16 %v924, %v920
  %v2872 = vpack.c.bf16 %v925, %v921
  %v2873 = vpack.c.bf16 %v926, %v922
  %v2874 = vpack.c.bf16 %v927, %v923
  %v2875 = vpack.c.bf16 %v2555, %v2551
  %v2876 = vpack.c.bf16 %v2556, %v2552
  %v2877 = vpack.c.bf16 %v2557, %v2553
  %v2878 = vpack.c.bf16 %v2558, %v2554
  %v2879 = vpack.c.bf16 %v2563, %v2559
  %v2880 = vpack.c.bf16 %v2564, %v2560
  %v2881 = vpack.c.bf16 %v2565, %v2561
  %v2882 = vpack.c.bf16 %v2566, %v2562
  %v2883 = vpack.c.bf16 %v2571, %v2567
  %v2884 = vpack.c.bf16 %v2572, %v2568
  %v2885 = vpack.c.bf16 %v2573, %v2569
  %v2886 = vpack.c.bf16 %v2574, %v2570
  %v2887 = vpack.c.bf16 %v2651, %v2647
  %v2888 = vpack.c.bf16 %v2652, %v2648
  %v2889 = vpack.c.bf16 %v2653, %v2649
  %v2890 = vpack.c.bf16 %v2654, %v2650
  %v2891 = vpack.c.bf16 %v2659, %v2655
  %v2892 = vpack.c.bf16 %v2660, %v2656
  %v2893 = vpack.c.bf16 %v2661, %v2657
  %v2894 = vpack.c.bf16 %v2662, %v2658
  %v2895 = vpack.c.bf16 %v2667, %v2663
  %v2896 = vpack.c.bf16 %v2668, %v2664
  %v2897 = vpack.c.bf16 %v2669, %v2665
  %v2898 = vpack.c.bf16 %v2670, %v2666
  %v2899 = vpack.c.bf16 %v2723, %v2719
  %v2900 = vpack.c.bf16 %v2724, %v2720
  %v2901 = vpack.c.bf16 %v2725, %v2721
  %v2902 = vpack.c.bf16 %v2726, %v2722
  %v2903 = vpack.c.bf16 %v2731, %v2727
  %v2904 = vpack.c.bf16 %v2732, %v2728
  %v2905 = vpack.c.bf16 %v2733, %v2729
  %v2906 = vpack.c.bf16 %v2734, %v2730
  %v2907 = vpack.c.bf16 %v2739, %v2735
  %v2908 = vpack.c.bf16 %v2740, %v2736
  %v2909 = vpack.c.bf16 %v2741, %v2737
  %v2910 = vpack.c.bf16 %v2742, %v2738
  %v2911 = vpack.c.bf16 %v2795, %v2791
  %v2912 = vpack.c.bf16 %v2796, %v2792
  %v2913 = vpack.c.bf16 %v2797, %v2793
  %v2914 = vpack.c.bf16 %v2798, %v2794
  %v2915 = vpack.c.bf16 %v2803, %v2799
  %v2916 = vpack.c.bf16 %v2804, %v2800
  %v2917 = vpack.c.bf16 %v2805, %v2801
  %v2918 = vpack.c.bf16 %v2806, %v2802
  %v2919 = vpack.c.bf16 %v2811, %v2807
  %v2920 = vpack.c.bf16 %v2812, %v2808
  %v2921 = vpack.c.bf16 %v2813, %v2809
  %v2922 = vpack.c.bf16 %v2814, %v2810
  %2924 = vset.pattern.permute.xlu0 0
  %2925 = vperm.xlu0 %2924, %v2117
  %v2926 = vpop.permute.xlu0 %2925
  %2929 = vset.pattern.permute.xlu0 0
  %2930 = vperm.xlu0 %2929, %v2118
  %v2931 = vpop.permute.xlu0 %2930
  %v2937 = vunpack.c.l.b16 %v2113
  %v2938 = vunpack.c.h.b16 %v2113
  %v2939 = vunpack.c.l.b16 %v2114
  %v2940 = vunpack.c.h.b16 %v2114
  %v2941 = vunpack.c.l.b16 %v2115
  %v2942 = vunpack.c.h.b16 %v2115
  %v2943 = vunpack.c.l.b16 %v2116
  %v2944 = vunpack.c.h.b16 %v2116
  %v2945 = vpack.c.b16 %v2941, %v2937
  %v2946 = vpack.c.b16 %v2942, %v2938
  %v2947 = vpack.c.b16 %v2943, %v2939
  %v2948 = vpack.c.b16 %v2944, %v2940
  %vm2952 = vcmask 392192
  %v2954 = vsel %vm2952, %v2948, 0
  %2956 = vmatprep.subr.bf16.mxu0 %v2816
  %2957 = vmatpush1.bf16.msra.mxu0 %v2815
  %2958 = vmatprep.subr.bf16.mxu0 %v2820
  %2959 = vmatpush1.bf16.msra.mxu0 %v2819
  %2960 = vmatprep.subr.bf16.mxu0 %v2824
  %2961 = vmatpush1.bf16.msra.mxu0 %v2823
  %2962 = vmatprep.subr.bf16.mxu0 %v2828
  %2963 = vmatpush1.bf16.msra.mxu0 %v2827
  %2964 = vmatprep.subr.bf16.mxu0 %v2832
  %2965 = vmatpush1.bf16.msra.mxu0 %v2831
  %2966 = vmatprep.subr.bf16.mxu0 %v2836
  %2967 = vmatpush1.bf16.msra.mxu0 %v2835
  %2968 = vmatprep.subr.bf16.mxu0 %v2840
  %2969 = vmatpush1.bf16.msra.mxu0 %v2839
  %2970 = vmatprep.subr.bf16.mxu0 %v2844
  %2971 = vmatpush1.bf16.msra.mxu0 %v2843
  %2972 = vmatprep.subr.bf16.mxu0 %v2848
  %2973 = vmatpush1.bf16.msra.mxu0 %v2847
  %2974 = vmatprep.subr.bf16.mxu0 %v2852
  %2975 = vmatpush1.bf16.msra.mxu0 %v2851
  %2976 = vmatprep.subr.bf16.mxu0 %v2856
  %2977 = vmatpush1.bf16.msra.mxu0 %v2855
  %2978 = vmatprep.subr.bf16.mxu0 %v2860
  %2979 = vmatpush1.bf16.msra.mxu0 %v2859
  %2980 = vmatprep.subr.bf16.mxu0 %v2864
  %2981 = vmatpush1.bf16.msra.mxu0 %v2863
  %2982 = vmatprep.subr.bf16.mxu0 %v2868
  %2983 = vmatpush1.bf16.msra.mxu0 %v2867
  %2984 = vmatprep.subr.bf16.mxu0 %v2872
  %2985 = vmatpush1.bf16.msra.mxu0 %v2871
  %2986 = vmatprep.subr.bf16.mxu0 %v2876
  %2987 = vmatpush1.bf16.msra.mxu0 %v2875
  %2988 = vmatprep.mubr.bf16.mxu0 %v2946
  %2989 = vmatmul.mubr.bf16.gmra.mrb[0].mxu0 %v2945
  %v2990 = vpop.f32.mrb[0].mxu0
  %v2991 = vadd.f32 %v2926, %v2990
  %v2992 = vpop.f32.mrb[0].mxu0
  %v2993 = vadd.f32 %v2926, %v2992
  %v2994 = vpop.f32.mrb[0].mxu0
  %v2995 = vadd.f32 %v2931, %v2994
  %v2996 = vpop.f32.mrb[0].mxu0
  %v2997 = vadd.f32 %v2931, %v2996
  %2998 = vdwg.mxu0
  %2999 = vmatprep.subr.bf16.mxu0 %v2880
  %3000 = vmatpush1.bf16.msra.mxu0 %v2879
  %3001 = vmatprep.subr.bf16.mxu0 %v2884
  %3002 = vmatpush1.bf16.msra.mxu0 %v2883
  %3003 = vmatprep.subr.bf16.mxu0 %v2888
  %3004 = vmatpush1.bf16.msra.mxu0 %v2887
  %3005 = vmatprep.subr.bf16.mxu0 %v2892
  %3006 = vmatpush1.bf16.msra.mxu0 %v2891
  %3007 = vmatprep.subr.bf16.mxu0 %v2896
  %3008 = vmatpush1.bf16.msra.mxu0 %v2895
  %3009 = vmatprep.subr.bf16.mxu0 %v2900
  %3010 = vmatpush1.bf16.msra.mxu0 %v2899
  %3011 = vmatprep.subr.bf16.mxu0 %v2904
  %3012 = vmatpush1.bf16.msra.mxu0 %v2903
  %3013 = vmatprep.subr.bf16.mxu0 %v2908
  %3014 = vmatpush1.bf16.msra.mxu0 %v2907
  %3015 = vmatprep.subr.bf16.mxu0 %v2912
  %3016 = vmatpush1.bf16.msra.mxu0 %v2911
  %3017 = vmatprep.subr.bf16.mxu0 %v2916
  %3018 = vmatpush1.bf16.msra.mxu0 %v2915
  %3019 = vmatprep.subr.bf16.mxu0 %v2920
  %3020 = vmatpush1.bf16.msra.mxu0 %v2919
  %3021 = vmatprep.subr.bf16.mxu0 0
  %3022 = vmatpush1.bf16.msra.mxu0 0
  %3023 = vmatprep.subr.bf16.mxu0 0
  %3024 = vmatpush1.bf16.msra.mxu0 0
  %3025 = vmatprep.subr.bf16.mxu0 0
  %3026 = vmatpush1.bf16.msra.mxu0 0
  %3027 = vmatprep.subr.bf16.mxu0 0
  %3028 = vmatpush1.bf16.msra.mxu0 0
  %3029 = vmatprep.subr.bf16.mxu0 0
  %3030 = vmatpush1.bf16.msra.mxu0 0
  %3031 = vmatprep.mubr.bf16.mxu0 %v2954
  %3032 = vmatmul.mubr.bf16.gmra.mrb[0].mxu0 %v2947
  %v3033 = vpop.f32.mrb[0].mxu0
  %v3034 = vadd.f32 %v2991, %v3033
  %v3035 = vpop.f32.mrb[0].mxu0
  %v3036 = vadd.f32 %v2993, %v3035
  %v3037 = vpop.f32.mrb[0].mxu0
  %v3038 = vadd.f32 %v2995, %v3037
  %v3039 = vpop.f32.mrb[0].mxu0
  %v3040 = vadd.f32 %v2997, %v3039
  %3041 = vdwg.mxu0
  %3042 = vmatprep.subr.bf16.mxu0 %v2818
  %3043 = vmatpush1.bf16.msra.mxu0 %v2817
  %3044 = vmatprep.subr.bf16.mxu0 %v2822
  %3045 = vmatpush1.bf16.msra.mxu0 %v2821
  %3046 = vmatprep.subr.bf16.mxu0 %v2826
  %3047 = vmatpush1.bf16.msra.mxu0 %v2825
  %3048 = vmatprep.subr.bf16.mxu0 %v2830
  %3049 = vmatpush1.bf16.msra.mxu0 %v2829
  %3050 = vmatprep.subr.bf16.mxu0 %v2834
  %3051 = vmatpush1.bf16.msra.mxu0 %v2833
  %3052 = vmatprep.subr.bf16.mxu0 %v2838
  %3053 = vmatpush1.bf16.msra.mxu0 %v2837
  %3054 = vmatprep.subr.bf16.mxu0 %v2842
  %3055 = vmatpush1.bf16.msra.mxu0 %v2841
  %3056 = vmatprep.subr.bf16.mxu0 %v2846
  %3057 = vmatpush1.bf16.msra.mxu0 %v2845
  %3058 = vmatprep.subr.bf16.mxu0 %v2850
  %3059 = vmatpush1.bf16.msra.mxu0 %v2849
  %3060 = vmatprep.subr.bf16.mxu0 %v2854
  %3061 = vmatpush1.bf16.msra.mxu0 %v2853
  %3062 = vmatprep.subr.bf16.mxu0 %v2858
  %3063 = vmatpush1.bf16.msra.mxu0 %v2857
  %3064 = vmatprep.subr.bf16.mxu0 %v2862
  %3065 = vmatpush1.bf16.msra.mxu0 %v2861
  %3066 = vmatprep.subr.bf16.mxu0 %v2866
  %3067 = vmatpush1.bf16.msra.mxu0 %v2865
  %3068 = vmatprep.subr.bf16.mxu0 %v2870
  %3069 = vmatpush1.bf16.msra.mxu0 %v2869
  %3070 = vmatprep.subr.bf16.mxu0 %v2874
  %3071 = vmatpush1.bf16.msra.mxu0 %v2873
  %3072 = vmatprep.subr.bf16.mxu0 %v2878
  %3073 = vmatpush1.bf16.msra.mxu0 %v2877
  %3074 = vmatprep.mubr.bf16.mxu0 %v2946
  %3075 = vmatmul.mubr.bf16.gmra.mrb[0].mxu0 %v2945
  %v3076 = vpop.f32.mrb[0].mxu0
  %v3077 = vadd.f32 %v2926, %v3076
  %v3078 = vpop.f32.mrb[0].mxu0
  %v3079 = vadd.f32 %v2926, %v3078
  %v3080 = vpop.f32.mrb[0].mxu0
  %v3081 = vadd.f32 %v2931, %v3080
  %v3082 = vpop.f32.mrb[0].mxu0
  %v3083 = vadd.f32 %v2931, %v3082
  %3084 = vdwg.mxu0
  %3085 = vmatprep.subr.bf16.mxu0 %v2882
  %3086 = vmatpush1.bf16.msra.mxu0 %v2881
  %3087 = vmatprep.subr.bf16.mxu0 %v2886
  %3088 = vmatpush1.bf16.msra.mxu0 %v2885
  %3089 = vmatprep.subr.bf16.mxu0 %v2890
  %3090 = vmatpush1.bf16.msra.mxu0 %v2889
  %3091 = vmatprep.subr.bf16.mxu0 %v2894
  %3092 = vmatpush1.bf16.msra.mxu0 %v2893
  %3093 = vmatprep.subr.bf16.mxu0 %v2898
  %3094 = vmatpush1.bf16.msra.mxu0 %v2897
  %3095 = vmatprep.subr.bf16.mxu0 %v2902
  %3096 = vmatpush1.bf16.msra.mxu0 %v2901
  %3097 = vmatprep.subr.bf16.mxu0 %v2906
  %3098 = vmatpush1.bf16.msra.mxu0 %v2905
  %3099 = vmatprep.subr.bf16.mxu0 %v2910
  %3100 = vmatpush1.bf16.msra.mxu0 %v2909
  %3101 = vmatprep.subr.bf16.mxu0 %v2914
  %3102 = vmatpush1.bf16.msra.mxu0 %v2913
  %3103 = vmatprep.subr.bf16.mxu0 %v2918
  %3104 = vmatpush1.bf16.msra.mxu0 %v2917
  %3105 = vmatprep.subr.bf16.mxu0 %v2922
  %3106 = vmatpush1.bf16.msra.mxu0 %v2921
  %3107 = vmatprep.subr.bf16.mxu0 0
  %3108 = vmatpush1.bf16.msra.mxu0 0
  %3109 = vmatprep.subr.bf16.mxu0 0
  %3110 = vmatpush1.bf16.msra.mxu0 0
  %3111 = vmatprep.subr.bf16.mxu0 0
  %3112 = vmatpush1.bf16.msra.mxu0 0
  %3113 = vmatprep.subr.bf16.mxu0 0
  %3114 = vmatpush1.bf16.msra.mxu0 0
  %3115 = vmatprep.subr.bf16.mxu0 0
  %3116 = vmatpush1.bf16.msra.mxu0 0
  %3117 = vmatprep.mubr.bf16.mxu0 %v2954
  %3118 = vmatmul.mubr.bf16.gmra.mrb[0].mxu0 %v2947
  %v3119 = vpop.f32.mrb[0].mxu0
  %v3120 = vadd.f32 %v3077, %v3119
  %v3121 = vpop.f32.mrb[0].mxu0
  %v3122 = vadd.f32 %v3079, %v3121
  %v3123 = vpop.f32.mrb[0].mxu0
  %v3124 = vadd.f32 %v3081, %v3123
  %v3125 = vpop.f32.mrb[0].mxu0
  %v3126 = vadd.f32 %v3083, %v3125
  %3127 = vdwg.mxu0
  %v3128 = vmax.f32 %v3034, 0.0
  %v3129 = vmax.f32 %v3036, 0.0
  %v3130 = vmax.f32 %v3120, 0.0
  %v3131 = vmax.f32 %v3122, 0.0
  %v3132 = vmax.f32 %v3038, 0.0
  %v3133 = vmax.f32 %v3040, 0.0
  %v3134 = vmax.f32 %v3124, 0.0
  %v3135 = vmax.f32 %v3126, 0.0
  %v3136 = vld [vmem:[%s15] sm:$0xff]
  %v3137 = vld [vmem:[%s15 + $0x8] sm:$0xff]
  %v3138 = vld [vmem:[%s16] sm:$0xff]
  %v3139 = vld [vmem:[%s16 + $0x8] sm:$0xff]
  %3140 = vrot.lane.b32.xlu0 %v3128, 17
  %v3141 = vpop.permute.xlu0 %3140
  %3142 = vrot.lane.b32.xlu0 %v3132, 17
  %v3143 = vpop.permute.xlu0 %3142
  %3144 = vrot.lane.b32.xlu0 %v3129, 17
  %v3145 = vpop.permute.xlu0 %3144
  %3146 = vrot.lane.b32.xlu0 %v3133, 17
  %v3147 = vpop.permute.xlu0 %3146
  %3148 = vrot.lane.b32.xlu0 %v3130, 17
  %v3149 = vpop.permute.xlu0 %3148
  %3150 = vrot.lane.b32.xlu0 %v3134, 17
  %v3151 = vpop.permute.xlu0 %3150
  %3152 = vrot.lane.b32.xlu0 %v3131, 17
  %v3153 = vpop.permute.xlu0 %3152
  %3154 = vrot.lane.b32.xlu0 %v3135, 17
  %v3155 = vpop.permute.xlu0 %3154
  %v3156 = vsel %vm241, %v3149, %v3153
  %v3157 = vsel %vm241, %v3151, %v3155
  %v3158 = vsel %vm241, %v3145, %v3149
  %v3159 = vsel %vm241, %v3147, %v3151
  %v3160 = vsel %vm241, %v3141, %v3145
  %v3161 = vsel %vm241, %v3143, %v3147
  %v3162 = vsel %vm241, %v3153, %v3141
  %v3163 = vsel %vm241, %v3155, %v3143
  %v3164 = vmul.f32 %v3162, %v126
  %v3165 = vmul.f32 %v3160, %v127
  %v3166 = vmul.f32 %v3158, %v128
  %v3167 = vmul.f32 %v3156, %v129
  %v3168 = vmul.f32 %v3163, %v126
  %v3169 = vmul.f32 %v3161, %v127
  %v3170 = vmul.f32 %v3159, %v128
  %v3171 = vmul.f32 %v3157, %v129
  %3172 = vrot.lane.b32.xlu0 %v3128, 16
  %v3173 = vpop.permute.xlu0 %3172
  %3174 = vrot.lane.b32.xlu0 %v3132, 16
  %v3175 = vpop.permute.xlu0 %3174
  %3176 = vrot.lane.b32.xlu0 %v3129, 16
  %v3177 = vpop.permute.xlu0 %3176
  %3178 = vrot.lane.b32.xlu0 %v3133, 16
  %v3179 = vpop.permute.xlu0 %3178
  %3180 = vrot.lane.b32.xlu0 %v3130, 16
  %v3181 = vpop.permute.xlu0 %3180
  %3182 = vrot.lane.b32.xlu0 %v3134, 16
  %v3183 = vpop.permute.xlu0 %3182
  %3184 = vrot.lane.b32.xlu0 %v3131, 16
  %v3185 = vpop.permute.xlu0 %3184
  %3186 = vrot.lane.b32.xlu0 %v3135, 16
  %v3187 = vpop.permute.xlu0 %3186
  %v3188 = vsel %vm258, %v3181, %v3185
  %v3189 = vsel %vm258, %v3183, %v3187
  %v3190 = vsel %vm258, %v3177, %v3181
  %v3191 = vsel %vm258, %v3179, %v3183
  %v3192 = vsel %vm258, %v3173, %v3177
  %v3193 = vsel %vm258, %v3175, %v3179
  %v3194 = vsel %vm258, %v3185, %v3173
  %v3195 = vsel %vm258, %v3187, %v3175
  %v3196 = vmul.f32 %v3194, %v134
  %v3197 = vmul.f32 %v3192, %v135
  %v3198 = vmul.f32 %v3190, %v136
  %v3199 = vmul.f32 %v3188, %v137
  %v3200 = vmul.f32 %v3195, %v134
  %v3201 = vmul.f32 %v3193, %v135
  %v3202 = vmul.f32 %v3191, %v136
  %v3203 = vmul.f32 %v3189, %v137
  %3204 = vrot.lane.b32.xlu0 %v3128, 15
  %v3205 = vpop.permute.xlu0 %3204
  %3206 = vrot.lane.b32.xlu0 %v3132, 15
  %v3207 = vpop.permute.xlu0 %3206
  %3208 = vrot.lane.b32.xlu0 %v3129, 15
  %v3209 = vpop.permute.xlu0 %3208
  %3210 = vrot.lane.b32.xlu0 %v3133, 15
  %v3211 = vpop.permute.xlu0 %3210
  %3212 = vrot.lane.b32.xlu0 %v3130, 15
  %v3213 = vpop.permute.xlu0 %3212
  %3214 = vrot.lane.b32.xlu0 %v3134, 15
  %v3215 = vpop.permute.xlu0 %3214
  %3216 = vrot.lane.b32.xlu0 %v3131, 15
  %v3217 = vpop.permute.xlu0 %3216
  %3218 = vrot.lane.b32.xlu0 %v3135, 15
  %v3219 = vpop.permute.xlu0 %3218
  %v3220 = vsel %vm275, %v3213, %v3217
  %v3221 = vsel %vm275, %v3215, %v3219
  %v3222 = vsel %vm275, %v3209, %v3213
  %v3223 = vsel %vm275, %v3211, %v3215
  %v3224 = vsel %vm275, %v3205, %v3209
  %v3225 = vsel %vm275, %v3207, %v3211
  %v3226 = vsel %vm275, %v3217, %v3205
  %v3227 = vsel %vm275, %v3219, %v3207
  %v3228 = vmul.f32 %v3226, %v146
  %v3229 = vmul.f32 %v3224, %v147
  %v3230 = vmul.f32 %v3222, %v148
  %v3231 = vmul.f32 %v3220, %v149
  %v3232 = vmul.f32 %v3227, %v146
  %v3233 = vmul.f32 %v3225, %v147
  %v3234 = vmul.f32 %v3223, %v148
  %v3235 = vmul.f32 %v3221, %v149
  %3236 = vrot.lane.b32.xlu0 %v3128, 1
  %v3237 = vpop.permute.xlu0 %3236
  %3238 = vrot.lane.b32.xlu0 %v3132, 1
  %v3239 = vpop.permute.xlu0 %3238
  %3240 = vrot.lane.b32.xlu0 %v3129, 1
  %v3241 = vpop.permute.xlu0 %3240
  %3242 = vrot.lane.b32.xlu0 %v3133, 1
  %v3243 = vpop.permute.xlu0 %3242
  %3244 = vrot.lane.b32.xlu0 %v3130, 1
  %v3245 = vpop.permute.xlu0 %3244
  %3246 = vrot.lane.b32.xlu0 %v3134, 1
  %v3247 = vpop.permute.xlu0 %3246
  %3248 = vrot.lane.b32.xlu0 %v3131, 1
  %v3249 = vpop.permute.xlu0 %3248
  %3250 = vrot.lane.b32.xlu0 %v3135, 1
  %v3251 = vpop.permute.xlu0 %3250
  %v3252 = vsel %vm292, %v3245, %v3249
  %v3253 = vsel %vm292, %v3247, %v3251
  %v3254 = vsel %vm292, %v3241, %v3245
  %v3255 = vsel %vm292, %v3243, %v3247
  %v3256 = vsel %vm292, %v3237, %v3241
  %v3257 = vsel %vm292, %v3239, %v3243
  %v3258 = vsel %vm292, %v3249, %v3237
  %v3259 = vsel %vm292, %v3251, %v3239
  %v3260 = vmul.f32 %v3258, %v154
  %v3261 = vmul.f32 %v3256, %v155
  %v3262 = vmul.f32 %v3254, %v156
  %v3263 = vmul.f32 %v3252, %v157
  %v3264 = vmul.f32 %v3259, %v154
  %v3265 = vmul.f32 %v3257, %v155
  %v3266 = vmul.f32 %v3255, %v156
  %v3267 = vmul.f32 %v3253, %v157
  %3268 = vrot.lane.b32.xlu0 %v3128, 127
  %v3269 = vpop.permute.xlu0 %3268
  %3270 = vrot.lane.b32.xlu0 %v3132, 127
  %v3271 = vpop.permute.xlu0 %3270
  %3272 = vrot.lane.b32.xlu0 %v3129, 127
  %v3273 = vpop.permute.xlu0 %3272
  %3274 = vrot.lane.b32.xlu0 %v3133, 127
  %v3275 = vpop.permute.xlu0 %3274
  %3276 = vrot.lane.b32.xlu0 %v3130, 127
  %v3277 = vpop.permute.xlu0 %3276
  %3278 = vrot.lane.b32.xlu0 %v3134, 127
  %v3279 = vpop.permute.xlu0 %3278
  %3280 = vrot.lane.b32.xlu0 %v3131, 127
  %v3281 = vpop.permute.xlu0 %3280
  %3282 = vrot.lane.b32.xlu0 %v3135, 127
  %v3283 = vpop.permute.xlu0 %3282
  %v3284 = vsel %vm309, %v3277, %v3281
  %v3285 = vsel %vm309, %v3279, %v3283
  %v3286 = vsel %vm309, %v3273, %v3277
  %v3287 = vsel %vm309, %v3275, %v3279
  %v3288 = vsel %vm309, %v3269, %v3273
  %v3289 = vsel %vm309, %v3271, %v3275
  %v3290 = vsel %vm309, %v3281, %v3269
  %v3291 = vsel %vm309, %v3283, %v3271
  %v3292 = vmul.f32 %v3288, %v162
  %v3293 = vmul.f32 %v3286, %v163
  %v3294 = vmul.f32 %v3284, %v164
  %v3295 = vmul.f32 %v3290, %v165
  %v3296 = vmul.f32 %v3289, %v162
  %v3297 = vmul.f32 %v3287, %v163
  %v3298 = vmul.f32 %v3285, %v164
  %v3299 = vmul.f32 %v3291, %v165
  %3300 = vrot.lane.b32.xlu0 %v3128, 113
  %v3301 = vpop.permute.xlu0 %3300
  %3302 = vrot.lane.b32.xlu0 %v3132, 113
  %v3303 = vpop.permute.xlu0 %3302
  %3304 = vrot.lane.b32.xlu0 %v3129, 113
  %v3305 = vpop.permute.xlu0 %3304
  %3306 = vrot.lane.b32.xlu0 %v3133, 113
  %v3307 = vpop.permute.xlu0 %3306
  %3308 = vrot.lane.b32.xlu0 %v3130, 113
  %v3309 = vpop.permute.xlu0 %3308
  %3310 = vrot.lane.b32.xlu0 %v3134, 113
  %v3311 = vpop.permute.xlu0 %3310
  %3312 = vrot.lane.b32.xlu0 %v3131, 113
  %v3313 = vpop.permute.xlu0 %3312
  %3314 = vrot.lane.b32.xlu0 %v3135, 113
  %v3315 = vpop.permute.xlu0 %3314
  %v3316 = vsel %vm326, %v3309, %v3313
  %v3317 = vsel %vm326, %v3311, %v3315
  %v3318 = vsel %vm326, %v3305, %v3309
  %v3319 = vsel %vm326, %v3307, %v3311
  %v3320 = vsel %vm326, %v3301, %v3305
  %v3321 = vsel %vm326, %v3303, %v3307
  %v3322 = vsel %vm326, %v3313, %v3301
  %v3323 = vsel %vm326, %v3315, %v3303
  %v3324 = vmul.f32 %v3320, %v174
  %v3325 = vmul.f32 %v3318, %v175
  %v3326 = vmul.f32 %v3316, %v176
  %v3327 = vmul.f32 %v3322, %v177
  %v3328 = vmul.f32 %v3321, %v174
  %v3329 = vmul.f32 %v3319, %v175
  %v3330 = vmul.f32 %v3317, %v176
  %v3331 = vmul.f32 %v3323, %v177
  %3332 = vrot.lane.b32.xlu0 %v3128, 112
  %v3333 = vpop.permute.xlu0 %3332
  %3334 = vrot.lane.b32.xlu0 %v3132, 112
  %v3335 = vpop.permute.xlu0 %3334
  %3336 = vrot.lane.b32.xlu0 %v3129, 112
  %v3337 = vpop.permute.xlu0 %3336
  %3338 = vrot.lane.b32.xlu0 %v3133, 112
  %v3339 = vpop.permute.xlu0 %3338
  %3340 = vrot.lane.b32.xlu0 %v3130, 112
  %v3341 = vpop.permute.xlu0 %3340
  %3342 = vrot.lane.b32.xlu0 %v3134, 112
  %v3343 = vpop.permute.xlu0 %3342
  %3344 = vrot.lane.b32.xlu0 %v3131, 112
  %v3345 = vpop.permute.xlu0 %3344
  %3346 = vrot.lane.b32.xlu0 %v3135, 112
  %v3347 = vpop.permute.xlu0 %3346
  %v3348 = vsel %vm343, %v3341, %v3345
  %v3349 = vsel %vm343, %v3343, %v3347
  %v3350 = vsel %vm343, %v3337, %v3341
  %v3351 = vsel %vm343, %v3339, %v3343
  %v3352 = vsel %vm343, %v3333, %v3337
  %v3353 = vsel %vm343, %v3335, %v3339
  %v3354 = vsel %vm343, %v3345, %v3333
  %v3355 = vsel %vm343, %v3347, %v3335
  %v3356 = vmul.f32 %v3352, %v182
  %v3357 = vmul.f32 %v3350, %v183
  %v3358 = vmul.f32 %v3348, %v184
  %v3359 = vmul.f32 %v3354, %v185
  %v3360 = vmul.f32 %v3353, %v182
  %v3361 = vmul.f32 %v3351, %v183
  %v3362 = vmul.f32 %v3349, %v184
  %v3363 = vmul.f32 %v3355, %v185
  %3364 = vrot.lane.b32.xlu0 %v3128, 111
  %v3365 = vpop.permute.xlu0 %3364
  %3366 = vrot.lane.b32.xlu0 %v3132, 111
  %v3367 = vpop.permute.xlu0 %3366
  %3368 = vrot.lane.b32.xlu0 %v3129, 111
  %v3369 = vpop.permute.xlu0 %3368
  %3370 = vrot.lane.b32.xlu0 %v3133, 111
  %v3371 = vpop.permute.xlu0 %3370
  %3372 = vrot.lane.b32.xlu0 %v3130, 111
  %v3373 = vpop.permute.xlu0 %3372
  %3374 = vrot.lane.b32.xlu0 %v3134, 111
  %v3375 = vpop.permute.xlu0 %3374
  %3376 = vrot.lane.b32.xlu0 %v3131, 111
  %v3377 = vpop.permute.xlu0 %3376
  %3378 = vrot.lane.b32.xlu0 %v3135, 111
  %v3379 = vpop.permute.xlu0 %3378
  %v3380 = vsel %vm360, %v3373, %v3377
  %v3381 = vsel %vm360, %v3375, %v3379
  %v3382 = vsel %vm360, %v3369, %v3373
  %v3383 = vsel %vm360, %v3371, %v3375
  %v3384 = vsel %vm360, %v3365, %v3369
  %v3385 = vsel %vm360, %v3367, %v3371
  %v3386 = vsel %vm360, %v3377, %v3365
  %v3387 = vsel %vm360, %v3379, %v3367
  %v3388 = vmul.f32 %v3384, %v194
  %v3389 = vmul.f32 %v3382, %v195
  %v3390 = vmul.f32 %v3380, %v196
  %v3391 = vmul.f32 %v3386, %v197
  %v3392 = vmul.f32 %v3385, %v194
  %v3393 = vmul.f32 %v3383, %v195
  %v3394 = vmul.f32 %v3381, %v196
  %v3395 = vmul.f32 %v3387, %v197
  %v3396 = vpack.c.bf16 %v3168, %v3164
  %v3397 = vpack.c.bf16 %v3169, %v3165
  %v3398 = vpack.c.bf16 %v3170, %v3166
  %v3399 = vpack.c.bf16 %v3171, %v3167
  %v3400 = vpack.c.bf16 %v3200, %v3196
  %v3401 = vpack.c.bf16 %v3201, %v3197
  %v3402 = vpack.c.bf16 %v3202, %v3198
  %v3403 = vpack.c.bf16 %v3203, %v3199
  %v3404 = vpack.c.bf16 %v3232, %v3228
  %v3405 = vpack.c.bf16 %v3233, %v3229
  %v3406 = vpack.c.bf16 %v3234, %v3230
  %v3407 = vpack.c.bf16 %v3235, %v3231
  %v3408 = vpack.c.bf16 %v3264, %v3260
  %v3409 = vpack.c.bf16 %v3265, %v3261
  %v3410 = vpack.c.bf16 %v3266, %v3262
  %v3411 = vpack.c.bf16 %v3267, %v3263
  %v3412 = vpack.c.bf16 %v3132, %v3128
  %v3413 = vpack.c.bf16 %v3133, %v3129
  %v3414 = vpack.c.bf16 %v3134, %v3130
  %v3415 = vpack.c.bf16 %v3135, %v3131
  %v3416 = vpack.c.bf16 %v3296, %v3292
  %v3417 = vpack.c.bf16 %v3297, %v3293
  %v3418 = vpack.c.bf16 %v3298, %v3294
  %v3419 = vpack.c.bf16 %v3299, %v3295
  %v3420 = vpack.c.bf16 %v3328, %v3324
  %v3421 = vpack.c.bf16 %v3329, %v3325
  %v3422 = vpack.c.bf16 %v3330, %v3326
  %v3423 = vpack.c.bf16 %v3331, %v3327
  %v3424 = vpack.c.bf16 %v3360, %v3356
  %v3425 = vpack.c.bf16 %v3361, %v3357
  %v3426 = vpack.c.bf16 %v3362, %v3358
  %v3427 = vpack.c.bf16 %v3363, %v3359
  %v3428 = vpack.c.bf16 %v3392, %v3388
  %v3429 = vpack.c.bf16 %v3393, %v3389
  %v3430 = vpack.c.bf16 %v3394, %v3390
  %v3431 = vpack.c.bf16 %v3395, %v3391
  %3433 = vset.pattern.permute.xlu0 0
  %3434 = vperm.xlu0 %3433, %v3138
  %v3435 = vpop.permute.xlu0 %3434
  %3438 = vset.pattern.permute.xlu0 0
  %3439 = vperm.xlu0 %3438, %v3139
  %v3440 = vpop.permute.xlu0 %3439
  %v3444 = vunpack.c.l.b16 %v3136
  %v3445 = vunpack.c.h.b16 %v3136
  %v3446 = vunpack.c.l.b16 %v3137
  %v3447 = vunpack.c.h.b16 %v3137
  %v3448 = vpack.c.b16 %v3446, %v3444
  %v3449 = vpack.c.b16 %v3447, %v3445
  %v3452 = vsel %vm830, %v3449, 0
  %3454 = vmatprep.subr.bf16.mxu0 %v3397
  %3455 = vmatpush1.bf16.msra.mxu0 %v3396
  %3456 = vmatprep.subr.bf16.mxu0 %v3401
  %3457 = vmatpush1.bf16.msra.mxu0 %v3400
  %3458 = vmatprep.subr.bf16.mxu0 %v3405
  %3459 = vmatpush1.bf16.msra.mxu0 %v3404
  %3460 = vmatprep.subr.bf16.mxu0 %v3409
  %3461 = vmatpush1.bf16.msra.mxu0 %v3408
  %3462 = vmatprep.subr.bf16.mxu0 %v3413
  %3463 = vmatpush1.bf16.msra.mxu0 %v3412
  %3464 = vmatprep.subr.bf16.mxu0 %v3417
  %3465 = vmatpush1.bf16.msra.mxu0 %v3416
  %3466 = vmatprep.subr.bf16.mxu0 %v3421
  %3467 = vmatpush1.bf16.msra.mxu0 %v3420
  %3468 = vmatprep.subr.bf16.mxu0 %v3425
  %3469 = vmatpush1.bf16.msra.mxu0 %v3424
  %3470 = vmatprep.subr.bf16.mxu0 %v3429
  %3471 = vmatpush1.bf16.msra.mxu0 %v3428
  %3472 = vmatprep.subr.bf16.mxu0 0
  %3473 = vmatpush1.bf16.msra.mxu0 0
  %3474 = vmatprep.subr.bf16.mxu0 0
  %3475 = vmatpush1.bf16.msra.mxu0 0
  %3476 = vmatprep.subr.bf16.mxu0 0
  %3477 = vmatpush1.bf16.msra.mxu0 0
  %3478 = vmatprep.subr.bf16.mxu0 0
  %3479 = vmatpush1.bf16.msra.mxu0 0
  %3480 = vmatprep.subr.bf16.mxu0 0
  %3481 = vmatpush1.bf16.msra.mxu0 0
  %3482 = vmatprep.subr.bf16.mxu0 0
  %3483 = vmatpush1.bf16.msra.mxu0 0
  %3484 = vmatprep.subr.bf16.mxu0 0
  %3485 = vmatpush1.bf16.msra.mxu0 0
  %3486 = vmatprep.mubr.bf16.mxu0 %v3452
  %3487 = vmatmul.mubr.bf16.gmra.mrb[0].mxu0 %v3448
  %v3488 = vpop.f32.mrb[0].mxu0
  %v3489 = vadd.f32 %v3435, %v3488
  %v3490 = vpop.f32.mrb[0].mxu0
  %v3491 = vadd.f32 %v3435, %v3490
  %v3492 = vpop.f32.mrb[0].mxu0
  %v3493 = vadd.f32 %v3440, %v3492
  %v3494 = vpop.f32.mrb[0].mxu0
  %v3495 = vadd.f32 %v3440, %v3494
  %3496 = vdwg.mxu0
  %3497 = vmatprep.subr.bf16.mxu0 %v3399
  %3498 = vmatpush1.bf16.msra.mxu0 %v3398
  %3499 = vmatprep.subr.bf16.mxu0 %v3403
  %3500 = vmatpush1.bf16.msra.mxu0 %v3402
  %3501 = vmatprep.subr.bf16.mxu0 %v3407
  %3502 = vmatpush1.bf16.msra.mxu0 %v3406
  %3503 = vmatprep.subr.bf16.mxu0 %v3411
  %3504 = vmatpush1.bf16.msra.mxu0 %v3410
  %3505 = vmatprep.subr.bf16.mxu0 %v3415
  %3506 = vmatpush1.bf16.msra.mxu0 %v3414
  %3507 = vmatprep.subr.bf16.mxu0 %v3419
  %3508 = vmatpush1.bf16.msra.mxu0 %v3418
  %3509 = vmatprep.subr.bf16.mxu0 %v3423
  %3510 = vmatpush1.bf16.msra.mxu0 %v3422
  %3511 = vmatprep.subr.bf16.mxu0 %v3427
  %3512 = vmatpush1.bf16.msra.mxu0 %v3426
  %3513 = vmatprep.subr.bf16.mxu0 %v3431
  %3514 = vmatpush1.bf16.msra.mxu0 %v3430
  %3515 = vmatprep.subr.bf16.mxu0 0
  %3516 = vmatpush1.bf16.msra.mxu0 0
  %3517 = vmatprep.subr.bf16.mxu0 0
  %3518 = vmatpush1.bf16.msra.mxu0 0
  %3519 = vmatprep.subr.bf16.mxu0 0
  %3520 = vmatpush1.bf16.msra.mxu0 0
  %3521 = vmatprep.subr.bf16.mxu0 0
  %3522 = vmatpush1.bf16.msra.mxu0 0
  %3523 = vmatprep.subr.bf16.mxu0 0
  %3524 = vmatpush1.bf16.msra.mxu0 0
  %3525 = vmatprep.subr.bf16.mxu0 0
  %3526 = vmatpush1.bf16.msra.mxu0 0
  %3527 = vmatprep.subr.bf16.mxu0 0
  %3528 = vmatpush1.bf16.msra.mxu0 0
  %3529 = vmatprep.mubr.bf16.mxu0 %v3452
  %3530 = vmatmul.mubr.bf16.gmra.mrb[0].mxu0 %v3448
  %v3531 = vpop.f32.mrb[0].mxu0
  %v3532 = vadd.f32 %v3435, %v3531
  %v3533 = vpop.f32.mrb[0].mxu0
  %v3534 = vadd.f32 %v3435, %v3533
  %v3535 = vpop.f32.mrb[0].mxu0
  %v3536 = vadd.f32 %v3440, %v3535
  %v3537 = vpop.f32.mrb[0].mxu0
  %v3538 = vadd.f32 %v3440, %v3537
  %3539 = vdwg.mxu0
  %v3540 = vmax.f32 %v3489, 0.0
  %v3541 = vmax.f32 %v3491, 0.0
  %v3542 = vmax.f32 %v3532, 0.0
  %v3543 = vmax.f32 %v3534, 0.0
  %v3544 = vmax.f32 %v3493, 0.0
  %v3545 = vmax.f32 %v3495, 0.0
  %v3546 = vmax.f32 %v3536, 0.0
  %v3547 = vmax.f32 %v3538, 0.0
  %v3548 = vld [vmem:[%s3] sm:$0xff]
  %v3549 = vld [vmem:[%s3 + $0x8] sm:$0xff]
  %v3550 = vld [vmem:[%s3 + $0x10] sm:$0xff]
  %v3551 = vld [vmem:[%s3 + $0x18] sm:$0xff]
  %v3552 = vld [vmem:[%s3 + $0x20] sm:$0xff]
  %v3553 = vld [vmem:[%s3 + $0x28] sm:$0xff]
  %v3554 = vld [vmem:[%s3 + $0x30] sm:$0xff]
  %v3555 = vld [vmem:[%s3 + $0x38] sm:$0xff]
  %v3556 = vld [vmem:[%s3 + $0x40] sm:$0xff]
  %v3557 = vld [vmem:[%s3 + $0x48] sm:$0xff]
  %v3558 = vld [vmem:[%s3 + $0x50] sm:$0xff]
  %v3559 = vld [vmem:[%s3 + $0x58] sm:$0xff]
  %v3560 = vld [vmem:[%s3 + $0x60] sm:$0xff]
  %v3561 = vld [vmem:[%s3 + $0x68] sm:$0xff]
  %v3562 = vld [vmem:[%s3 + $0x70] sm:$0xff]
  %v3563 = vld [vmem:[%s3 + $0x78] sm:$0xff]
  %v3564 = vld [vmem:[%s3 + $0x80] sm:$0xff]
  %v3565 = vld [vmem:[%s3 + $0x88] sm:$0xff]
  %v3566 = vld [vmem:[%s3 + $0x90] sm:$0xff]
  %v3567 = vld [vmem:[%s3 + $0x98] sm:$0xff]
  %v3568 = vld [vmem:[%s3 + $0xa0] sm:$0xff]
  %v3569 = vld [vmem:[%s3 + $0xa8] sm:$0xff]
  %v3570 = vld [vmem:[%s3 + $0xb0] sm:$0xff]
  %v3571 = vld [vmem:[%s3 + $0xb8] sm:$0xff]
  %v3572 = vld [vmem:[%s3 + $0xc0] sm:$0xff]
  %v3573 = vld [vmem:[%s3 + $0xc8] sm:$0xff]
  %v3574 = vld [vmem:[%s3 + $0xd0] sm:$0xff]
  %v3575 = vld [vmem:[%s3 + $0xd8] sm:$0xff]
  %v3576 = vld [vmem:[%s3 + $0xe0] sm:$0xff]
  %v3577 = vld [vmem:[%s3 + $0xe8] sm:$0xff]
  %v3578 = vld [vmem:[%s3 + $0xf0] sm:$0xff]
  %v3579 = vld [vmem:[%s3 + $0xf8] sm:$0xff]
  %v3580 = vld [vmem:[%s3 + $0x100] sm:$0xff]
  %v3581 = vld [vmem:[%s3 + $0x108] sm:$0xff]
  %v3582 = vld [vmem:[%s3 + $0x110] sm:$0xff]
  %v3583 = vld [vmem:[%s3 + $0x118] sm:$0xff]
  %v3584 = vld [vmem:[%s3 + $0x120] sm:$0xff]
  %v3585 = vld [vmem:[%s3 + $0x128] sm:$0xff]
  %v3586 = vld [vmem:[%s3 + $0x130] sm:$0xff]
  %v3587 = vld [vmem:[%s3 + $0x138] sm:$0xff]
  %v3588 = vld [vmem:[%s3 + $0x140] sm:$0xff]
  %v3589 = vld [vmem:[%s3 + $0x148] sm:$0xff]
  %v3590 = vld [vmem:[%s3 + $0x150] sm:$0xff]
  %v3591 = vld [vmem:[%s3 + $0x158] sm:$0xff]
  %v3592 = vld [vmem:[%s3 + $0x160] sm:$0xff]
  %v3593 = vld [vmem:[%s3 + $0x168] sm:$0xff]
  %v3594 = vld [vmem:[%s3 + $0x170] sm:$0xff]
  %v3595 = vld [vmem:[%s3 + $0x178] sm:$0xff]
  %v3596 = vld [vmem:[%s3 + $0x180] sm:$0xff]
  %v3597 = vld [vmem:[%s3 + $0x188] sm:$0xff]
  %v3598 = vld [vmem:[%s3 + $0x190] sm:$0xff]
  %v3599 = vld [vmem:[%s3 + $0x198] sm:$0xff]
  %v3600 = vld [vmem:[%s3 + $0x1a0] sm:$0xff]
  %v3601 = vld [vmem:[%s3 + $0x1a8] sm:$0xff]
  %v3602 = vld [vmem:[%s3 + $0x1b0] sm:$0xff]
  %v3603 = vld [vmem:[%s3 + $0x1b8] sm:$0xff]
  %v3604 = vld [vmem:[%s3 + $0x1c0] sm:$0xff]
  %v3605 = vld [vmem:[%s3 + $0x1c8] sm:$0xff]
  %v3606 = vld [vmem:[%s3 + $0x1d0] sm:$0xff]
  %v3607 = vld [vmem:[%s3 + $0x1d8] sm:$0xff]
  %v3608 = vld [vmem:[%s3 + $0x1e0] sm:$0xff]
  %v3609 = vld [vmem:[%s3 + $0x1e8] sm:$0xff]
  %v3610 = vld [vmem:[%s3 + $0x1f0] sm:$0xff]
  %v3611 = vld [vmem:[%s3 + $0x1f8] sm:$0xff]
  %3612 = vmatprep.subr.mxu0 0.0
  %3613 = vmatpush1.msra.mxu0 %v3548
  %3614 = vmatprep.subr.mxu0 0.0
  %3615 = vmatpush1.msra.mxu0 %v3549
  %3616 = vmatprep.subr.mxu0 0.0
  %3617 = vmatpush1.msra.mxu0 %v3550
  %3618 = vmatprep.subr.mxu0 0.0
  %3619 = vmatpush1.msra.mxu0 %v3551
  %3620 = vmatprep.subr.mxu0 0.0
  %3621 = vmatpush1.msra.mxu0 %v3552
  %3622 = vmatprep.subr.mxu0 0.0
  %3623 = vmatpush1.msra.mxu0 %v3553
  %3624 = vmatprep.subr.mxu0 0.0
  %3625 = vmatpush1.msra.mxu0 %v3554
  %3626 = vmatprep.subr.mxu0 0.0
  %3627 = vmatpush1.msra.mxu0 %v3555
  %3628 = vmatprep.subr.mxu0 0.0
  %3629 = vmatpush1.msra.mxu0 %v3556
  %3630 = vmatprep.subr.mxu0 0.0
  %3631 = vmatpush1.msra.mxu0 %v3557
  %3632 = vmatprep.subr.mxu0 0.0
  %3633 = vmatpush1.msra.mxu0 %v3558
  %3634 = vmatprep.subr.mxu0 0.0
  %3635 = vmatpush1.msra.mxu0 %v3559
  %3636 = vmatprep.subr.mxu0 0.0
  %3637 = vmatpush1.msra.mxu0 %v3560
  %3638 = vmatprep.subr.mxu0 0.0
  %3639 = vmatpush1.msra.mxu0 %v3561
  %3640 = vmatprep.subr.mxu0 0.0
  %3641 = vmatpush1.msra.mxu0 %v3562
  %3642 = vmatprep.subr.mxu0 0.0
  %3643 = vmatpush1.msra.mxu0 %v3563
  %3644 = vmatprep.subr.mxu0 0.0
  %3645 = vmatpush1.msra.mxu0 %v3564
  %3646 = vmatprep.subr.mxu0 0.0
  %3647 = vmatpush1.msra.mxu0 %v3565
  %3648 = vmatprep.subr.mxu0 0.0
  %3649 = vmatpush1.msra.mxu0 %v3566
  %3650 = vmatprep.subr.mxu0 0.0
  %3651 = vmatpush1.msra.mxu0 %v3567
  %3652 = vmatprep.subr.mxu0 0.0
  %3653 = vmatpush1.msra.mxu0 %v3568
  %3654 = vmatprep.subr.mxu0 0.0
  %3655 = vmatpush1.msra.mxu0 %v3569
  %3656 = vmatprep.subr.mxu0 0.0
  %3657 = vmatpush1.msra.mxu0 %v3570
  %3658 = vmatprep.subr.mxu0 0.0
  %3659 = vmatpush1.msra.mxu0 %v3571
  %3660 = vmatprep.subr.mxu0 0.0
  %3661 = vmatpush1.msra.mxu0 %v3572
  %3662 = vmatprep.subr.mxu0 0.0
  %3663 = vmatpush1.msra.mxu0 %v3573
  %3664 = vmatprep.subr.mxu0 0.0
  %3665 = vmatpush1.msra.mxu0 %v3574
  %3666 = vmatprep.subr.mxu0 0.0
  %3667 = vmatpush1.msra.mxu0 %v3575
  %3668 = vmatprep.subr.mxu0 0.0
  %3669 = vmatpush1.msra.mxu0 %v3576
  %3670 = vmatprep.subr.mxu0 0.0
  %3671 = vmatpush1.msra.mxu0 %v3577
  %3672 = vmatprep.subr.mxu0 0.0
  %3673 = vmatpush1.msra.mxu0 %v3578
  %3674 = vmatprep.subr.mxu0 0.0
  %3675 = vmatpush1.msra.mxu0 %v3579
  %3676 = vmatprep.mubr.f32.mxu0 %v3541
  %3677 = vmatmul.mubr.f32.gmra.mrb[0].mxu0 %v3540
  %v3678 = vpop.f32.mrb[0].mxu0
  %v3679 = vadd.f32 0.0, %v3678
  %v3680 = vpop.f32.mrb[0].mxu0
  %3681 = vmatprep.mubr.f32.mxu0 %v3545
  %3682 = vmatmul.mubr.f32.gmra.mrb[0].mxu0 %v3544
  %v3683 = vpop.f32.mrb[0].mxu0
  %v3684 = vadd.f32 0.0, %v3683
  %v3685 = vpop.f32.mrb[0].mxu0
  %3686 = vdwg.mxu0
  %3687 = vmatprep.subr.mxu0 0.0
  %3688 = vmatpush1.msra.mxu0 %v3580
  %3689 = vmatprep.subr.mxu0 0.0
  %3690 = vmatpush1.msra.mxu0 %v3581
  %3691 = vmatprep.subr.mxu0 0.0
  %3692 = vmatpush1.msra.mxu0 %v3582
  %3693 = vmatprep.subr.mxu0 0.0
  %3694 = vmatpush1.msra.mxu0 %v3583
  %3695 = vmatprep.subr.mxu0 0.0
  %3696 = vmatpush1.msra.mxu0 %v3584
  %3697 = vmatprep.subr.mxu0 0.0
  %3698 = vmatpush1.msra.mxu0 %v3585
  %3699 = vmatprep.subr.mxu0 0.0
  %3700 = vmatpush1.msra.mxu0 %v3586
  %3701 = vmatprep.subr.mxu0 0.0
  %3702 = vmatpush1.msra.mxu0 %v3587
  %3703 = vmatprep.subr.mxu0 0.0
  %3704 = vmatpush1.msra.mxu0 %v3588
  %3705 = vmatprep.subr.mxu0 0.0
  %3706 = vmatpush1.msra.mxu0 %v3589
  %3707 = vmatprep.subr.mxu0 0.0
  %3708 = vmatpush1.msra.mxu0 %v3590
  %3709 = vmatprep.subr.mxu0 0.0
  %3710 = vmatpush1.msra.mxu0 %v3591
  %3711 = vmatprep.subr.mxu0 0.0
  %3712 = vmatpush1.msra.mxu0 %v3592
  %3713 = vmatprep.subr.mxu0 0.0
  %3714 = vmatpush1.msra.mxu0 %v3593
  %3715 = vmatprep.subr.mxu0 0.0
  %3716 = vmatpush1.msra.mxu0 %v3594
  %3717 = vmatprep.subr.mxu0 0.0
  %3718 = vmatpush1.msra.mxu0 %v3595
  %3719 = vmatprep.subr.mxu0 0.0
  %3720 = vmatpush1.msra.mxu0 %v3596
  %3721 = vmatprep.subr.mxu0 0.0
  %3722 = vmatpush1.msra.mxu0 %v3597
  %3723 = vmatprep.subr.mxu0 0.0
  %3724 = vmatpush1.msra.mxu0 %v3598
  %3725 = vmatprep.subr.mxu0 0.0
  %3726 = vmatpush1.msra.mxu0 %v3599
  %3727 = vmatprep.subr.mxu0 0.0
  %3728 = vmatpush1.msra.mxu0 %v3600
  %3729 = vmatprep.subr.mxu0 0.0
  %3730 = vmatpush1.msra.mxu0 %v3601
  %3731 = vmatprep.subr.mxu0 0.0
  %3732 = vmatpush1.msra.mxu0 %v3602
  %3733 = vmatprep.subr.mxu0 0.0
  %3734 = vmatpush1.msra.mxu0 %v3603
  %3735 = vmatprep.subr.mxu0 0.0
  %3736 = vmatpush1.msra.mxu0 %v3604
  %3737 = vmatprep.subr.mxu0 0.0
  %3738 = vmatpush1.msra.mxu0 %v3605
  %3739 = vmatprep.subr.mxu0 0.0
  %3740 = vmatpush1.msra.mxu0 %v3606
  %3741 = vmatprep.subr.mxu0 0.0
  %3742 = vmatpush1.msra.mxu0 %v3607
  %3743 = vmatprep.subr.mxu0 0.0
  %3744 = vmatpush1.msra.mxu0 %v3608
  %3745 = vmatprep.subr.mxu0 0.0
  %3746 = vmatpush1.msra.mxu0 %v3609
  %3747 = vmatprep.subr.mxu0 0.0
  %3748 = vmatpush1.msra.mxu0 %v3610
  %3749 = vmatprep.subr.mxu0 0.0
  %3750 = vmatpush1.msra.mxu0 %v3611
  %3751 = vmatprep.mubr.f32.mxu0 %v3543
  %3752 = vmatmul.mubr.f32.gmra.mrb[0].mxu0 %v3542
  %v3753 = vpop.f32.mrb[0].mxu0
  %v3754 = vadd.f32 %v3679, %v3753
  %v3755 = vpop.f32.mrb[0].mxu0
  %3756 = vmatprep.mubr.f32.mxu0 %v3547
  %3757 = vmatmul.mubr.f32.gmra.mrb[0].mxu0 %v3546
  %v3758 = vpop.f32.mrb[0].mxu0
  %v3759 = vadd.f32 %v3684, %v3758
  %v3760 = vpop.f32.mrb[0].mxu0
  %3761 = vdwg.mxu0
  %v3762 = vld [vmem:[%s17] sm:$0xf]
  %v3763 = vld [vmem:[%s18] sm:$0xf]
  %3765 = vset.pattern.permute.xlu0 0
  %3766 = vperm.xlu0 %3765, %v3763
  %v3767 = vpop.permute.xlu0 %3766
  %v3770 = vsel %vm830, %v3762, 0
  %3772 = vmatprep.subr.mxu0 0.0
  %3773 = vmatpush1.msra.mxu0 %v3754
  %3774 = vmatprep.subr.mxu0 0.0
  %3775 = vmatpush1.msra.mxu0 %v3759
  %3776 = vmatprep.subr.mxu0 0.0
  %3777 = vmatpush1.msra.mxu0 0.0
  %3778 = vmatprep.subr.mxu0 0.0
  %3779 = vmatpush1.msra.mxu0 0.0
  %3780 = vmatprep.subr.mxu0 0.0
  %3781 = vmatpush1.msra.mxu0 0.0
  %3782 = vmatprep.subr.mxu0 0.0
  %3783 = vmatpush1.msra.mxu0 0.0
  %3784 = vmatprep.subr.mxu0 0.0
  %3785 = vmatpush1.msra.mxu0 0.0
  %3786 = vmatprep.subr.mxu0 0.0
  %3787 = vmatpush1.msra.mxu0 0.0
  %3788 = vmatprep.subr.mxu0 0.0
  %3789 = vmatpush1.msra.mxu0 0.0
  %3790 = vmatprep.subr.mxu0 0.0
  %3791 = vmatpush1.msra.mxu0 0.0
  %3792 = vmatprep.subr.mxu0 0.0
  %3793 = vmatpush1.msra.mxu0 0.0
  %3794 = vmatprep.subr.mxu0 0.0
  %3795 = vmatpush1.msra.mxu0 0.0
  %3796 = vmatprep.subr.mxu0 0.0
  %3797 = vmatpush1.msra.mxu0 0.0
  %3798 = vmatprep.subr.mxu0 0.0
  %3799 = vmatpush1.msra.mxu0 0.0
  %3800 = vmatprep.subr.mxu0 0.0
  %3801 = vmatpush1.msra.mxu0 0.0
  %3802 = vmatprep.subr.mxu0 0.0
  %3803 = vmatpush1.msra.mxu0 0.0
  %3804 = vmatprep.subr.mxu0 0.0
  %3805 = vmatpush1.msra.mxu0 0.0
  %3806 = vmatprep.subr.mxu0 0.0
  %3807 = vmatpush1.msra.mxu0 0.0
  %3808 = vmatprep.subr.mxu0 0.0
  %3809 = vmatpush1.msra.mxu0 0.0
  %3810 = vmatprep.subr.mxu0 0.0
  %3811 = vmatpush1.msra.mxu0 0.0
  %3812 = vmatprep.subr.mxu0 0.0
  %3813 = vmatpush1.msra.mxu0 0.0
  %3814 = vmatprep.subr.mxu0 0.0
  %3815 = vmatpush1.msra.mxu0 0.0
  %3816 = vmatprep.subr.mxu0 0.0
  %3817 = vmatpush1.msra.mxu0 0.0
  %3818 = vmatprep.subr.mxu0 0.0
  %3819 = vmatpush1.msra.mxu0 0.0
  %3820 = vmatprep.subr.mxu0 0.0
  %3821 = vmatpush1.msra.mxu0 0.0
  %3822 = vmatprep.subr.mxu0 0.0
  %3823 = vmatpush1.msra.mxu0 0.0
  %3824 = vmatprep.subr.mxu0 0.0
  %3825 = vmatpush1.msra.mxu0 0.0
  %3826 = vmatprep.subr.mxu0 0.0
  %3827 = vmatpush1.msra.mxu0 0.0
  %3828 = vmatprep.subr.mxu0 0.0
  %3829 = vmatpush1.msra.mxu0 0.0
  %3830 = vmatprep.subr.mxu0 0.0
  %3831 = vmatpush1.msra.mxu0 0.0
  %3832 = vmatprep.subr.mxu0 0.0
  %3833 = vmatpush1.msra.mxu0 0.0
  %3834 = vmatprep.subr.mxu0 0.0
  %3835 = vmatpush1.msra.mxu0 0.0
  %3836 = vmatprep.mubr.f32.mxu0 0.0
  %3837 = vmatmul.mubr.f32.gmra.mrb[0].mxu0 %v3770
  %v3838 = vpop.f32.mrb[0].mxu0
  %v3839 = vadd.f32 %v3767, %v3838
  %v3840 = vpop.f32.mrb[0].mxu0
  %3841 = vdwg.mxu0
  %v3842 = vmax.f32 %v3839, 0.0
  %v3843 = vld [vmem:[%s19] sm:$0xff]
  %v3844 = vld [vmem:[%s19 + $0x8] sm:$0xff]
  %v3845 = vld [vmem:[%s20] sm:$0xff]
  %v3846 = vld [vmem:[%s20 + $0x8] sm:$0xff]
  %3848 = vset.pattern.permute.xlu0 0
  %3849 = vperm.xlu0 %3848, %v3845
  %v3850 = vpop.permute.xlu0 %3849
  %3853 = vset.pattern.permute.xlu0 0
  %3854 = vperm.xlu0 %3853, %v3846
  %v3855 = vpop.permute.xlu0 %3854
  %vm3857 = vcmask 31744
  %v3859 = vsel %vm3857, %v3843, 0
  %v3862 = vsel %vm3857, %v3844, 0
  %v3865 = vsel %vm408, %v3842, 0
  %3867 = vmatprep.subr.mxu0 0.0
  %3868 = vmatpush1.msra.mxu0 %v3865
  %3869 = vmatprep.subr.mxu0 0.0
  %3870 = vmatpush1.msra.mxu0 0.0
  %3871 = vmatprep.subr.mxu0 0.0
  %3872 = vmatpush1.msra.mxu0 0.0
  %3873 = vmatprep.subr.mxu0 0.0
  %3874 = vmatpush1.msra.mxu0 0.0
  %3875 = vmatprep.subr.mxu0 0.0
  %3876 = vmatpush1.msra.mxu0 0.0
  %3877 = vmatprep.subr.mxu0 0.0
  %3878 = vmatpush1.msra.mxu0 0.0
  %3879 = vmatprep.subr.mxu0 0.0
  %3880 = vmatpush1.msra.mxu0 0.0
  %3881 = vmatprep.subr.mxu0 0.0
  %3882 = vmatpush1.msra.mxu0 0.0
  %3883 = vmatprep.subr.mxu0 0.0
  %3884 = vmatpush1.msra.mxu0 0.0
  %3885 = vmatprep.subr.mxu0 0.0
  %3886 = vmatpush1.msra.mxu0 0.0
  %3887 = vmatprep.subr.mxu0 0.0
  %3888 = vmatpush1.msra.mxu0 0.0
  %3889 = vmatprep.subr.mxu0 0.0
  %3890 = vmatpush1.msra.mxu0 0.0
  %3891 = vmatprep.subr.mxu0 0.0
  %3892 = vmatpush1.msra.mxu0 0.0
  %3893 = vmatprep.subr.mxu0 0.0
  %3894 = vmatpush1.msra.mxu0 0.0
  %3895 = vmatprep.subr.mxu0 0.0
  %3896 = vmatpush1.msra.mxu0 0.0
  %3897 = vmatprep.subr.mxu0 0.0
  %3898 = vmatpush1.msra.mxu0 0.0
  %3899 = vmatprep.subr.mxu0 0.0
  %3900 = vmatpush1.msra.mxu0 0.0
  %3901 = vmatprep.subr.mxu0 0.0
  %3902 = vmatpush1.msra.mxu0 0.0
  %3903 = vmatprep.subr.mxu0 0.0
  %3904 = vmatpush1.msra.mxu0 0.0
  %3905 = vmatprep.subr.mxu0 0.0
  %3906 = vmatpush1.msra.mxu0 0.0
  %3907 = vmatprep.subr.mxu0 0.0
  %3908 = vmatpush1.msra.mxu0 0.0
  %3909 = vmatprep.subr.mxu0 0.0
  %3910 = vmatpush1.msra.mxu0 0.0
  %3911 = vmatprep.subr.mxu0 0.0
  %3912 = vmatpush1.msra.mxu0 0.0
  %3913 = vmatprep.subr.mxu0 0.0
  %3914 = vmatpush1.msra.mxu0 0.0
  %3915 = vmatprep.subr.mxu0 0.0
  %3916 = vmatpush1.msra.mxu0 0.0
  %3917 = vmatprep.subr.mxu0 0.0
  %3918 = vmatpush1.msra.mxu0 0.0
  %3919 = vmatprep.subr.mxu0 0.0
  %3920 = vmatpush1.msra.mxu0 0.0
  %3921 = vmatprep.subr.mxu0 0.0
  %3922 = vmatpush1.msra.mxu0 0.0
  %3923 = vmatprep.subr.mxu0 0.0
  %3924 = vmatpush1.msra.mxu0 0.0
  %3925 = vmatprep.subr.mxu0 0.0
  %3926 = vmatpush1.msra.mxu0 0.0
  %3927 = vmatprep.subr.mxu0 0.0
  %3928 = vmatpush1.msra.mxu0 0.0
  %3929 = vmatprep.subr.mxu0 0.0
  %3930 = vmatpush1.msra.mxu0 0.0
  %3931 = vmatprep.mubr.f32.mxu0 0.0
  %3932 = vmatmul.mubr.f32.gmra.mrb[0].mxu0 %v3859
  %v3933 = vpop.f32.mrb[0].mxu0
  %v3934 = vadd.f32 %v3850, %v3933
  %v3935 = vpop.f32.mrb[0].mxu0
  %3936 = vmatprep.mubr.f32.mxu0 0.0
  %3937 = vmatmul.mubr.f32.gmra.mrb[0].mxu0 %v3862
  %v3938 = vpop.f32.mrb[0].mxu0
  %v3939 = vadd.f32 %v3855, %v3938
  %v3940 = vpop.f32.mrb[0].mxu0
  %3941 = vdwg.mxu0
  %v3942 = vxor.u32 %v3934, 2147483648
  %v3943 = vxor.u32 %v3939, 2147483648
  %v3944 = vmul.f32 %v3942, 1.442695
  %v3945 = vpow.pop %v3944
  %v3946 = vmul.f32 %v3943, 1.442695
  %v3947 = vpow.pop %v3946
  %v3948 = vadd.f32 %v3945, 1.0
  %v3949 = vadd.f32 %v3947, 1.0
  %v3950 = vrcp.pop %v3948
  %v3951 = vmul.f32 1.0, %v3950
  %v3952 = vrcp.pop %v3949
  %v3953 = vmul.f32 1.0, %v3952
  %v3954 = vld [vmem:[%s4] sm:$0xff]
  %v3955 = vld [vmem:[%s21] sm:$0x1]
  %v3956 = vld [vmem:[#allocation2] sm:$0x1]
  %3958 = vset.pattern.permute.xlu0 0
  %3959 = vperm.xlu0 %3958, %v3956
  %v3960 = vpop.permute.xlu0 %3959
  %v3962 = vlaneseq
  %v3963 = vshrl.u32 %v3962, 7
  %v3964 = vsub.s32 0, %v3963
  %v3965 = vrot.slane %v3960, %v3964
  %v3967 = vsel %vm830, %v3955, 0
  %3969 = vmatprep.subr.mxu0 %v3541
  %3970 = vmatpush1.msra.mxu0 %v3540
  %3971 = vmatprep.subr.mxu0 %v3545
  %3972 = vmatpush1.msra.mxu0 %v3544
  %3973 = vmatprep.subr.mxu0 0.0
  %3974 = vmatpush1.msra.mxu0 0.0
  %3975 = vmatprep.subr.mxu0 0.0
  %3976 = vmatpush1.msra.mxu0 0.0
  %3977 = vmatprep.subr.mxu0 0.0
  %3978 = vmatpush1.msra.mxu0 0.0
  %3979 = vmatprep.subr.mxu0 0.0
  %3980 = vmatpush1.msra.mxu0 0.0
  %3981 = vmatprep.subr.mxu0 0.0
  %3982 = vmatpush1.msra.mxu0 0.0
  %3983 = vmatprep.subr.mxu0 0.0
  %3984 = vmatpush1.msra.mxu0 0.0
  %3985 = vmatprep.subr.mxu0 0.0
  %3986 = vmatpush1.msra.mxu0 0.0
  %3987 = vmatprep.subr.mxu0 0.0
  %3988 = vmatpush1.msra.mxu0 0.0
  %3989 = vmatprep.subr.mxu0 0.0
  %3990 = vmatpush1.msra.mxu0 0.0
  %3991 = vmatprep.subr.mxu0 0.0
  %3992 = vmatpush1.msra.mxu0 0.0
  %3993 = vmatprep.subr.mxu0 0.0
  %3994 = vmatpush1.msra.mxu0 0.0
  %3995 = vmatprep.subr.mxu0 0.0
  %3996 = vmatpush1.msra.mxu0 0.0
  %3997 = vmatprep.subr.mxu0 0.0
  %3998 = vmatpush1.msra.mxu0 0.0
  %3999 = vmatprep.subr.mxu0 0.0
  %4000 = vmatpush1.msra.mxu0 0.0
  %4001 = vmatprep.subr.mxu0 0.0
  %4002 = vmatpush1.msra.mxu0 0.0
  %4003 = vmatprep.subr.mxu0 0.0
  %4004 = vmatpush1.msra.mxu0 0.0
  %4005 = vmatprep.subr.mxu0 0.0
  %4006 = vmatpush1.msra.mxu0 0.0
  %4007 = vmatprep.subr.mxu0 0.0
  %4008 = vmatpush1.msra.mxu0 0.0
  %4009 = vmatprep.subr.mxu0 0.0
  %4010 = vmatpush1.msra.mxu0 0.0
  %4011 = vmatprep.subr.mxu0 0.0
  %4012 = vmatpush1.msra.mxu0 0.0
  %4013 = vmatprep.subr.mxu0 0.0
  %4014 = vmatpush1.msra.mxu0 0.0
  %4015 = vmatprep.subr.mxu0 0.0
  %4016 = vmatpush1.msra.mxu0 0.0
  %4017 = vmatprep.subr.mxu0 0.0
  %4018 = vmatpush1.msra.mxu0 0.0
  %4019 = vmatprep.subr.mxu0 0.0
  %4020 = vmatpush1.msra.mxu0 0.0
  %4021 = vmatprep.subr.mxu0 0.0
  %4022 = vmatpush1.msra.mxu0 0.0
  %4023 = vmatprep.subr.mxu0 0.0
  %4024 = vmatpush1.msra.mxu0 0.0
  %4025 = vmatprep.subr.mxu0 0.0
  %4026 = vmatpush1.msra.mxu0 0.0
  %4027 = vmatprep.subr.mxu0 0.0
  %4028 = vmatpush1.msra.mxu0 0.0
  %4029 = vmatprep.subr.mxu0 0.0
  %4030 = vmatpush1.msra.mxu0 0.0
  %4031 = vmatprep.subr.mxu0 0.0
  %4032 = vmatpush1.msra.mxu0 0.0
  %4033 = vmatprep.mubr.f32.mxu0 0.0
  %4034 = vmatmul.mubr.f32.gmra.mrb[0].mxu0 %v3967
  %v4035 = vpop.f32.mrb[0].mxu0
  %v4036 = vadd.f32 %v3965, %v4035
  %v4037 = vpop.f32.mrb[0].mxu0
  %v4038 = vadd.f32 %v3965, %v4037
  %4039 = vdwg.mxu0
  %4040 = vmatprep.subr.mxu0 %v3543
  %4041 = vmatpush1.msra.mxu0 %v3542
  %4042 = vmatprep.subr.mxu0 %v3547
  %4043 = vmatpush1.msra.mxu0 %v3546
  %4044 = vmatprep.subr.mxu0 0.0
  %4045 = vmatpush1.msra.mxu0 0.0
  %4046 = vmatprep.subr.mxu0 0.0
  %4047 = vmatpush1.msra.mxu0 0.0
  %4048 = vmatprep.subr.mxu0 0.0
  %4049 = vmatpush1.msra.mxu0 0.0
  %4050 = vmatprep.subr.mxu0 0.0
  %4051 = vmatpush1.msra.mxu0 0.0
  %4052 = vmatprep.subr.mxu0 0.0
  %4053 = vmatpush1.msra.mxu0 0.0
  %4054 = vmatprep.subr.mxu0 0.0
  %4055 = vmatpush1.msra.mxu0 0.0
  %4056 = vmatprep.subr.mxu0 0.0
  %4057 = vmatpush1.msra.mxu0 0.0
  %4058 = vmatprep.subr.mxu0 0.0
  %4059 = vmatpush1.msra.mxu0 0.0
  %4060 = vmatprep.subr.mxu0 0.0
  %4061 = vmatpush1.msra.mxu0 0.0
  %4062 = vmatprep.subr.mxu0 0.0
  %4063 = vmatpush1.msra.mxu0 0.0
  %4064 = vmatprep.subr.mxu0 0.0
  %4065 = vmatpush1.msra.mxu0 0.0
  %4066 = vmatprep.subr.mxu0 0.0
  %4067 = vmatpush1.msra.mxu0 0.0
  %4068 = vmatprep.subr.mxu0 0.0
  %4069 = vmatpush1.msra.mxu0 0.0
  %4070 = vmatprep.subr.mxu0 0.0
  %4071 = vmatpush1.msra.mxu0 0.0
  %4072 = vmatprep.subr.mxu0 0.0
  %4073 = vmatpush1.msra.mxu0 0.0
  %4074 = vmatprep.subr.mxu0 0.0
  %4075 = vmatpush1.msra.mxu0 0.0
  %4076 = vmatprep.subr.mxu0 0.0
  %4077 = vmatpush1.msra.mxu0 0.0
  %4078 = vmatprep.subr.mxu0 0.0
  %4079 = vmatpush1.msra.mxu0 0.0
  %4080 = vmatprep.subr.mxu0 0.0
  %4081 = vmatpush1.msra.mxu0 0.0
  %4082 = vmatprep.subr.mxu0 0.0
  %4083 = vmatpush1.msra.mxu0 0.0
  %4084 = vmatprep.subr.mxu0 0.0
  %4085 = vmatpush1.msra.mxu0 0.0
  %4086 = vmatprep.subr.mxu0 0.0
  %4087 = vmatpush1.msra.mxu0 0.0
  %4088 = vmatprep.subr.mxu0 0.0
  %4089 = vmatpush1.msra.mxu0 0.0
  %4090 = vmatprep.subr.mxu0 0.0
  %4091 = vmatpush1.msra.mxu0 0.0
  %4092 = vmatprep.subr.mxu0 0.0
  %4093 = vmatpush1.msra.mxu0 0.0
  %4094 = vmatprep.subr.mxu0 0.0
  %4095 = vmatpush1.msra.mxu0 0.0
  %4096 = vmatprep.subr.mxu0 0.0
  %4097 = vmatpush1.msra.mxu0 0.0
  %4098 = vmatprep.subr.mxu0 0.0
  %4099 = vmatpush1.msra.mxu0 0.0
  %4100 = vmatprep.subr.mxu0 0.0
  %4101 = vmatpush1.msra.mxu0 0.0
  %4102 = vmatprep.subr.mxu0 0.0
  %4103 = vmatpush1.msra.mxu0 0.0
  %4104 = vmatprep.mubr.f32.mxu0 0.0
  %4105 = vmatmul.mubr.f32.gmra.mrb[0].mxu0 %v3967
  %v4106 = vpop.f32.mrb[0].mxu0
  %v4107 = vadd.f32 %v3965, %v4106
  %v4108 = vpop.f32.mrb[0].mxu0
  %v4109 = vadd.f32 %v3965, %v4108
  %4110 = vdwg.mxu0
  %v4111 = vxor.u32 %v4036, 2147483648
  %v4112 = vxor.u32 %v4038, 2147483648
  %v4113 = vxor.u32 %v4107, 2147483648
  %v4114 = vxor.u32 %v4109, 2147483648
  %v4115 = vmul.f32 %v4111, 1.442695
  %v4116 = vpow.pop %v4115
  %v4117 = vmul.f32 %v4112, 1.442695
  %v4118 = vpow.pop %v4117
  %v4119 = vmul.f32 %v4113, 1.442695
  %v4120 = vpow.pop %v4119
  %v4121 = vmul.f32 %v4114, 1.442695
  %v4122 = vpow.pop %v4121
  %v4123 = vadd.f32 %v4116, 1.0
  %v4124 = vadd.f32 %v4118, 1.0
  %v4125 = vadd.f32 %v4120, 1.0
  %v4126 = vadd.f32 %v4122, 1.0
  %v4127 = vrcp.pop %v4123
  %v4128 = vmul.f32 1.0, %v4127
  %v4129 = vrcp.pop %v4124
  %v4130 = vmul.f32 1.0, %v4129
  %v4131 = vrcp.pop %v4125
  %v4132 = vmul.f32 1.0, %v4131
  %v4133 = vrcp.pop %v4126
  %v4134 = vmul.f32 1.0, %v4133
  %v4135 = vlaneseq
  %v4136 = vshrl.u32 %v4135, 7
  %v4137 = vsub.s32 0, %v4136
  %v4138 = vrot.slane %v4128, %v4137
  %v4139 = vlaneseq
  %v4140 = vshrl.u32 %v4139, 7
  %v4141 = vsub.s32 0, %v4140
  %v4142 = vrot.slane %v4130, %v4141
  %v4143 = vlaneseq
  %v4144 = vshrl.u32 %v4143, 7
  %v4145 = vsub.s32 0, %v4144
  %v4146 = vrot.slane %v4132, %v4145
  %v4147 = vlaneseq
  %v4148 = vshrl.u32 %v4147, 7
  %v4149 = vsub.s32 0, %v4148
  %v4150 = vrot.slane %v4134, %v4149
  %v4152 = vcombine.high %v3954, %v3954
  %v4154 = vunpack.c.l.s4 1983009808
  %v4155 = vunpack.c.0.s8 %v4154
  %v4156 = vlaneseq
  %v4157 = vshrl.u32 %v4156, 7
  %v4158 = vsub.s32 %v4155, %v4157
  %v4159 = vrot.slane %v3954, %v4158
  %v4161 = vunpack.c.l.s4 1983009808
  %v4162 = vunpack.c.0.s8 %v4161
  %v4163 = vlaneseq
  %v4164 = vshrl.u32 %v4163, 7
  %v4165 = vsub.s32 %v4162, %v4164
  %v4166 = vrot.slane %v4152, %v4165
  %v4167 = vcombine.high %v4159, %v4159
  %v4168 = vcombine.high %v4166, %v4166
  %vm4169 = vcmask 15360
  %v4171 = vsel %vm4169, %v3951, 0
  %v4174 = vsel %vm4169, %v3953, 0
  %vm4176 = vcmask 1041408
  %v4177 = vsel %vm4176, %v4159, 0
  %v4179 = vsel %vm4176, %v4167, 0
  %v4181 = vsel %vm4176, %v4166, 0
  %v4183 = vsel %vm4176, %v4168, 0
  %4185 = vmatprep.subr.mxu0 %v4179
  %4186 = vmatpush1.msra.mxu0 %v4177
  %4187 = vmatprep.subr.mxu0 0.0
  %4188 = vmatpush1.msra.mxu0 0.0
  %4189 = vmatprep.subr.mxu0 0.0
  %4190 = vmatpush1.msra.mxu0 0.0
  %4191 = vmatprep.subr.mxu0 0.0
  %4192 = vmatpush1.msra.mxu0 0.0
  %4193 = vmatprep.subr.mxu0 0.0
  %4194 = vmatpush1.msra.mxu0 0.0
  %4195 = vmatprep.subr.mxu0 0.0
  %4196 = vmatpush1.msra.mxu0 0.0
  %4197 = vmatprep.subr.mxu0 0.0
  %4198 = vmatpush1.msra.mxu0 0.0
  %4199 = vmatprep.subr.mxu0 0.0
  %4200 = vmatpush1.msra.mxu0 0.0
  %4201 = vmatprep.subr.mxu0 0.0
  %4202 = vmatpush1.msra.mxu0 0.0
  %4203 = vmatprep.subr.mxu0 0.0
  %4204 = vmatpush1.msra.mxu0 0.0
  %4205 = vmatprep.subr.mxu0 0.0
  %4206 = vmatpush1.msra.mxu0 0.0
  %4207 = vmatprep.subr.mxu0 0.0
  %4208 = vmatpush1.msra.mxu0 0.0
  %4209 = vmatprep.subr.mxu0 0.0
  %4210 = vmatpush1.msra.mxu0 0.0
  %4211 = vmatprep.subr.mxu0 0.0
  %4212 = vmatpush1.msra.mxu0 0.0
  %4213 = vmatprep.subr.mxu0 0.0
  %4214 = vmatpush1.msra.mxu0 0.0
  %4215 = vmatprep.subr.mxu0 0.0
  %4216 = vmatpush1.msra.mxu0 0.0
  %4217 = vmatprep.subr.mxu0 0.0
  %4218 = vmatpush1.msra.mxu0 0.0
  %4219 = vmatprep.subr.mxu0 0.0
  %4220 = vmatpush1.msra.mxu0 0.0
  %4221 = vmatprep.subr.mxu0 0.0
  %4222 = vmatpush1.msra.mxu0 0.0
  %4223 = vmatprep.subr.mxu0 0.0
  %4224 = vmatpush1.msra.mxu0 0.0
  %4225 = vmatprep.subr.mxu0 0.0
  %4226 = vmatpush1.msra.mxu0 0.0
  %4227 = vmatprep.subr.mxu0 0.0
  %4228 = vmatpush1.msra.mxu0 0.0
  %4229 = vmatprep.subr.mxu0 0.0
  %4230 = vmatpush1.msra.mxu0 0.0
  %4231 = vmatprep.subr.mxu0 0.0
  %4232 = vmatpush1.msra.mxu0 0.0
  %4233 = vmatprep.subr.mxu0 0.0
  %4234 = vmatpush1.msra.mxu0 0.0
  %4235 = vmatprep.subr.mxu0 0.0
  %4236 = vmatpush1.msra.mxu0 0.0
  %4237 = vmatprep.subr.mxu0 0.0
  %4238 = vmatpush1.msra.mxu0 0.0
  %4239 = vmatprep.subr.mxu0 0.0
  %4240 = vmatpush1.msra.mxu0 0.0
  %4241 = vmatprep.subr.mxu0 0.0
  %4242 = vmatpush1.msra.mxu0 0.0
  %4243 = vmatprep.subr.mxu0 0.0
  %4244 = vmatpush1.msra.mxu0 0.0
  %4245 = vmatprep.subr.mxu0 0.0
  %4246 = vmatpush1.msra.mxu0 0.0
  %4247 = vmatprep.subr.mxu0 0.0
  %4248 = vmatpush1.msra.mxu0 0.0
  %4249 = vmatprep.mubr.f32.mxu0 0.0
  %4250 = vmatmul.mubr.f32.gmra.mrb[0].mxu0 %v4171
  %v4251 = vpop.f32.mrb[0].mxu0
  %v4252 = vadd.f32 %v4138, %v4251
  %v4253 = vpop.f32.mrb[0].mxu0
  %v4254 = vadd.f32 %v4142, %v4253
  %4255 = vmatprep.mubr.f32.mxu0 0.0
  %4256 = vmatmul.mubr.f32.gmra.mrb[0].mxu0 %v4174
  %v4257 = vpop.f32.mrb[0].mxu0
  %v4258 = vadd.f32 %v4138, %v4257
  %v4259 = vpop.f32.mrb[0].mxu0
  %v4260 = vadd.f32 %v4142, %v4259
  %4261 = vdwg.mxu0
  %4262 = vmatprep.subr.mxu0 %v4183
  %4263 = vmatpush1.msra.mxu0 %v4181
  %4264 = vmatprep.subr.mxu0 0.0
  %4265 = vmatpush1.msra.mxu0 0.0
  %4266 = vmatprep.subr.mxu0 0.0
  %4267 = vmatpush1.msra.mxu0 0.0
  %4268 = vmatprep.subr.mxu0 0.0
  %4269 = vmatpush1.msra.mxu0 0.0
  %4270 = vmatprep.subr.mxu0 0.0
  %4271 = vmatpush1.msra.mxu0 0.0
  %4272 = vmatprep.subr.mxu0 0.0
  %4273 = vmatpush1.msra.mxu0 0.0
  %4274 = vmatprep.subr.mxu0 0.0
  %4275 = vmatpush1.msra.mxu0 0.0
  %4276 = vmatprep.subr.mxu0 0.0
  %4277 = vmatpush1.msra.mxu0 0.0
  %4278 = vmatprep.subr.mxu0 0.0
  %4279 = vmatpush1.msra.mxu0 0.0
  %4280 = vmatprep.subr.mxu0 0.0
  %4281 = vmatpush1.msra.mxu0 0.0
  %4282 = vmatprep.subr.mxu0 0.0
  %4283 = vmatpush1.msra.mxu0 0.0
  %4284 = vmatprep.subr.mxu0 0.0
  %4285 = vmatpush1.msra.mxu0 0.0
  %4286 = vmatprep.subr.mxu0 0.0
  %4287 = vmatpush1.msra.mxu0 0.0
  %4288 = vmatprep.subr.mxu0 0.0
  %4289 = vmatpush1.msra.mxu0 0.0
  %4290 = vmatprep.subr.mxu0 0.0
  %4291 = vmatpush1.msra.mxu0 0.0
  %4292 = vmatprep.subr.mxu0 0.0
  %4293 = vmatpush1.msra.mxu0 0.0
  %4294 = vmatprep.subr.mxu0 0.0
  %4295 = vmatpush1.msra.mxu0 0.0
  %4296 = vmatprep.subr.mxu0 0.0
  %4297 = vmatpush1.msra.mxu0 0.0
  %4298 = vmatprep.subr.mxu0 0.0
  %4299 = vmatpush1.msra.mxu0 0.0
  %4300 = vmatprep.subr.mxu0 0.0
  %4301 = vmatpush1.msra.mxu0 0.0
  %4302 = vmatprep.subr.mxu0 0.0
  %4303 = vmatpush1.msra.mxu0 0.0
  %4304 = vmatprep.subr.mxu0 0.0
  %4305 = vmatpush1.msra.mxu0 0.0
  %4306 = vmatprep.subr.mxu0 0.0
  %4307 = vmatpush1.msra.mxu0 0.0
  %4308 = vmatprep.subr.mxu0 0.0
  %4309 = vmatpush1.msra.mxu0 0.0
  %4310 = vmatprep.subr.mxu0 0.0
  %4311 = vmatpush1.msra.mxu0 0.0
  %4312 = vmatprep.subr.mxu0 0.0
  %4313 = vmatpush1.msra.mxu0 0.0
  %4314 = vmatprep.subr.mxu0 0.0
  %4315 = vmatpush1.msra.mxu0 0.0
  %4316 = vmatprep.subr.mxu0 0.0
  %4317 = vmatpush1.msra.mxu0 0.0
  %4318 = vmatprep.subr.mxu0 0.0
  %4319 = vmatpush1.msra.mxu0 0.0
  %4320 = vmatprep.subr.mxu0 0.0
  %4321 = vmatpush1.msra.mxu0 0.0
  %4322 = vmatprep.subr.mxu0 0.0
  %4323 = vmatpush1.msra.mxu0 0.0
  %4324 = vmatprep.subr.mxu0 0.0
  %4325 = vmatpush1.msra.mxu0 0.0
  %4326 = vmatprep.mubr.f32.mxu0 0.0
  %4327 = vmatmul.mubr.f32.gmra.mrb[0].mxu0 %v4171
  %v4328 = vpop.f32.mrb[0].mxu0
  %v4329 = vadd.f32 %v4146, %v4328
  %v4330 = vpop.f32.mrb[0].mxu0
  %v4331 = vadd.f32 %v4150, %v4330
  %4332 = vmatprep.mubr.f32.mxu0 0.0
  %4333 = vmatmul.mubr.f32.gmra.mrb[0].mxu0 %v4174
  %v4334 = vpop.f32.mrb[0].mxu0
  %v4335 = vadd.f32 %v4146, %v4334
  %v4336 = vpop.f32.mrb[0].mxu0
  %v4337 = vadd.f32 %v4150, %v4336
  %4338 = vdwg.mxu0
  %v4339 = vmul.f32 %v3540, %v4252
  %v4340 = vmul.f32 %v3541, %v4254
  %v4341 = vmul.f32 %v3542, %v4329
  %v4342 = vmul.f32 %v3543, %v4331
  %v4343 = vmul.f32 %v3544, %v4258
  %v4344 = vmul.f32 %v3545, %v4260
  %v4345 = vmul.f32 %v3546, %v4335
  %v4346 = vmul.f32 %v3547, %v4337
  %v4347 = vld [vmem:[%s23] sm:$0x1]
  %v4348 = vld [vmem:[#allocation3] sm:$0x1]
  %4350 = vset.pattern.permute.xlu0 0
  %4351 = vperm.xlu0 %4350, %v4348
  %v4352 = vpop.permute.xlu0 %4351
  %v4354 = vlaneseq
  %v4355 = vshrl.u32 %v4354, 7
  %v4356 = vsub.s32 0, %v4355
  %v4357 = vrot.slane %v4352, %v4356
  %v4359 = vsel %vm830, %v4347, 0
  %4361 = vmatprep.subr.mxu0 %v4340
  %4362 = vmatpush1.msra.mxu0 %v4339
  %4363 = vmatprep.subr.mxu0 %v4344
  %4364 = vmatpush1.msra.mxu0 %v4343
  %4365 = vmatprep.subr.mxu0 0.0
  %4366 = vmatpush1.msra.mxu0 0.0
  %4367 = vmatprep.subr.mxu0 0.0
  %4368 = vmatpush1.msra.mxu0 0.0
  %4369 = vmatprep.subr.mxu0 0.0
  %4370 = vmatpush1.msra.mxu0 0.0
  %4371 = vmatprep.subr.mxu0 0.0
  %4372 = vmatpush1.msra.mxu0 0.0
  %4373 = vmatprep.subr.mxu0 0.0
  %4374 = vmatpush1.msra.mxu0 0.0
  %4375 = vmatprep.subr.mxu0 0.0
  %4376 = vmatpush1.msra.mxu0 0.0
  %4377 = vmatprep.subr.mxu0 0.0
  %4378 = vmatpush1.msra.mxu0 0.0
  %4379 = vmatprep.subr.mxu0 0.0
  %4380 = vmatpush1.msra.mxu0 0.0
  %4381 = vmatprep.subr.mxu0 0.0
  %4382 = vmatpush1.msra.mxu0 0.0
  %4383 = vmatprep.subr.mxu0 0.0
  %4384 = vmatpush1.msra.mxu0 0.0
  %4385 = vmatprep.subr.mxu0 0.0
  %4386 = vmatpush1.msra.mxu0 0.0
  %4387 = vmatprep.subr.mxu0 0.0
  %4388 = vmatpush1.msra.mxu0 0.0
  %4389 = vmatprep.subr.mxu0 0.0
  %4390 = vmatpush1.msra.mxu0 0.0
  %4391 = vmatprep.subr.mxu0 0.0
  %4392 = vmatpush1.msra.mxu0 0.0
  %4393 = vmatprep.subr.mxu0 0.0
  %4394 = vmatpush1.msra.mxu0 0.0
  %4395 = vmatprep.subr.mxu0 0.0
  %4396 = vmatpush1.msra.mxu0 0.0
  %4397 = vmatprep.subr.mxu0 0.0
  %4398 = vmatpush1.msra.mxu0 0.0
  %4399 = vmatprep.subr.mxu0 0.0
  %4400 = vmatpush1.msra.mxu0 0.0
  %4401 = vmatprep.subr.mxu0 0.0
  %4402 = vmatpush1.msra.mxu0 0.0
  %4403 = vmatprep.subr.mxu0 0.0
  %4404 = vmatpush1.msra.mxu0 0.0
  %4405 = vmatprep.subr.mxu0 0.0
  %4406 = vmatpush1.msra.mxu0 0.0
  %4407 = vmatprep.subr.mxu0 0.0
  %4408 = vmatpush1.msra.mxu0 0.0
  %4409 = vmatprep.subr.mxu0 0.0
  %4410 = vmatpush1.msra.mxu0 0.0
  %4411 = vmatprep.subr.mxu0 0.0
  %4412 = vmatpush1.msra.mxu0 0.0
  %4413 = vmatprep.subr.mxu0 0.0
  %4414 = vmatpush1.msra.mxu0 0.0
  %4415 = vmatprep.subr.mxu0 0.0
  %4416 = vmatpush1.msra.mxu0 0.0
  %4417 = vmatprep.subr.mxu0 0.0
  %4418 = vmatpush1.msra.mxu0 0.0
  %4419 = vmatprep.subr.mxu0 0.0
  %4420 = vmatpush1.msra.mxu0 0.0
  %4421 = vmatprep.subr.mxu0 0.0
  %4422 = vmatpush1.msra.mxu0 0.0
  %4423 = vmatprep.subr.mxu0 0.0
  %4424 = vmatpush1.msra.mxu0 0.0
  %4425 = vmatprep.mubr.f32.mxu0 0.0
  %4426 = vmatmul.mubr.f32.gmra.mrb[0].mxu0 %v4359
  %v4427 = vpop.f32.mrb[0].mxu0
  %v4428 = vadd.f32 %v4357, %v4427
  %v4429 = vpop.f32.mrb[0].mxu0
  %v4430 = vadd.f32 %v4357, %v4429
  %4431 = vdwg.mxu0
  %4432 = vmatprep.subr.mxu0 %v4342
  %4433 = vmatpush1.msra.mxu0 %v4341
  %4434 = vmatprep.subr.mxu0 %v4346
  %4435 = vmatpush1.msra.mxu0 %v4345
  %4436 = vmatprep.subr.mxu0 0.0
  %4437 = vmatpush1.msra.mxu0 0.0
  %4438 = vmatprep.subr.mxu0 0.0
  %4439 = vmatpush1.msra.mxu0 0.0
  %4440 = vmatprep.subr.mxu0 0.0
  %4441 = vmatpush1.msra.mxu0 0.0
  %4442 = vmatprep.subr.mxu0 0.0
  %4443 = vmatpush1.msra.mxu0 0.0
  %4444 = vmatprep.subr.mxu0 0.0
  %4445 = vmatpush1.msra.mxu0 0.0
  %4446 = vmatprep.subr.mxu0 0.0
  %4447 = vmatpush1.msra.mxu0 0.0
  %4448 = vmatprep.subr.mxu0 0.0
  %4449 = vmatpush1.msra.mxu0 0.0
  %4450 = vmatprep.subr.mxu0 0.0
  %4451 = vmatpush1.msra.mxu0 0.0
  %4452 = vmatprep.subr.mxu0 0.0
  %4453 = vmatpush1.msra.mxu0 0.0
  %4454 = vmatprep.subr.mxu0 0.0
  %4455 = vmatpush1.msra.mxu0 0.0
  %4456 = vmatprep.subr.mxu0 0.0
  %4457 = vmatpush1.msra.mxu0 0.0
  %4458 = vmatprep.subr.mxu0 0.0
  %4459 = vmatpush1.msra.mxu0 0.0
  %4460 = vmatprep.subr.mxu0 0.0
  %4461 = vmatpush1.msra.mxu0 0.0
  %4462 = vmatprep.subr.mxu0 0.0
  %4463 = vmatpush1.msra.mxu0 0.0
  %4464 = vmatprep.subr.mxu0 0.0
  %4465 = vmatpush1.msra.mxu0 0.0
  %4466 = vmatprep.subr.mxu0 0.0
  %4467 = vmatpush1.msra.mxu0 0.0
  %4468 = vmatprep.subr.mxu0 0.0
  %4469 = vmatpush1.msra.mxu0 0.0
  %4470 = vmatprep.subr.mxu0 0.0
  %4471 = vmatpush1.msra.mxu0 0.0
  %4472 = vmatprep.subr.mxu0 0.0
  %4473 = vmatpush1.msra.mxu0 0.0
  %4474 = vmatprep.subr.mxu0 0.0
  %4475 = vmatpush1.msra.mxu0 0.0
  %4476 = vmatprep.subr.mxu0 0.0
  %4477 = vmatpush1.msra.mxu0 0.0
  %4478 = vmatprep.subr.mxu0 0.0
  %4479 = vmatpush1.msra.mxu0 0.0
  %4480 = vmatprep.subr.mxu0 0.0
  %4481 = vmatpush1.msra.mxu0 0.0
  %4482 = vmatprep.subr.mxu0 0.0
  %4483 = vmatpush1.msra.mxu0 0.0
  %4484 = vmatprep.subr.mxu0 0.0
  %4485 = vmatpush1.msra.mxu0 0.0
  %4486 = vmatprep.subr.mxu0 0.0
  %4487 = vmatpush1.msra.mxu0 0.0
  %4488 = vmatprep.subr.mxu0 0.0
  %4489 = vmatpush1.msra.mxu0 0.0
  %4490 = vmatprep.subr.mxu0 0.0
  %4491 = vmatpush1.msra.mxu0 0.0
  %4492 = vmatprep.subr.mxu0 0.0
  %4493 = vmatpush1.msra.mxu0 0.0
  %4494 = vmatprep.subr.mxu0 0.0
  %4495 = vmatpush1.msra.mxu0 0.0
  %4496 = vmatprep.mubr.f32.mxu0 0.0
  %4497 = vmatmul.mubr.f32.gmra.mrb[0].mxu0 %v4359
  %v4498 = vpop.f32.mrb[0].mxu0
  %v4499 = vadd.f32 %v4357, %v4498
  %v4500 = vpop.f32.mrb[0].mxu0
  %v4501 = vadd.f32 %v4357, %v4500
  %4502 = vdwg.mxu0
  %v4503 = vxor.u32 %v4428, 2147483648
  %v4504 = vxor.u32 %v4430, 2147483648
  %v4505 = vxor.u32 %v4499, 2147483648
  %v4506 = vxor.u32 %v4501, 2147483648
  %v4507 = vmul.f32 %v4503, 1.442695
  %v4508 = vpow.pop %v4507
  %v4509 = vmul.f32 %v4504, 1.442695
  %v4510 = vpow.pop %v4509
  %v4511 = vmul.f32 %v4505, 1.442695
  %v4512 = vpow.pop %v4511
  %v4513 = vmul.f32 %v4506, 1.442695
  %v4514 = vpow.pop %v4513
  %v4515 = vadd.f32 %v4508, 1.0
  %v4516 = vadd.f32 %v4510, 1.0
  %v4517 = vadd.f32 %v4512, 1.0
  %v4518 = vadd.f32 %v4514, 1.0
  %v4519 = vrcp.pop %v4515
  %v4520 = vmul.f32 1.0, %v4519
  %v4521 = vrcp.pop %v4516
  %v4522 = vmul.f32 1.0, %v4521
  %v4523 = vrcp.pop %v4517
  %v4524 = vmul.f32 1.0, %v4523
  %v4525 = vrcp.pop %v4518
  %v4526 = vmul.f32 1.0, %v4525
  %v4531 = vcombine.low %v4520, %v4522
  %v4532 = vcombine.low %v4524, %v4526
  %v4534 = vunpack.c.l.s4 1966171168
  %v4535 = vunpack.c.0.s8 %v4534
  %v4536 = vlaneseq
  %v4537 = vshrl.u32 %v4536, 7
  %v4538 = vsub.s32 %v4535, %v4537
  %v4539 = vrot.slane %v4531, %v4538
  %v4541 = vunpack.c.l.s4 1966171168
  %v4542 = vunpack.c.0.s8 %v4541
  %v4543 = vlaneseq
  %v4544 = vshrl.u32 %v4543, 7
  %v4545 = vsub.s32 %v4542, %v4544
  %v4546 = vrot.slane %v4532, %v4545
  %v4547 = vcombine.low %v4539, %v4546
  %v4549 = vunpack.c.l.s4 1966171168
  %v4550 = vunpack.c.0.s8 %v4549
  %v4551 = vlaneseq
  %v4552 = vshrl.u32 %v4551, 7
  %v4553 = vsub.s32 %v4550, %v4552
  %v4554 = vrot.slane %v4547, %v4553
  %v4556 = vlaneseq
  %vm4557 = vcmp.ge.s32.totalorder %v4556, 0
  %vm4558 = vcmp.lt.s32.totalorder %v4556, 512
  %vm4559 = vmand %vm4557, %vm4558
  %4560 = vst.msk [vmem:[%s25] sm:$0xf] %vm4559, %v4554
  // Predicated region
  $region102: #{detector_forward.1} parent=0 // pred_check
    _
  $region103: #{detector_forward.1} parent=0 // pred_check_branch
    %4562 = sbr.rel (0) target = $region105
  $region104: #{detector_forward.1} parent=0 // pred_region
    _
  $region105: #{detector_forward.1} parent=0 // pred_fallthru
    _
  // Predicated region
  $region106: #{detector_forward.1} parent=0 // pred_check
    _
  $region107: #{detector_forward.1} parent=0 // pred_check_branch
    %4564 = sbr.rel (0) target = $region109
  $region108: #{detector_forward.1} parent=0 // pred_region
    _
  $region109: #{detector_forward.1} parent=0 // pred_fallthru
    _

</llo_original>
